<compile_context>
chip_gen: v7x
topology: tpu7x:2x2x1
jax: 0.10.0
libtpu: 0.0.40
codegen_flags: <defaults>
</compile_context>

<pallas_src>
import functools

import jax
import jax.numpy as jnp
from jax import lax
from jax.experimental import pallas as pl
from jax.experimental.pallas import tpu as pltpu


# ----------------------------------------------------------------------------
# helpers
# ----------------------------------------------------------------------------
def _round_up(n: int, m: int) -> int:
    return ((n + m - 1) // m) * m


def _pad_cols(a, target):
    pad = target - a.shape[1]
    return a if pad == 0 else jnp.pad(a, ((0, 0), (0, pad)))


def _pad_rows(a, target):
    pad = target - a.shape[0]
    return a if pad == 0 else jnp.pad(a, ((0, pad), (0, 0)))


def _pick_tile(n: int, preferred=(256, 128)) -> int:
    for t in preferred:
        if n % t == 0:
            return t
    return n  # fall back to full extent (legal: block dim == array dim)


# ----------------------------------------------------------------------------
# Kernel 1: support = x @ W   (row-tiled dense matmul on the MXU)
# ----------------------------------------------------------------------------
def xw_kernel(x_ref, w_ref, o_ref):
    o_ref[...] = jnp.dot(
        x_ref[...], w_ref[...], preferred_element_type=jnp.float32
    ).astype(o_ref.dtype)


# ----------------------------------------------------------------------------
# Kernel 2: pre = adj @ support + b, with fused epilogue
#   mode == "relu":        act = relu(pre)
#   mode == "log_softmax": act = log_softmax(pre[:, :n_valid])  (padded lanes -> 0)
# Reduction over the k (column-of-adj) grid axis with a VMEM f32 accumulator.
# ----------------------------------------------------------------------------
def aggregate_kernel(adj_ref, sup_ref, b_ref, pre_ref, act_ref, acc_ref, *,
                     mode, n_valid):
    k = pl.program_id(1)

    @pl.when(k == 0)
    def _():
        acc_ref[...] = jnp.zeros_like(acc_ref)

    acc_ref[...] += jnp.dot(
        adj_ref[...], sup_ref[...], preferred_element_type=jnp.float32
    )

    @pl.when(k == pl.num_programs(1) - 1)
    def _():
        # Bias is only touched once per output row-tile (hoisted into finalize).
        pre = acc_ref[...] + b_ref[...]          # (tm, Fp) + (1, Fp)
        pre_ref[...] = pre.astype(pre_ref.dtype)
        if mode == "relu":
            act_ref[...] = jnp.maximum(pre, 0.0).astype(act_ref.dtype)
        else:  # "log_softmax" over the first n_valid lanes (PyTorch dim=1)
            col = lax.broadcasted_iota(jnp.int32, pre.shape, 1)
            valid = col < n_valid
            masked = jnp.where(valid, pre, -1e30)
            m = jnp.max(masked, axis=-1, keepdims=True)
            z = masked - m
            lse = jnp.log(jnp.sum(jnp.exp(z), axis=-1, keepdims=True))
            act_ref[...] = jnp.where(valid, z - lse, 0.0).astype(act_ref.dtype)


# ----------------------------------------------------------------------------
# One GraphConvolution layer (padded, lane-dense), returns (pre_act, activated)
# ----------------------------------------------------------------------------
def gcn_layer(x_pad, w_pad, b_pad, adj, *, n_valid_out, mode):
    n, f_in_pad = x_pad.shape
    f_out_pad = w_pad.shape[1]
    tm = _pick_tile(n)
    tk = _pick_tile(n)

    # Stage 1: support = x @ W  (row-tiled, auto-pipelined)
    support = pl.pallas_call(
        xw_kernel,
        out_shape=jax.ShapeDtypeStruct((n, f_out_pad), jnp.float32),
        grid=(n // tm,),
        in_specs=[
            pl.BlockSpec((tm, f_in_pad), lambda i: (i, 0)),
            pl.BlockSpec((f_in_pad, f_out_pad), lambda i: (0, 0)),
        ],
        out_specs=pl.BlockSpec((tm, f_out_pad), lambda i: (i, 0)),
        compiler_params=pltpu.CompilerParams(
            dimension_semantics=("parallel",),
        ),
    )(x_pad, w_pad)

    # Stage 2: adj @ support with reduction grid + fused bias / relu / log_softmax
    kernel = functools.partial(aggregate_kernel, mode=mode, n_valid=n_valid_out)
    pre, act = pl.pallas_call(
        kernel,
        out_shape=(
            jax.ShapeDtypeStruct((n, f_out_pad), jnp.float32),
            jax.ShapeDtypeStruct((n, f_out_pad), jnp.float32),
        ),
        grid=(n // tm, n // tk),
        in_specs=[
            pl.BlockSpec((tm, tk), lambda i, k: (i, k)),            # adj stream
            pl.BlockSpec((tk, f_out_pad), lambda i, k: (k, 0)),      # support
            pl.BlockSpec((1, f_out_pad), lambda i, k: (0, 0)),       # bias
        ],
        out_specs=(
            pl.BlockSpec((tm, f_out_pad), lambda i, k: (i, 0)),
            pl.BlockSpec((tm, f_out_pad), lambda i, k: (i, 0)),
        ),
        scratch_shapes=[pltpu.VMEM((tm, f_out_pad), jnp.float32)],
        compiler_params=pltpu.CompilerParams(
            dimension_semantics=("parallel", "arbitrary"),
            vmem_limit_bytes=32 * 1024 * 1024,
        ),
    )(adj, support, b_pad)
    return pre, act


# ----------------------------------------------------------------------------
# Full GCN forward (eval mode). Returns (log_softmax, embed1, embed2) like the
# PyTorch module.
# ----------------------------------------------------------------------------
def gcn_forward(x, adj, params):
    nfeat = x.shape[1]
    nhid = params["w1"].shape[1]
    nclass = params["w2"].shape[1]

    feat_p = _round_up(nfeat, 128)
    hid_p = _round_up(nhid, 128)
    cls_p = _round_up(nclass, 128)

    # Zero-pad feature dims to 128 lanes (lane-dense stores, full MXU columns).
    x_p = _pad_cols(x, feat_p)
    w1_p = _pad_cols(_pad_rows(params["w1"], feat_p), hid_p)
    b1_p = _pad_cols(params["b1"].reshape(1, -1), hid_p)
    w2_p = _pad_cols(_pad_rows(params["w2"], hid_p), cls_p)
    b2_p = _pad_cols(params["b2"].reshape(1, -1), cls_p)

    embed1_p, h_p = gcn_layer(x_p, w1_p, b1_p, adj, n_valid_out=nhid, mode="relu")
    # TODO(synk): dropout omitted — module evaluated with training=False, where
    # F.dropout is the identity.
    embed2_p, logp_p = gcn_layer(h_p, w2_p, b2_p, adj, n_valid_out=nclass,
                                 mode="log_softmax")

    return logp_p[:, :nclass], embed1_p[:, :nhid], embed2_p[:, :nclass]


def init_params(key, nfeat, nhid, nclass):
    k1, k2, k3, k4 = jax.random.split(key, 4)
    # pygcn GraphConvolution uses uniform(-1/sqrt(fan_out), 1/sqrt(fan_out))
    s1 = 1.0 / jnp.sqrt(jnp.float32(nhid))
    s2 = 1.0 / jnp.sqrt(jnp.float32(nclass))
    return {
        "w1": jax.random.uniform(k1, (nfeat, nhid), jnp.float32, -s1, s1),
        "b1": jax.random.uniform(k2, (nhid,), jnp.float32, -s1, s1),
        "w2": jax.random.uniform(k3, (nhid, nclass), jnp.float32, -s2, s2),
        "b2": jax.random.uniform(k4, (nclass,), jnp.float32, -s2, s2),
    }


if __name__ == "__main__":
    # Small synthetic graph (N chosen so the 256x256 adj tiling is exercised).
    N, NFEAT, NHID, NCLASS = 512, 32, 16, 8
    key = jax.random.PRNGKey(0)
    kx, kadj, kparams = jax.random.split(key, 3)

    x = jax.random.normal(kx, (N, NFEAT), jnp.float32)

    # Symmetric, row-normalized adjacency with self-loops (typical GCN input).
    a = (jax.random.uniform(kadj, (N, N)) < 0.05).astype(jnp.float32)
    a = jnp.maximum(a, a.T) + jnp.eye(N, dtype=jnp.float32)
    adj = a / jnp.sum(a, axis=1, keepdims=True)

    params = init_params(kparams, NFEAT, NHID, NCLASS)

    log_probs, embed1, embed2 = jax.jit(gcn_forward)(x, adj, params)
    jax.block_until_ready((log_probs, embed1, embed2))

    # Plain-JAX reference for a cheap sanity check.
    ref_e1 = adj @ (x @ params["w1"]) + params["b1"]
    ref_h = jnp.maximum(ref_e1, 0.0)
    ref_e2 = adj @ (ref_h @ params["w2"]) + params["b2"]
    ref_lp = jax.nn.log_softmax(ref_e2, axis=1)

    assert log_probs.shape == (N, NCLASS)
    assert embed1.shape == (N, NHID)
    assert embed2.shape == (N, NCLASS)
    assert jnp.max(jnp.abs(embed1 - ref_e1)) < 1e-4
    assert jnp.max(jnp.abs(embed2 - ref_e2)) < 1e-4
    assert jnp.max(jnp.abs(log_probs - ref_lp)) < 1e-4

    print("KERNEL_OK")
</pallas_src>

<mosaic_0001>
module attributes {stable_mosaic.version = 11 : i64} {
  func.func @xw_kernel(%arg0: i32, %arg1: memref<256x128xf32, #tpu.memory_space<vmem>>, %arg2: memref<128x128xf32, #tpu.memory_space<vmem>>, %arg3: memref<256x128xf32, #tpu.memory_space<vmem>>) attributes {dimension_semantics = [#tpu.dimension_semantics<parallel>], iteration_bounds = array<i64: 2>, scalar_prefetch = 0 : i64, scratch_operands = 0 : i64, tpu.core_type = #tpu.core_type<tc>, window_params = [{transform_indices = @transform_0, window_bounds = array<i64: 256, 128>}, {pipeline_mode = #tpu.pipeline_mode<synchronous>, transform_indices = @transform_1, window_bounds = array<i64: 128, 128>}, {transform_indices = @transform_2, window_bounds = array<i64: 256, 128>}]} {
    %c0 = arith.constant 0 : index
    %c0_0 = arith.constant 0 : index
    %0 = vector.load %arg1[%c0, %c0_0] : memref<256x128xf32, #tpu.memory_space<vmem>>, vector<256x128xf32>
    %c0_1 = arith.constant 0 : index
    %c0_2 = arith.constant 0 : index
    %1 = vector.load %arg2[%c0_1, %c0_2] : memref<128x128xf32, #tpu.memory_space<vmem>>, vector<128x128xf32>
    %cst = arith.constant dense<0.000000e+00> : vector<256x128xf32>
    %2 = tpu.matmul %0, %1, %cst {dimension_numbers = #tpu.dot_dimension_numbers<[1], [0], [0], [1], [0, 0, 1, 1], [], []>} : vector<256x128xf32>, vector<128x128xf32>, vector<256x128xf32> -> vector<256x128xf32>
    %c0_3 = arith.constant 0 : index
    %c0_4 = arith.constant 0 : index
    %3 = vector.load %arg3[%c0_3, %c0_4] : memref<256x128xf32, #tpu.memory_space<vmem>>, vector<256x128xf32>
    tpu.vector_store %arg3[%c0_3, %c0_4], %2 {strides = array<i32>} : memref<256x128xf32, #tpu.memory_space<vmem>>, vector<256x128xf32>,
    return
  }
  func.func @transform_0(%arg0: i32) -> (i32, i32) {
    %c0_i32 = arith.constant 0 : i32
    %c0_i32_0 = arith.constant 0 : i32
    return %arg0, %c0_i32 : i32, i32
  }
  func.func @transform_1(%arg0: i32) -> (i32, i32) {
    %c0_i32 = arith.constant 0 : i32
    %c0_i32_0 = arith.constant 0 : i32
    %c0_i32_1 = arith.constant 0 : i32
    return %c0_i32, %c0_i32_0 : i32, i32
  }
  func.func @transform_2(%arg0: i32) -> (i32, i32) {
    %c0_i32 = arith.constant 0 : i32
    %c0_i32_0 = arith.constant 0 : i32
    return %arg0, %c0_i32 : i32, i32
  }
}

module attributes {stable_mosaic.version = 11 : i64} {
  func.func @aggregate_kernel(%arg0: i32, %arg1: i32, %arg2: memref<256x256xf32, #tpu.memory_space<vmem>>, %arg3: memref<256x128xf32, #tpu.memory_space<vmem>>, %arg4: memref<1x128xf32, #tpu.memory_space<vmem>>, %arg5: memref<256x128xf32, #tpu.memory_space<vmem>>, %arg6: memref<256x128xf32, #tpu.memory_space<vmem>>, %arg7: memref<256x128xf32, #tpu.memory_space<vmem>>) attributes {dimension_semantics = [#tpu.dimension_semantics<parallel>, #tpu.dimension_semantics<arbitrary>], iteration_bounds = array<i64: 2, 2>, scalar_prefetch = 0 : i64, scratch_operands = 1 : i64, tpu.core_type = #tpu.core_type<tc>, window_params = [{transform_indices = @transform_0, window_bounds = array<i64: 256, 256>}, {transform_indices = @transform_1, window_bounds = array<i64: 256, 128>}, {pipeline_mode = #tpu.pipeline_mode<synchronous>, transform_indices = @transform_2, window_bounds = array<i64: 1, 128>}, {transform_indices = @transform_3, window_bounds = array<i64: 256, 128>}, {transform_indices = @transform_4, window_bounds = array<i64: 256, 128>}]} {
    %c0_i32 = arith.constant 0 : i32
    %0 = arith.cmpi eq, %arg1, %c0_i32 : i32
    %1 = arith.extui %0 : i1 to i32
    %c0_i32_0 = arith.constant 0 : i32
    %2 = arith.cmpi ne, %1, %c0_i32_0 : i32
    scf.if %2 {
      %cst_9 = arith.constant 0.000000e+00 : f32
      %12 = vector.broadcast %cst_9 : f32 to vector<256x128xf32>
      %c0_10 = arith.constant 0 : index
      %c0_11 = arith.constant 0 : index
      %13 = vector.load %arg7[%c0_10, %c0_11] : memref<256x128xf32, #tpu.memory_space<vmem>>, vector<256x128xf32>
      tpu.vector_store %arg7[%c0_10, %c0_11], %12 {strides = array<i32>} : memref<256x128xf32, #tpu.memory_space<vmem>>, vector<256x128xf32>,
    } else {
    }
    %c0 = arith.constant 0 : index
    %c0_1 = arith.constant 0 : index
    %3 = vector.load %arg7[%c0, %c0_1] : memref<256x128xf32, #tpu.memory_space<vmem>>, vector<256x128xf32>
    %c0_2 = arith.constant 0 : index
    %c0_3 = arith.constant 0 : index
    %4 = vector.load %arg2[%c0_2, %c0_3] : memref<256x256xf32, #tpu.memory_space<vmem>>, vector<256x256xf32>
    %c0_4 = arith.constant 0 : index
    %c0_5 = arith.constant 0 : index
    %5 = vector.load %arg3[%c0_4, %c0_5] : memref<256x128xf32, #tpu.memory_space<vmem>>, vector<256x128xf32>
    %cst = arith.constant dense<0.000000e+00> : vector<256x128xf32>
    %6 = tpu.matmul %4, %5, %cst {dimension_numbers = #tpu.dot_dimension_numbers<[1], [0], [0], [1], [0, 0, 1, 1], [], []>} : vector<256x256xf32>, vector<256x128xf32>, vector<256x128xf32> -> vector<256x128xf32>
    %7 = arith.addf %3, %6 : vector<256x128xf32>
    %c0_6 = arith.constant 0 : index
    %c0_7 = arith.constant 0 : index
    %8 = vector.load %arg7[%c0_6, %c0_7] : memref<256x128xf32, #tpu.memory_space<vmem>>, vector<256x128xf32>
    tpu.vector_store %arg7[%c0_6, %c0_7], %7 {strides = array<i32>} : memref<256x128xf32, #tpu.memory_space<vmem>>, vector<256x128xf32>,
    %c1_i32 = arith.constant 1 : i32
    %9 = arith.cmpi eq, %arg1, %c1_i32 : i32
    %10 = arith.extui %9 : i1 to i32
    %c0_i32_8 = arith.constant 0 : i32
    %11 = arith.cmpi ne, %10, %c0_i32_8 : i32
    scf.if %11 {
      %c0_9 = arith.constant 0 : index
      %c0_10 = arith.constant 0 : index
      %12 = vector.load %arg7[%c0_9, %c0_10] : memref<256x128xf32, #tpu.memory_space<vmem>>, vector<256x128xf32>
      %c0_11 = arith.constant 0 : index
      %c0_12 = arith.constant 0 : index
      %13 = vector.load %arg4[%c0_11, %c0_12] : memref<1x128xf32, #tpu.memory_space<vmem>>, vector<1x128xf32>
      %14 = vector.broadcast %13 : vector<1x128xf32> to vector<256x128xf32>
      %15 = arith.addf %12, %14 : vector<256x128xf32>
      %c0_13 = arith.constant 0 : index
      %c0_14 = arith.constant 0 : index
      %16 = vector.load %arg5[%c0_13, %c0_14] : memref<256x128xf32, #tpu.memory_space<vmem>>, vector<256x128xf32>
      tpu.vector_store %arg5[%c0_13, %c0_14], %15 {strides = array<i32>} : memref<256x128xf32, #tpu.memory_space<vmem>>, vector<256x128xf32>,
      %cst_15 = arith.constant 0.000000e+00 : f32
      %17 = vector.broadcast %cst_15 : f32 to vector<256x128xf32>
      %18 = arith.maximumf %15, %17 : vector<256x128xf32>
      %c0_16 = arith.constant 0 : index
      %c0_17 = arith.constant 0 : index
      %19 = vector.load %arg6[%c0_16, %c0_17] : memref<256x128xf32, #tpu.memory_space<vmem>>, vector<256x128xf32>
      tpu.vector_store %arg6[%c0_16, %c0_17], %18 {strides = array<i32>} : memref<256x128xf32, #tpu.memory_space<vmem>>, vector<256x128xf32>,
    } else {
    }
    return
  }
  func.func @transform_0(%arg0: i32, %arg1: i32) -> (i32, i32) {
    %c0_i32 = arith.constant 0 : i32
    return %arg0, %arg1 : i32, i32
  }
  func.func @transform_1(%arg0: i32, %arg1: i32) -> (i32, i32) {
    %c0_i32 = arith.constant 0 : i32
    %c0_i32_0 = arith.constant 0 : i32
    return %arg1, %c0_i32 : i32, i32
  }
  func.func @transform_2(%arg0: i32, %arg1: i32) -> (i32, i32) {
    %c0_i32 = arith.constant 0 : i32
    %c0_i32_0 = arith.constant 0 : i32
    %c0_i32_1 = arith.constant 0 : i32
    return %c0_i32, %c0_i32_0 : i32, i32
  }
  func.func @transform_3(%arg0: i32, %arg1: i32) -> (i32, i32) {
    %c0_i32 = arith.constant 0 : i32
    %c0_i32_0 = arith.constant 0 : i32
    return %arg0, %c0_i32 : i32, i32
  }
  func.func @transform_4(%arg0: i32, %arg1: i32) -> (i32, i32) {
    %c0_i32 = arith.constant 0 : i32
    %c0_i32_0 = arith.constant 0 : i32
    return %arg0, %c0_i32 : i32, i32
  }
}

module attributes {stable_mosaic.version = 11 : i64} {
  func.func @aggregate_kernel(%arg0: i32, %arg1: i32, %arg2: memref<256x256xf32, #tpu.memory_space<vmem>>, %arg3: memref<256x128xf32, #tpu.memory_space<vmem>>, %arg4: memref<1x128xf32, #tpu.memory_space<vmem>>, %arg5: memref<256x128xf32, #tpu.memory_space<vmem>>, %arg6: memref<256x128xf32, #tpu.memory_space<vmem>>, %arg7: memref<256x128xf32, #tpu.memory_space<vmem>>) attributes {dimension_semantics = [#tpu.dimension_semantics<parallel>, #tpu.dimension_semantics<arbitrary>], iteration_bounds = array<i64: 2, 2>, scalar_prefetch = 0 : i64, scratch_operands = 1 : i64, tpu.core_type = #tpu.core_type<tc>, window_params = [{transform_indices = @transform_0, window_bounds = array<i64: 256, 256>}, {transform_indices = @transform_1, window_bounds = array<i64: 256, 128>}, {pipeline_mode = #tpu.pipeline_mode<synchronous>, transform_indices = @transform_2, window_bounds = array<i64: 1, 128>}, {transform_indices = @transform_3, window_bounds = array<i64: 256, 128>}, {transform_indices = @transform_4, window_bounds = array<i64: 256, 128>}]} {
    %c0_i32 = arith.constant 0 : i32
    %0 = arith.cmpi eq, %arg1, %c0_i32 : i32
    %1 = arith.extui %0 : i1 to i32
    %c0_i32_0 = arith.constant 0 : i32
    %2 = arith.cmpi ne, %1, %c0_i32_0 : i32
    scf.if %2 {
      %cst_9 = arith.constant 0.000000e+00 : f32
      %12 = vector.broadcast %cst_9 : f32 to vector<256x128xf32>
      %c0_10 = arith.constant 0 : index
      %c0_11 = arith.constant 0 : index
      %13 = vector.load %arg7[%c0_10, %c0_11] : memref<256x128xf32, #tpu.memory_space<vmem>>, vector<256x128xf32>
      tpu.vector_store %arg7[%c0_10, %c0_11], %12 {strides = array<i32>} : memref<256x128xf32, #tpu.memory_space<vmem>>, vector<256x128xf32>,
    } else {
    }
    %c0 = arith.constant 0 : index
    %c0_1 = arith.constant 0 : index
    %3 = vector.load %arg7[%c0, %c0_1] : memref<256x128xf32, #tpu.memory_space<vmem>>, vector<256x128xf32>
    %c0_2 = arith.constant 0 : index
    %c0_3 = arith.constant 0 : index
    %4 = vector.load %arg2[%c0_2, %c0_3] : memref<256x256xf32, #tpu.memory_space<vmem>>, vector<256x256xf32>
    %c0_4 = arith.constant 0 : index
    %c0_5 = arith.constant 0 : index
    %5 = vector.load %arg3[%c0_4, %c0_5] : memref<256x128xf32, #tpu.memory_space<vmem>>, vector<256x128xf32>
    %cst = arith.constant dense<0.000000e+00> : vector<256x128xf32>
    %6 = tpu.matmul %4, %5, %cst {dimension_numbers = #tpu.dot_dimension_numbers<[1], [0], [0], [1], [0, 0, 1, 1], [], []>} : vector<256x256xf32>, vector<256x128xf32>, vector<256x128xf32> -> vector<256x128xf32>
    %7 = arith.addf %3, %6 : vector<256x128xf32>
    %c0_6 = arith.constant 0 : index
    %c0_7 = arith.constant 0 : index
    %8 = vector.load %arg7[%c0_6, %c0_7] : memref<256x128xf32, #tpu.memory_space<vmem>>, vector<256x128xf32>
    tpu.vector_store %arg7[%c0_6, %c0_7], %7 {strides = array<i32>} : memref<256x128xf32, #tpu.memory_space<vmem>>, vector<256x128xf32>,
    %c1_i32 = arith.constant 1 : i32
    %9 = arith.cmpi eq, %arg1, %c1_i32 : i32
    %10 = arith.extui %9 : i1 to i32
    %c0_i32_8 = arith.constant 0 : i32
    %11 = arith.cmpi ne, %10, %c0_i32_8 : i32
    scf.if %11 {
      %c0_9 = arith.constant 0 : index
      %c0_10 = arith.constant 0 : index
      %12 = vector.load %arg7[%c0_9, %c0_10] : memref<256x128xf32, #tpu.memory_space<vmem>>, vector<256x128xf32>
      %c0_11 = arith.constant 0 : index
      %c0_12 = arith.constant 0 : index
      %13 = vector.load %arg4[%c0_11, %c0_12] : memref<1x128xf32, #tpu.memory_space<vmem>>, vector<1x128xf32>
      %14 = vector.broadcast %13 : vector<1x128xf32> to vector<256x128xf32>
      %15 = arith.addf %12, %14 : vector<256x128xf32>
      %c0_13 = arith.constant 0 : index
      %c0_14 = arith.constant 0 : index
      %16 = vector.load %arg5[%c0_13, %c0_14] : memref<256x128xf32, #tpu.memory_space<vmem>>, vector<256x128xf32>
      tpu.vector_store %arg5[%c0_13, %c0_14], %15 {strides = array<i32>} : memref<256x128xf32, #tpu.memory_space<vmem>>, vector<256x128xf32>,
      %17 = tpu.iota {dimensions = array<i32: 1>} : vector<256x128xi32>
      %c8_i32 = arith.constant 8 : i32
      %18 = vector.broadcast %c8_i32 : i32 to vector<256x128xi32>
      %19 = arith.cmpi slt, %17, %18 : vector<256x128xi32>
      %cst_15 = arith.constant -1.000000e+30 : f32
      %20 = vector.broadcast %cst_15 : f32 to vector<256x128xf32>
      %21 = arith.select %19, %15, %20 : vector<256x128xi1>, vector<256x128xf32>
      %cst_16 = arith.constant dense<0xFF800000> : vector<256xf32>
      %22 = vector.multi_reduction <maximumf>, %21, %cst_16 [1] : vector<256x128xf32> to vector<256xf32>
      %23 = vector.shape_cast %22 : vector<256xf32> to vector<256x1xf32>
      %24 = vector.broadcast %23 : vector<256x1xf32> to vector<256x128xf32>
      %25 = arith.subf %21, %24 : vector<256x128xf32>
      %26 = math.exp %25 : vector<256x128xf32>
      %cst_17 = arith.constant dense<0.000000e+00> : vector<256xf32>
      %27 = vector.multi_reduction <add>, %26, %cst_17 [1] : vector<256x128xf32> to vector<256xf32>
      %28 = vector.shape_cast %27 : vector<256xf32> to vector<256x1xf32>
      %29 = math.log %28 : vector<256x1xf32>
      %30 = vector.broadcast %29 : vector<256x1xf32> to vector<256x128xf32>
      %31 = arith.subf %25, %30 : vector<256x128xf32>
      %cst_18 = arith.constant 0.000000e+00 : f32
      %32 = vector.broadcast %cst_18 : f32 to vector<256x128xf32>
      %33 = arith.select %19, %31, %32 : vector<256x128xi1>, vector<256x128xf32>
      %c0_19 = arith.constant 0 : index
      %c0_20 = arith.constant 0 : index
      %34 = vector.load %arg6[%c0_19, %c0_20] : memref<256x128xf32, #tpu.memory_space<vmem>>, vector<256x128xf32>
      tpu.vector_store %arg6[%c0_19, %c0_20], %33 {strides = array<i32>} : memref<256x128xf32, #tpu.memory_space<vmem>>, vector<256x128xf32>,
    } else {
    }
    return
  }
  func.func @transform_0(%arg0: i32, %arg1: i32) -> (i32, i32) {
    %c0_i32 = arith.constant 0 : i32
    return %arg0, %arg1 : i32, i32
  }
  func.func @transform_1(%arg0: i32, %arg1: i32) -> (i32, i32) {
    %c0_i32 = arith.constant 0 : i32
    %c0_i32_0 = arith.constant 0 : i32
    return %arg1, %c0_i32 : i32, i32
  }
  func.func @transform_2(%arg0: i32, %arg1: i32) -> (i32, i32) {
    %c0_i32 = arith.constant 0 : i32
    %c0_i32_0 = arith.constant 0 : i32
    %c0_i32_1 = arith.constant 0 : i32
    return %c0_i32, %c0_i32_0 : i32, i32
  }
  func.func @transform_3(%arg0: i32, %arg1: i32) -> (i32, i32) {
    %c0_i32 = arith.constant 0 : i32
    %c0_i32_0 = arith.constant 0 : i32
    return %arg0, %c0_i32 : i32, i32
  }
  func.func @transform_4(%arg0: i32, %arg1: i32) -> (i32, i32) {
    %c0_i32 = arith.constant 0 : i32
    %c0_i32_0 = arith.constant 0 : i32
    return %arg0, %c0_i32 : i32, i32
  }
}

</mosaic_0001>

<llo_original>
// kernel: gcn_forward.4
$region0: #{gcn_forward.4}
  #allocation0 [shape = 'u32[]', space=smem, size = 0x4, offset = 0x4, fixed_abs, tag = 'smem constant byte address 0x4 - core index']
  #allocation1 [shape = 'u32[144,128]{1,0:T(1,128)}', space=vmem, size = 0x12000, scoped, tag = 'internal scratch']
  %s0 = inlined_call_operand.vmem [shape: f32[512,128], index: 0, kind: input, shape index: {}]
  %s1 = inlined_call_operand.vmem [shape: f32[128,128], index: 1, kind: input, shape index: {}]
  %s2 = inlined_call_operand.vmem [shape: f32[512,128], index: 2, kind: output, shape index: {}]
  %s3 = sld [smem:[#allocation0]]
  $region41: #{gcn_forward.4} parent=0
    _
  %s5 = ssub.s32 1, %s3
  %s6 = scalar_select 0, %s5, %s3
  loop: start=0, step=1, limit=4
  $region2: #{gcn_forward.4} parent=0 // loop_pre_header
    _
  $region3: #{gcn_forward.4} parent=0 // loop_header
    %s8 = sphi 0, %s12
    %p9 = scmp.ge.s32.totalorder %s8, 4
    %s18 = sphi 0, %s20
    %s21 = sphi 0, %s18
    %s22 = sphi 0, %s21
    %s38 = sphi 0, %s22
    %s42 = sphi 0, %s42
    %s44 = sphi 0, %s42
    %s45 = sphi 0, %s44
    %s59 = sphi 0, %s45
    %s65 = sphi 0, %s67
    %s68 = sphi 0, %s65
    %s69 = sphi 0, %s68
    %s85 = sphi 0, %s69
  $region4: #{gcn_forward.4} parent=0 // loop_header_branch
    %11 = sbr.rel (%p9) target = $region8
  $region5: #{gcn_forward.4} parent=0 // loop_body
    %s13 = ssub.s32 %s8, 1
    %s14 = ssub.s32 %s8, 2
    %s15 = sadd.s32 %s8, 1
    %s16 = ssub.s32 %s8, %s15
    %p17 = scmp.eq.s32.totalorder %s16, 0
    %s19 = sadd.s32 %s18, 1
    %s20 = scalar_select %p17, %s18, %s19
    %p23 = pneg %p17
    %p24 = scmp.eq.s32.totalorder %s8, 1
    %p25 = por %p23, %p24
    %p26 = scmp.ne.s32.totalorder %s18, %s21
    %p27 = scmp.eq.s32.totalorder %s8, 0
    %p28 = por %p26, %p27
    %p29 = scmp.ne.s32.totalorder %s18, %s21
    %p30 = scmp.eq.s32.totalorder %s13, 1
    %p31 = por %p29, %p30
    %p32 = scmp.ne.s32.totalorder %s21, %s22
    %p33 = scmp.eq.s32.totalorder %s13, 0
    %p34 = por %p32, %p33
    %p35 = scmp.ne.s32.totalorder %s21, %s22
    %p36 = scmp.eq.s32.totalorder %s14, 1
    %p37 = por %p35, %p36
    %p39 = scmp.ne.s32.totalorder %s22, %s38
    %p40 = scmp.eq.s32.totalorder %s14, 0
    %p41 = por %p39, %p40
    %s43 = sadd.s32 %s42, 1
    %p46 = scmp.eq.s32.totalorder %s8, 1
    %p47 = scmp.ne.s32.totalorder %s42, %s44
    %p48 = scmp.eq.s32.totalorder %s8, 0
    %p49 = por %p47, %p48
    %p50 = scmp.ne.s32.totalorder %s42, %s44
    %p51 = scmp.eq.s32.totalorder %s13, 1
    %p52 = por %p50, %p51
    %p53 = scmp.ne.s32.totalorder %s44, %s45
    %p54 = scmp.eq.s32.totalorder %s13, 0
    %p55 = por %p53, %p54
    %p56 = scmp.ne.s32.totalorder %s44, %s45
    %p57 = scmp.eq.s32.totalorder %s14, 1
    %p58 = por %p56, %p57
    %p60 = scmp.ne.s32.totalorder %s45, %s59
    %p61 = scmp.eq.s32.totalorder %s14, 0
    %p62 = por %p60, %p61
    %s63 = ssub.s32 %s8, %s15
    %p64 = scmp.eq.s32.totalorder %s63, 0
    %s66 = sadd.s32 %s65, 1
    %s67 = scalar_select %p64, %s65, %s66
    %p70 = pneg %p64
    %p71 = scmp.eq.s32.totalorder %s8, 1
    %p72 = por %p70, %p71
    %p73 = scmp.ne.s32.totalorder %s65, %s68
    %p74 = scmp.eq.s32.totalorder %s8, 0
    %p75 = por %p73, %p74
    %p76 = scmp.ne.s32.totalorder %s65, %s68
    %p77 = scmp.eq.s32.totalorder %s13, 1
    %p78 = por %p76, %p77
    %p79 = scmp.ne.s32.totalorder %s68, %s69
    %p80 = scmp.eq.s32.totalorder %s13, 0
    %p81 = por %p79, %p80
    %p82 = scmp.ne.s32.totalorder %s68, %s69
    %p83 = scmp.eq.s32.totalorder %s14, 1
    %p84 = por %p82, %p83
    %p86 = scmp.ne.s32.totalorder %s69, %s85
    %p87 = scmp.eq.s32.totalorder %s14, 0
    %p88 = por %p86, %p87
    %p89 = scmp.le.s32.totalorder 1, %s8
    %p90 = scmp.lt.s32.totalorder %s8, 3
    %p91 = pnand %p89, %p90
    %p92 = pneg %p91
    // Predicated region
    $region9: #{gcn_forward.4} parent=5 // pred_check
      _
    $region10: #{gcn_forward.4} parent=5 // pred_check_branch
      %94 = sbr.rel (%p91) target = $region12
    $region11: #{gcn_forward.4} parent=5 // pred_region
      %s95 = ssub.s32 %s8, 1
      // Predicated region
      $region13: #{gcn_forward.4} parent=11 // pred_check
        %p96 = pneg %p55
      $region14: #{gcn_forward.4} parent=11 // pred_check_branch
        %98 = sbr.rel (%p96) target = $region16
      $region15: #{gcn_forward.4} parent=11 // pred_region
        _
      $region16: #{gcn_forward.4} parent=11 // pred_fallthru
        _
    $region12: #{gcn_forward.4} parent=5 // pred_fallthru
      _
    %p99 = scmp.lt.s32.totalorder %s8, 2
    // Predicated region
    $region17: #{gcn_forward.4} parent=5 // pred_check
      %p100 = pneg %p99
    $region18: #{gcn_forward.4} parent=5 // pred_check_branch
      %102 = sbr.rel (%p100) target = $region20
    $region19: #{gcn_forward.4} parent=5 // pred_region
      // Predicated region
      $region21: #{gcn_forward.4} parent=19 // pred_check
        %p103 = pneg %p28
      $region22: #{gcn_forward.4} parent=19 // pred_check_branch
        %105 = sbr.rel (%p103) target = $region24
      $region23: #{gcn_forward.4} parent=19 // pred_region
        %s106 = smul.u32 32, %s8
        %p107 = scmp.lt.s32.totalorder %s106, 63
        %s108 = scalar_select %p107, %s106, 63
        %s109 = smul.addr %s108, 8
        %s110 = scalar_lea.vmem %s0, %s109
        %s111 = smul.u32 32, %s8
      $region24: #{gcn_forward.4} parent=19 // pred_fallthru
        _
    $region20: #{gcn_forward.4} parent=5 // pred_fallthru
      _
    %p112 = scmp.le.s32.totalorder 1, %s8
    %p113 = scmp.lt.s32.totalorder %s8, 3
    %p114 = pnand %p112, %p113
    %p115 = pneg %p114
    // Predicated region
    $region25: #{gcn_forward.4} parent=5 // pred_check
      _
    $region26: #{gcn_forward.4} parent=5 // pred_check_branch
      %117 = sbr.rel (%p114) target = $region28
    $region27: #{gcn_forward.4} parent=5 // pred_region
      %s118 = ssub.s32 %s8, 1
      %s119 = smul.u32 32, %s13
      %p120 = scmp.lt.s32.totalorder %s119, 63
      %s121 = scalar_select %p120, %s119, 63
      %s122 = smul.addr %s121, 8
      %s123 = scalar_lea.vmem %s0, %s122
      %p124 = pneg %p34
      %p125 = pneg %p31
      %p126 = pneg %p55
      %p127 = pneg %p52
      %p128 = pneg %p81
      %p129 = pneg %p78
      %s130 = smul.u32 32, %s13
      %p131 = scmp.lt.s32.totalorder %s130, 63
      %s132 = scalar_select %p131, %s130, 63
      %s133 = smul.addr %s132, 8
      %s134 = scalar_lea.vmem %s2, %s133
      %s135 = smul.u32 32, %s13
      %p136 = scmp.lt.s32.totalorder %s135, 63
      %s137 = scalar_select %p136, %s135, 63
      %s138 = smul.addr %s137, 8
      %s139 = scalar_lea.vmem %s0, %s138
      %s140 = smul.u32 32, %s13
      %s141 = smul.u32 32, %s13
      %p142 = scmp.lt.s32.totalorder %s141, 63
      %s143 = scalar_select %p142, %s141, 63
      %s144 = smul.addr %s143, 8
      %s145 = scalar_lea.vmem %s2, %s144
      %s146 = smul.u32 32, %s13
      %v147 = vld [vmem:[%s139] sm:$0xff]
      %v148 = vld [vmem:[%s139 + $0x8] sm:$0xff]
      %v149 = vld [vmem:[%s139 + $0x10] sm:$0xff]
      %v150 = vld [vmem:[%s139 + $0x18] sm:$0xff]
      %v151 = vld [vmem:[%s139 + $0x20] sm:$0xff]
      %v152 = vld [vmem:[%s139 + $0x28] sm:$0xff]
      %v153 = vld [vmem:[%s139 + $0x30] sm:$0xff]
      %v154 = vld [vmem:[%s139 + $0x38] sm:$0xff]
      %v155 = vld [vmem:[%s139 + $0x40] sm:$0xff]
      %v156 = vld [vmem:[%s139 + $0x48] sm:$0xff]
      %v157 = vld [vmem:[%s139 + $0x50] sm:$0xff]
      %v158 = vld [vmem:[%s139 + $0x58] sm:$0xff]
      %v159 = vld [vmem:[%s139 + $0x60] sm:$0xff]
      %v160 = vld [vmem:[%s139 + $0x68] sm:$0xff]
      %v161 = vld [vmem:[%s139 + $0x70] sm:$0xff]
      %v162 = vld [vmem:[%s139 + $0x78] sm:$0xff]
      %v163 = vld [vmem:[%s139 + $0x80] sm:$0xff]
      %v164 = vld [vmem:[%s139 + $0x88] sm:$0xff]
      %v165 = vld [vmem:[%s139 + $0x90] sm:$0xff]
      %v166 = vld [vmem:[%s139 + $0x98] sm:$0xff]
      %v167 = vld [vmem:[%s139 + $0xa0] sm:$0xff]
      %v168 = vld [vmem:[%s139 + $0xa8] sm:$0xff]
      %v169 = vld [vmem:[%s139 + $0xb0] sm:$0xff]
      %v170 = vld [vmem:[%s139 + $0xb8] sm:$0xff]
      %v171 = vld [vmem:[%s139 + $0xc0] sm:$0xff]
      %v172 = vld [vmem:[%s139 + $0xc8] sm:$0xff]
      %v173 = vld [vmem:[%s139 + $0xd0] sm:$0xff]
      %v174 = vld [vmem:[%s139 + $0xd8] sm:$0xff]
      %v175 = vld [vmem:[%s139 + $0xe0] sm:$0xff]
      %v176 = vld [vmem:[%s139 + $0xe8] sm:$0xff]
      %v177 = vld [vmem:[%s139 + $0xf0] sm:$0xff]
      %v178 = vld [vmem:[%s139 + $0xf8] sm:$0xff]
      %v179 = vld [vmem:[%s1] sm:$0xff]
      %v180 = vld [vmem:[%s1 + $0x8] sm:$0xff]
      %v181 = vld [vmem:[%s1 + $0x10] sm:$0xff]
      %v182 = vld [vmem:[%s1 + $0x18] sm:$0xff]
      %v183 = vld [vmem:[%s1 + $0x20] sm:$0xff]
      %v184 = vld [vmem:[%s1 + $0x28] sm:$0xff]
      %v185 = vld [vmem:[%s1 + $0x30] sm:$0xff]
      %v186 = vld [vmem:[%s1 + $0x38] sm:$0xff]
      %v187 = vld [vmem:[%s1 + $0x40] sm:$0xff]
      %v188 = vld [vmem:[%s1 + $0x48] sm:$0xff]
      %v189 = vld [vmem:[%s1 + $0x50] sm:$0xff]
      %v190 = vld [vmem:[%s1 + $0x58] sm:$0xff]
      %v191 = vld [vmem:[%s1 + $0x60] sm:$0xff]
      %v192 = vld [vmem:[%s1 + $0x68] sm:$0xff]
      %v193 = vld [vmem:[%s1 + $0x70] sm:$0xff]
      %v194 = vld [vmem:[%s1 + $0x78] sm:$0xff]
      %195 = vmatprep.subr.mxu0 0.0
      %196 = vmatpush1.msra.mxu0 %v179
      %197 = vmatprep.subr.mxu0 0.0
      %198 = vmatpush1.msra.mxu0 %v180
      %199 = vmatprep.subr.mxu0 0.0
      %200 = vmatpush1.msra.mxu0 %v181
      %201 = vmatprep.subr.mxu0 0.0
      %202 = vmatpush1.msra.mxu0 %v182
      %203 = vmatprep.subr.mxu0 0.0
      %204 = vmatpush1.msra.mxu0 %v183
      %205 = vmatprep.subr.mxu0 0.0
      %206 = vmatpush1.msra.mxu0 %v184
      %207 = vmatprep.subr.mxu0 0.0
      %208 = vmatpush1.msra.mxu0 %v185
      %209 = vmatprep.subr.mxu0 0.0
      %210 = vmatpush1.msra.mxu0 %v186
      %211 = vmatprep.subr.mxu0 0.0
      %212 = vmatpush1.msra.mxu0 %v187
      %213 = vmatprep.subr.mxu0 0.0
      %214 = vmatpush1.msra.mxu0 %v188
      %215 = vmatprep.subr.mxu0 0.0
      %216 = vmatpush1.msra.mxu0 %v189
      %217 = vmatprep.subr.mxu0 0.0
      %218 = vmatpush1.msra.mxu0 %v190
      %219 = vmatprep.subr.mxu0 0.0
      %220 = vmatpush1.msra.mxu0 %v191
      %221 = vmatprep.subr.mxu0 0.0
      %222 = vmatpush1.msra.mxu0 %v192
      %223 = vmatprep.subr.mxu0 0.0
      %224 = vmatpush1.msra.mxu0 %v193
      %225 = vmatprep.subr.mxu0 0.0
      %226 = vmatpush1.msra.mxu0 %v194
      %227 = vmatprep.subr.mxu0 0.0
      %228 = vmatpush1.msra.mxu0 0.0
      %229 = vmatprep.subr.mxu0 0.0
      %230 = vmatpush1.msra.mxu0 0.0
      %231 = vmatprep.subr.mxu0 0.0
      %232 = vmatpush1.msra.mxu0 0.0
      %233 = vmatprep.subr.mxu0 0.0
      %234 = vmatpush1.msra.mxu0 0.0
      %235 = vmatprep.subr.mxu0 0.0
      %236 = vmatpush1.msra.mxu0 0.0
      %237 = vmatprep.subr.mxu0 0.0
      %238 = vmatpush1.msra.mxu0 0.0
      %239 = vmatprep.subr.mxu0 0.0
      %240 = vmatpush1.msra.mxu0 0.0
      %241 = vmatprep.subr.mxu0 0.0
      %242 = vmatpush1.msra.mxu0 0.0
      %243 = vmatprep.subr.mxu0 0.0
      %244 = vmatpush1.msra.mxu0 0.0
      %245 = vmatprep.subr.mxu0 0.0
      %246 = vmatpush1.msra.mxu0 0.0
      %247 = vmatprep.subr.mxu0 0.0
      %248 = vmatpush1.msra.mxu0 0.0
      %249 = vmatprep.subr.mxu0 0.0
      %250 = vmatpush1.msra.mxu0 0.0
      %251 = vmatprep.subr.mxu0 0.0
      %252 = vmatpush1.msra.mxu0 0.0
      %253 = vmatprep.subr.mxu0 0.0
      %254 = vmatpush1.msra.mxu0 0.0
      %255 = vmatprep.subr.mxu0 0.0
      %256 = vmatpush1.msra.mxu0 0.0
      %257 = vmatprep.subr.mxu0 0.0
      %258 = vmatpush1.msra.mxu0 0.0
      %259 = vmatprep.mubr.f32.mxu0 0.0
      %260 = vmatmul.mubr.f32.gmra.mrb[0].mxu0 %v147
      %v261 = vpop.f32.mrb[0].mxu0
      %v262 = vadd.f32 0.0, %v261
      %v263 = vpop.f32.mrb[0].mxu0
      %264 = vmatprep.mubr.f32.mxu0 0.0
      %265 = vmatmul.mubr.f32.gmra.mrb[0].mxu0 %v148
      %v266 = vpop.f32.mrb[0].mxu0
      %v267 = vadd.f32 0.0, %v266
      %v268 = vpop.f32.mrb[0].mxu0
      %269 = vmatprep.mubr.f32.mxu0 0.0
      %270 = vmatmul.mubr.f32.gmra.mrb[0].mxu0 %v149
      %v271 = vpop.f32.mrb[0].mxu0
      %v272 = vadd.f32 0.0, %v271
      %v273 = vpop.f32.mrb[0].mxu0
      %274 = vmatprep.mubr.f32.mxu0 0.0
      %275 = vmatmul.mubr.f32.gmra.mrb[0].mxu0 %v150
      %v276 = vpop.f32.mrb[0].mxu0
      %v277 = vadd.f32 0.0, %v276
      %v278 = vpop.f32.mrb[0].mxu0
      %279 = vmatprep.mubr.f32.mxu0 0.0
      %280 = vmatmul.mubr.f32.gmra.mrb[0].mxu0 %v151
      %v281 = vpop.f32.mrb[0].mxu0
      %v282 = vadd.f32 0.0, %v281
      %v283 = vpop.f32.mrb[0].mxu0
      %284 = vmatprep.mubr.f32.mxu0 0.0
      %285 = vmatmul.mubr.f32.gmra.mrb[0].mxu0 %v152
      %v286 = vpop.f32.mrb[0].mxu0
      %v287 = vadd.f32 0.0, %v286
      %v288 = vpop.f32.mrb[0].mxu0
      %289 = vmatprep.mubr.f32.mxu0 0.0
      %290 = vmatmul.mubr.f32.gmra.mrb[0].mxu0 %v153
      %v291 = vpop.f32.mrb[0].mxu0
      %v292 = vadd.f32 0.0, %v291
      %v293 = vpop.f32.mrb[0].mxu0
      %294 = vmatprep.mubr.f32.mxu0 0.0
      %295 = vmatmul.mubr.f32.gmra.mrb[0].mxu0 %v154
      %v296 = vpop.f32.mrb[0].mxu0
      %v297 = vadd.f32 0.0, %v296
      %v298 = vpop.f32.mrb[0].mxu0
      %299 = vmatprep.mubr.f32.mxu0 0.0
      %300 = vmatmul.mubr.f32.gmra.mrb[0].mxu0 %v155
      %v301 = vpop.f32.mrb[0].mxu0
      %v302 = vadd.f32 0.0, %v301
      %v303 = vpop.f32.mrb[0].mxu0
      %304 = vmatprep.mubr.f32.mxu0 0.0
      %305 = vmatmul.mubr.f32.gmra.mrb[0].mxu0 %v156
      %v306 = vpop.f32.mrb[0].mxu0
      %v307 = vadd.f32 0.0, %v306
      %v308 = vpop.f32.mrb[0].mxu0
      %309 = vmatprep.mubr.f32.mxu0 0.0
      %310 = vmatmul.mubr.f32.gmra.mrb[0].mxu0 %v157
      %v311 = vpop.f32.mrb[0].mxu0
      %v312 = vadd.f32 0.0, %v311
      %v313 = vpop.f32.mrb[0].mxu0
      %314 = vmatprep.mubr.f32.mxu0 0.0
      %315 = vmatmul.mubr.f32.gmra.mrb[0].mxu0 %v158
      %v316 = vpop.f32.mrb[0].mxu0
      %v317 = vadd.f32 0.0, %v316
      %v318 = vpop.f32.mrb[0].mxu0
      %319 = vmatprep.mubr.f32.mxu0 0.0
      %320 = vmatmul.mubr.f32.gmra.mrb[0].mxu0 %v159
      %v321 = vpop.f32.mrb[0].mxu0
      %v322 = vadd.f32 0.0, %v321
      %v323 = vpop.f32.mrb[0].mxu0
      %324 = vmatprep.mubr.f32.mxu0 0.0
      %325 = vmatmul.mubr.f32.gmra.mrb[0].mxu0 %v160
      %v326 = vpop.f32.mrb[0].mxu0
      %v327 = vadd.f32 0.0, %v326
      %v328 = vpop.f32.mrb[0].mxu0
      %329 = vmatprep.mubr.f32.mxu0 0.0
      %330 = vmatmul.mubr.f32.gmra.mrb[0].mxu0 %v161
      %v331 = vpop.f32.mrb[0].mxu0
      %v332 = vadd.f32 0.0, %v331
      %v333 = vpop.f32.mrb[0].mxu0
      %334 = vmatprep.mubr.f32.mxu0 0.0
      %335 = vmatmul.mubr.f32.gmra.mrb[0].mxu0 %v162
      %v336 = vpop.f32.mrb[0].mxu0
      %v337 = vadd.f32 0.0, %v336
      %v338 = vpop.f32.mrb[0].mxu0
      %339 = vmatprep.mubr.f32.mxu0 0.0
      %340 = vmatmul.mubr.f32.gmra.mrb[0].mxu0 %v163
      %v341 = vpop.f32.mrb[0].mxu0
      %v342 = vadd.f32 0.0, %v341
      %v343 = vpop.f32.mrb[0].mxu0
      %344 = vmatprep.mubr.f32.mxu0 0.0
      %345 = vmatmul.mubr.f32.gmra.mrb[0].mxu0 %v164
      %v346 = vpop.f32.mrb[0].mxu0
      %v347 = vadd.f32 0.0, %v346
      %v348 = vpop.f32.mrb[0].mxu0
      %349 = vmatprep.mubr.f32.mxu0 0.0
      %350 = vmatmul.mubr.f32.gmra.mrb[0].mxu0 %v165
      %v351 = vpop.f32.mrb[0].mxu0
      %v352 = vadd.f32 0.0, %v351
      %v353 = vpop.f32.mrb[0].mxu0
      %354 = vmatprep.mubr.f32.mxu0 0.0
      %355 = vmatmul.mubr.f32.gmra.mrb[0].mxu0 %v166
      %v356 = vpop.f32.mrb[0].mxu0
      %v357 = vadd.f32 0.0, %v356
      %v358 = vpop.f32.mrb[0].mxu0
      %359 = vmatprep.mubr.f32.mxu0 0.0
      %360 = vmatmul.mubr.f32.gmra.mrb[0].mxu0 %v167
      %v361 = vpop.f32.mrb[0].mxu0
      %v362 = vadd.f32 0.0, %v361
      %v363 = vpop.f32.mrb[0].mxu0
      %364 = vmatprep.mubr.f32.mxu0 0.0
      %365 = vmatmul.mubr.f32.gmra.mrb[0].mxu0 %v168
      %v366 = vpop.f32.mrb[0].mxu0
      %v367 = vadd.f32 0.0, %v366
      %v368 = vpop.f32.mrb[0].mxu0
      %369 = vmatprep.mubr.f32.mxu0 0.0
      %370 = vmatmul.mubr.f32.gmra.mrb[0].mxu0 %v169
      %v371 = vpop.f32.mrb[0].mxu0
      %v372 = vadd.f32 0.0, %v371
      %v373 = vpop.f32.mrb[0].mxu0
      %374 = vmatprep.mubr.f32.mxu0 0.0
      %375 = vmatmul.mubr.f32.gmra.mrb[0].mxu0 %v170
      %v376 = vpop.f32.mrb[0].mxu0
      %v377 = vadd.f32 0.0, %v376
      %v378 = vpop.f32.mrb[0].mxu0
      %379 = vmatprep.mubr.f32.mxu0 0.0
      %380 = vmatmul.mubr.f32.gmra.mrb[0].mxu0 %v171
      %v381 = vpop.f32.mrb[0].mxu0
      %v382 = vadd.f32 0.0, %v381
      %v383 = vpop.f32.mrb[0].mxu0
      %384 = vmatprep.mubr.f32.mxu0 0.0
      %385 = vmatmul.mubr.f32.gmra.mrb[0].mxu0 %v172
      %v386 = vpop.f32.mrb[0].mxu0
      %v387 = vadd.f32 0.0, %v386
      %v388 = vpop.f32.mrb[0].mxu0
      %389 = vmatprep.mubr.f32.mxu0 0.0
      %390 = vmatmul.mubr.f32.gmra.mrb[0].mxu0 %v173
      %v391 = vpop.f32.mrb[0].mxu0
      %v392 = vadd.f32 0.0, %v391
      %v393 = vpop.f32.mrb[0].mxu0
      %394 = vmatprep.mubr.f32.mxu0 0.0
      %395 = vmatmul.mubr.f32.gmra.mrb[0].mxu0 %v174
      %v396 = vpop.f32.mrb[0].mxu0
      %v397 = vadd.f32 0.0, %v396
      %v398 = vpop.f32.mrb[0].mxu0
      %399 = vmatprep.mubr.f32.mxu0 0.0
      %400 = vmatmul.mubr.f32.gmra.mrb[0].mxu0 %v175
      %v401 = vpop.f32.mrb[0].mxu0
      %v402 = vadd.f32 0.0, %v401
      %v403 = vpop.f32.mrb[0].mxu0
      %404 = vmatprep.mubr.f32.mxu0 0.0
      %405 = vmatmul.mubr.f32.gmra.mrb[0].mxu0 %v176
      %v406 = vpop.f32.mrb[0].mxu0
      %v407 = vadd.f32 0.0, %v406
      %v408 = vpop.f32.mrb[0].mxu0
      %409 = vmatprep.mubr.f32.mxu0 0.0
      %410 = vmatmul.mubr.f32.gmra.mrb[0].mxu0 %v177
      %v411 = vpop.f32.mrb[0].mxu0
      %v412 = vadd.f32 0.0, %v411
      %v413 = vpop.f32.mrb[0].mxu0
      %414 = vmatprep.mubr.f32.mxu0 0.0
      %415 = vmatmul.mubr.f32.gmra.mrb[0].mxu0 %v178
      %v416 = vpop.f32.mrb[0].mxu0
      %v417 = vadd.f32 0.0, %v416
      %v418 = vpop.f32.mrb[0].mxu0
      %419 = vdwg.mxu0
      %420 = vst [vmem:[%s145] sm:$0xff] %v262
      %421 = vst [vmem:[%s145 + $0x8] sm:$0xff] %v267
      %422 = vst [vmem:[%s145 + $0x10] sm:$0xff] %v272
      %423 = vst [vmem:[%s145 + $0x18] sm:$0xff] %v277
      %424 = vst [vmem:[%s145 + $0x20] sm:$0xff] %v282
      %425 = vst [vmem:[%s145 + $0x28] sm:$0xff] %v287
      %426 = vst [vmem:[%s145 + $0x30] sm:$0xff] %v292
      %427 = vst [vmem:[%s145 + $0x38] sm:$0xff] %v297
      %428 = vst [vmem:[%s145 + $0x40] sm:$0xff] %v302
      %429 = vst [vmem:[%s145 + $0x48] sm:$0xff] %v307
      %430 = vst [vmem:[%s145 + $0x50] sm:$0xff] %v312
      %431 = vst [vmem:[%s145 + $0x58] sm:$0xff] %v317
      %432 = vst [vmem:[%s145 + $0x60] sm:$0xff] %v322
      %433 = vst [vmem:[%s145 + $0x68] sm:$0xff] %v327
      %434 = vst [vmem:[%s145 + $0x70] sm:$0xff] %v332
      %435 = vst [vmem:[%s145 + $0x78] sm:$0xff] %v337
      %436 = vst [vmem:[%s145 + $0x80] sm:$0xff] %v342
      %437 = vst [vmem:[%s145 + $0x88] sm:$0xff] %v347
      %438 = vst [vmem:[%s145 + $0x90] sm:$0xff] %v352
      %439 = vst [vmem:[%s145 + $0x98] sm:$0xff] %v357
      %440 = vst [vmem:[%s145 + $0xa0] sm:$0xff] %v362
      %441 = vst [vmem:[%s145 + $0xa8] sm:$0xff] %v367
      %442 = vst [vmem:[%s145 + $0xb0] sm:$0xff] %v372
      %443 = vst [vmem:[%s145 + $0xb8] sm:$0xff] %v377
      %444 = vst [vmem:[%s145 + $0xc0] sm:$0xff] %v382
      %445 = vst [vmem:[%s145 + $0xc8] sm:$0xff] %v387
      %446 = vst [vmem:[%s145 + $0xd0] sm:$0xff] %v392
      %447 = vst [vmem:[%s145 + $0xd8] sm:$0xff] %v397
      %448 = vst [vmem:[%s145 + $0xe0] sm:$0xff] %v402
      %449 = vst [vmem:[%s145 + $0xe8] sm:$0xff] %v407
      %450 = vst [vmem:[%s145 + $0xf0] sm:$0xff] %v412
      %451 = vst [vmem:[%s145 + $0xf8] sm:$0xff] %v417
      %s452 = smul.u32 32, %s13
      %p453 = scmp.lt.s32.totalorder %s452, 63
      %s454 = scalar_select %p453, %s452, 63
      %s455 = smul.addr %s454, 8
      %s456 = scalar_lea.vmem %s2, %s455
      // Predicated region
      $region29: #{gcn_forward.4} parent=27 // pred_check
        %p457 = pneg %p78
      $region30: #{gcn_forward.4} parent=27 // pred_check_branch
        %459 = sbr.rel (%p457) target = $region32
      $region31: #{gcn_forward.4} parent=27 // pred_region
        %s460 = smul.u32 32, %s13
      $region32: #{gcn_forward.4} parent=27 // pred_fallthru
        _
    $region28: #{gcn_forward.4} parent=5 // pred_fallthru
      _
    %p461 = scmp.le.s32.totalorder 2, %s8
    // Predicated region
    $region33: #{gcn_forward.4} parent=5 // pred_check
      %p462 = pneg %p461
    $region34: #{gcn_forward.4} parent=5 // pred_check_branch
      %464 = sbr.rel (%p462) target = $region36
    $region35: #{gcn_forward.4} parent=5 // pred_region
      %s465 = ssub.s32 %s8, 2
      // Predicated region
      $region37: #{gcn_forward.4} parent=35 // pred_check
        %p466 = pneg %p84
      $region38: #{gcn_forward.4} parent=35 // pred_check_branch
        %468 = sbr.rel (%p466) target = $region40
      $region39: #{gcn_forward.4} parent=35 // pred_region
        %s469 = smul.u32 32, %s14
        %p470 = scmp.lt.s32.totalorder %s469, 63
        %s471 = scalar_select %p470, %s469, 63
        %s472 = smul.addr %s471, 8
        %s473 = scalar_lea.vmem %s2, %s472
      $region40: #{gcn_forward.4} parent=35 // pred_fallthru
        _
    $region36: #{gcn_forward.4} parent=5 // pred_fallthru
      _
  $region6: #{gcn_forward.4} parent=0 // loop_footer
    %s12 = sadd.s32 1, %s8
  $region7: #{gcn_forward.4} parent=0 // loop_footer_branch
    %7 = sbr.rel target = $region3
  $region8: #{gcn_forward.4} parent=0 // loop_exit
    _

// kernel: gcn_forward.5
$region0: #{gcn_forward.5}
  #allocation0 [shape = 'u32[]', space=smem, size = 0x4, offset = 0x4, fixed_abs, tag = 'smem constant byte address 0x4 - core index']
  #allocation1 [shape = 'u32[144,128]{1,0:T(1,128)}', space=vmem, size = 0x12000, scoped, tag = 'internal scratch']
  #allocation2 [shape = 'f32[256,128]{1,0:T(8,128)}', space=vmem, size = 0x20000, scoped, tag = 'scratch operand']
  %s0 = inlined_call_operand.vmem [shape: f32[512,512], index: 0, kind: input, shape index: {}]
  %s1 = inlined_call_operand.vmem [shape: f32[512,128], index: 1, kind: input, shape index: {}]
  %s2 = inlined_call_operand.vmem [shape: f32[1,128], index: 2, kind: input, shape index: {}]
  %s3 = inlined_call_operand.vmem [shape: f32[512,128], index: 3, kind: output, shape index: {0}]
  %s4 = inlined_call_operand.vmem [shape: f32[512,128], index: 4, kind: output, shape index: {1}]
  %5 = xla_tuple %s3, %s4
  %s6 = sld [smem:[#allocation0]]
  $region84: #{gcn_forward.5} parent=0
    _
  %s8 = ssub.s32 1, %s6
  %s9 = scalar_select 0, %s8, %s6
  $region1: #{gcn_forward.5} parent=0
    #allocation3 [shape = 'u8[524288]{0}', space=vmem, size = 0x80000, scoped, tag = 'input window, operand 0']
    loop: start=0, step=1, limit=6
    $region2: #{gcn_forward.5} parent=1 // loop_pre_header
      _
    $region3: #{gcn_forward.5} parent=1 // loop_header
      %s11 = sphi 0, %s15
      %p12 = scmp.ge.s32.totalorder %s11, 6
      %s18 = sphi 0, %s30
      %s19 = sphi 0, %s26
      %s20 = sphi 0, %s18
      %s21 = sphi 0, %s19
      %s22 = sphi 0, %s20
      %s23 = sphi 0, %s21
      %s35 = sphi 0, %s37
      %s38 = sphi 0, %s35
      %s39 = sphi 0, %s38
      %s55 = sphi 0, %s39
      %s61 = sphi 0, %s63
      %s64 = sphi 0, %s61
      %s65 = sphi 0, %s64
      %s81 = sphi 0, %s65
      %s85 = sphi 0, %s85
      %s87 = sphi 0, %s85
      %s88 = sphi 0, %s87
      %s102 = sphi 0, %s88
      %s108 = sphi 0, %s110
      %s111 = sphi 0, %s108
      %s112 = sphi 0, %s111
      %s128 = sphi 0, %s112
      %s134 = sphi 0, %s136
      %s137 = sphi 0, %s134
      %s138 = sphi 0, %s137
      %s154 = sphi 0, %s138
    $region4: #{gcn_forward.5} parent=1 // loop_header_branch
      %14 = sbr.rel (%p12) target = $region8
    $region5: #{gcn_forward.5} parent=1 // loop_body
      %s16 = ssub.s32 %s11, 1
      %s17 = ssub.s32 %s11, 2
      %s24 = sadd.s32 1, %s19
      %p25 = scmp.ge.s32.totalorder %s24, 2
      %s26 = scalar_select %p25, 0, %s24
      %s27 = sadd.s32 1, %s18
      %s28 = scalar_select %p25, %s27, %s18
      %p29 = scmp.ge.s32.totalorder %s28, 2
      %s30 = scalar_select %p29, 0, %s28
      %s31 = ssub.s32 %s18, %s30
      %s32 = ssub.s32 %s19, %s26
      %s33 = sor.u32 %s31, %s32
      %p34 = scmp.eq.s32.totalorder %s33, 0
      %s36 = sadd.s32 %s35, 1
      %s37 = scalar_select %p34, %s35, %s36
      %p40 = pneg %p34
      %p41 = scmp.eq.s32.totalorder %s11, 3
      %p42 = por %p40, %p41
      %p43 = scmp.ne.s32.totalorder %s35, %s38
      %p44 = scmp.eq.s32.totalorder %s11, 0
      %p45 = por %p43, %p44
      %p46 = scmp.ne.s32.totalorder %s35, %s38
      %p47 = scmp.eq.s32.totalorder %s16, 3
      %p48 = por %p46, %p47
      %p49 = scmp.ne.s32.totalorder %s38, %s39
      %p50 = scmp.eq.s32.totalorder %s16, 0
      %p51 = por %p49, %p50
      %p52 = scmp.ne.s32.totalorder %s38, %s39
      %p53 = scmp.eq.s32.totalorder %s17, 3
      %p54 = por %p52, %p53
      %p56 = scmp.ne.s32.totalorder %s39, %s55
      %p57 = scmp.eq.s32.totalorder %s17, 0
      %p58 = por %p56, %p57
      %s59 = ssub.s32 %s19, %s26
      %p60 = scmp.eq.s32.totalorder %s59, 0
      %s62 = sadd.s32 %s61, 1
      %s63 = scalar_select %p60, %s61, %s62
      %p66 = pneg %p60
      %p67 = scmp.eq.s32.totalorder %s11, 3
      %p68 = por %p66, %p67
      %p69 = scmp.ne.s32.totalorder %s61, %s64
      %p70 = scmp.eq.s32.totalorder %s11, 0
      %p71 = por %p69, %p70
      %p72 = scmp.ne.s32.totalorder %s61, %s64
      %p73 = scmp.eq.s32.totalorder %s16, 3
      %p74 = por %p72, %p73
      %p75 = scmp.ne.s32.totalorder %s64, %s65
      %p76 = scmp.eq.s32.totalorder %s16, 0
      %p77 = por %p75, %p76
      %p78 = scmp.ne.s32.totalorder %s64, %s65
      %p79 = scmp.eq.s32.totalorder %s17, 3
      %p80 = por %p78, %p79
      %p82 = scmp.ne.s32.totalorder %s65, %s81
      %p83 = scmp.eq.s32.totalorder %s17, 0
      %p84 = por %p82, %p83
      %s86 = sadd.s32 %s85, 1
      %p89 = scmp.eq.s32.totalorder %s11, 3
      %p90 = scmp.ne.s32.totalorder %s85, %s87
      %p91 = scmp.eq.s32.totalorder %s11, 0
      %p92 = por %p90, %p91
      %p93 = scmp.ne.s32.totalorder %s85, %s87
      %p94 = scmp.eq.s32.totalorder %s16, 3
      %p95 = por %p93, %p94
      %p96 = scmp.ne.s32.totalorder %s87, %s88
      %p97 = scmp.eq.s32.totalorder %s16, 0
      %p98 = por %p96, %p97
      %p99 = scmp.ne.s32.totalorder %s87, %s88
      %p100 = scmp.eq.s32.totalorder %s17, 3
      %p101 = por %p99, %p100
      %p103 = scmp.ne.s32.totalorder %s88, %s102
      %p104 = scmp.eq.s32.totalorder %s17, 0
      %p105 = por %p103, %p104
      %s106 = ssub.s32 %s18, %s30
      %p107 = scmp.eq.s32.totalorder %s106, 0
      %s109 = sadd.s32 %s108, 1
      %s110 = scalar_select %p107, %s108, %s109
      %p113 = pneg %p107
      %p114 = scmp.eq.s32.totalorder %s11, 3
      %p115 = por %p113, %p114
      %p116 = scmp.ne.s32.totalorder %s108, %s111
      %p117 = scmp.eq.s32.totalorder %s11, 0
      %p118 = por %p116, %p117
      %p119 = scmp.ne.s32.totalorder %s108, %s111
      %p120 = scmp.eq.s32.totalorder %s16, 3
      %p121 = por %p119, %p120
      %p122 = scmp.ne.s32.totalorder %s111, %s112
      %p123 = scmp.eq.s32.totalorder %s16, 0
      %p124 = por %p122, %p123
      %p125 = scmp.ne.s32.totalorder %s111, %s112
      %p126 = scmp.eq.s32.totalorder %s17, 3
      %p127 = por %p125, %p126
      %p129 = scmp.ne.s32.totalorder %s112, %s128
      %p130 = scmp.eq.s32.totalorder %s17, 0
      %p131 = por %p129, %p130
      %s132 = ssub.s32 %s18, %s30
      %p133 = scmp.eq.s32.totalorder %s132, 0
      %s135 = sadd.s32 %s134, 1
      %s136 = scalar_select %p133, %s134, %s135
      %p139 = pneg %p133
      %p140 = scmp.eq.s32.totalorder %s11, 3
      %p141 = por %p139, %p140
      %p142 = scmp.ne.s32.totalorder %s134, %s137
      %p143 = scmp.eq.s32.totalorder %s11, 0
      %p144 = por %p142, %p143
      %p145 = scmp.ne.s32.totalorder %s134, %s137
      %p146 = scmp.eq.s32.totalorder %s16, 3
      %p147 = por %p145, %p146
      %p148 = scmp.ne.s32.totalorder %s137, %s138
      %p149 = scmp.eq.s32.totalorder %s16, 0
      %p150 = por %p148, %p149
      %p151 = scmp.ne.s32.totalorder %s137, %s138
      %p152 = scmp.eq.s32.totalorder %s17, 3
      %p153 = por %p151, %p152
      %p155 = scmp.ne.s32.totalorder %s138, %s154
      %p156 = scmp.eq.s32.totalorder %s17, 0
      %p157 = por %p155, %p156
      %p158 = scmp.le.s32.totalorder 1, %s11
      %p159 = scmp.lt.s32.totalorder %s11, 5
      %p160 = pnand %p158, %p159
      %p161 = pneg %p160
      // Predicated region
      $region9: #{gcn_forward.5} parent=5 // pred_check
        _
      $region10: #{gcn_forward.5} parent=5 // pred_check_branch
        %163 = sbr.rel (%p160) target = $region12
      $region11: #{gcn_forward.5} parent=5 // pred_region
        %s164 = ssub.s32 %s11, 1
        // Predicated region
        $region13: #{gcn_forward.5} parent=11 // pred_check
          %p165 = pneg %p98
        $region14: #{gcn_forward.5} parent=11 // pred_check_branch
          %167 = sbr.rel (%p165) target = $region16
        $region15: #{gcn_forward.5} parent=11 // pred_region
          _
        $region16: #{gcn_forward.5} parent=11 // pred_fallthru
          _
      $region12: #{gcn_forward.5} parent=5 // pred_fallthru
        _
      %p168 = scmp.lt.s32.totalorder %s11, 4
      // Predicated region
      $region17: #{gcn_forward.5} parent=5 // pred_check
        %p169 = pneg %p168
      $region18: #{gcn_forward.5} parent=5 // pred_check_branch
        %171 = sbr.rel (%p169) target = $region20
      $region19: #{gcn_forward.5} parent=5 // pred_region
        // Predicated region
        $region21: #{gcn_forward.5} parent=19 // pred_check
          %p172 = pneg %p45
        $region22: #{gcn_forward.5} parent=19 // pred_check_branch
          %174 = sbr.rel (%p172) target = $region24
        $region23: #{gcn_forward.5} parent=19 // pred_region
          %s175 = sand.u32 %s35, 1
          %s176 = sand.u32 %s35, 1
          %s177 = smul.addr %s176, 512
          %s178 = scalar_lea.vmem [#allocation3], %s177
          %s179 = smul.u32 32, %s18
          %s180 = smul.u32 2, %s19
          %s181 = smul.addr %s179, 4
          %s182 = sadd.s32 %s180, %s181
          %s183 = smul.addr %s182, 8
          %s184 = scalar_lea.vmem %s0, %s183
          // Predicated region
          $region25: #{gcn_forward.5} parent=23 // pred_check
            _
          $region26: #{gcn_forward.5} parent=23 // pred_check_branch
            %186 = sbr.rel (0) target = $region28
          $region27: #{gcn_forward.5} parent=23 // pred_region
            // Predicated region
            $region29: #{gcn_forward.5} parent=27 // pred_check
              _
            $region30: #{gcn_forward.5} parent=27 // pred_check_branch
              %188 = sbr.rel (0) target = $region32
            $region31: #{gcn_forward.5} parent=27 // pred_region
              loop: start=0, step=1, limit=1
              $region33: #{gcn_forward.5} parent=31 // loop_pre_header
                _
              $region34: #{gcn_forward.5} parent=31 // loop_header
                %s190 = sphi 0, %s194
                %p191 = scmp.ge.s32.totalorder %s190, 1
                %s195 = sphi %s184, %s184
                %s196 = sphi %s178, %s178
              $region35: #{gcn_forward.5} parent=31 // loop_header_branch
                %193 = sbr.rel (%p191) target = $region39
              $region36: #{gcn_forward.5} parent=31 // loop_body
                %v197 = vld [vmem:[%s195] sm:$0xff]
                %198 = vst [vmem:[%s196] sm:$0xff] %v197
                %v199 = vld [vmem:[%s195 + $0x8] sm:$0xff]
                %200 = vst [vmem:[%s196 + $0x8] sm:$0xff] %v199
                %v201 = vld [vmem:[%s195 + $0x20] sm:$0xff]
                %202 = vst [vmem:[%s196 + $0x10] sm:$0xff] %v201
                %v203 = vld [vmem:[%s195 + $0x28] sm:$0xff]
                %204 = vst [vmem:[%s196 + $0x18] sm:$0xff] %v203
                %v205 = vld [vmem:[%s195 + $0x40] sm:$0xff]
                %206 = vst [vmem:[%s196 + $0x20] sm:$0xff] %v205
                %v207 = vld [vmem:[%s195 + $0x48] sm:$0xff]
                %208 = vst [vmem:[%s196 + $0x28] sm:$0xff] %v207
                %v209 = vld [vmem:[%s195 + $0x60] sm:$0xff]
                %210 = vst [vmem:[%s196 + $0x30] sm:$0xff] %v209
                %v211 = vld [vmem:[%s195 + $0x68] sm:$0xff]
                %212 = vst [vmem:[%s196 + $0x38] sm:$0xff] %v211
                %v213 = vld [vmem:[%s195 + $0x80] sm:$0xff]
                %214 = vst [vmem:[%s196 + $0x40] sm:$0xff] %v213
                %v215 = vld [vmem:[%s195 + $0x88] sm:$0xff]
                %216 = vst [vmem:[%s196 + $0x48] sm:$0xff] %v215
                %v217 = vld [vmem:[%s195 + $0xa0] sm:$0xff]
                %218 = vst [vmem:[%s196 + $0x50] sm:$0xff] %v217
                %v219 = vld [vmem:[%s195 + $0xa8] sm:$0xff]
                %220 = vst [vmem:[%s196 + $0x58] sm:$0xff] %v219
                %v221 = vld [vmem:[%s195 + $0xc0] sm:$0xff]
                %222 = vst [vmem:[%s196 + $0x60] sm:$0xff] %v221
                %v223 = vld [vmem:[%s195 + $0xc8] sm:$0xff]
                %224 = vst [vmem:[%s196 + $0x68] sm:$0xff] %v223
                %v225 = vld [vmem:[%s195 + $0xe0] sm:$0xff]
                %226 = vst [vmem:[%s196 + $0x70] sm:$0xff] %v225
                %v227 = vld [vmem:[%s195 + $0xe8] sm:$0xff]
                %228 = vst [vmem:[%s196 + $0x78] sm:$0xff] %v227
                %v229 = vld [vmem:[%s195 + $0x100] sm:$0xff]
                %230 = vst [vmem:[%s196 + $0x80] sm:$0xff] %v229
                %v231 = vld [vmem:[%s195 + $0x108] sm:$0xff]
                %232 = vst [vmem:[%s196 + $0x88] sm:$0xff] %v231
                %v233 = vld [vmem:[%s195 + $0x120] sm:$0xff]
                %234 = vst [vmem:[%s196 + $0x90] sm:$0xff] %v233
                %v235 = vld [vmem:[%s195 + $0x128] sm:$0xff]
                %236 = vst [vmem:[%s196 + $0x98] sm:$0xff] %v235
                %v237 = vld [vmem:[%s195 + $0x140] sm:$0xff]
                %238 = vst [vmem:[%s196 + $0xa0] sm:$0xff] %v237
                %v239 = vld [vmem:[%s195 + $0x148] sm:$0xff]
                %240 = vst [vmem:[%s196 + $0xa8] sm:$0xff] %v239
                %v241 = vld [vmem:[%s195 + $0x160] sm:$0xff]
                %242 = vst [vmem:[%s196 + $0xb0] sm:$0xff] %v241
                %v243 = vld [vmem:[%s195 + $0x168] sm:$0xff]
                %244 = vst [vmem:[%s196 + $0xb8] sm:$0xff] %v243
                %v245 = vld [vmem:[%s195 + $0x180] sm:$0xff]
                %246 = vst [vmem:[%s196 + $0xc0] sm:$0xff] %v245
                %v247 = vld [vmem:[%s195 + $0x188] sm:$0xff]
                %248 = vst [vmem:[%s196 + $0xc8] sm:$0xff] %v247
                %v249 = vld [vmem:[%s195 + $0x1a0] sm:$0xff]
                %250 = vst [vmem:[%s196 + $0xd0] sm:$0xff] %v249
                %v251 = vld [vmem:[%s195 + $0x1a8] sm:$0xff]
                %252 = vst [vmem:[%s196 + $0xd8] sm:$0xff] %v251
                %v253 = vld [vmem:[%s195 + $0x1c0] sm:$0xff]
                %254 = vst [vmem:[%s196 + $0xe0] sm:$0xff] %v253
                %v255 = vld [vmem:[%s195 + $0x1c8] sm:$0xff]
                %256 = vst [vmem:[%s196 + $0xe8] sm:$0xff] %v255
                %v257 = vld [vmem:[%s195 + $0x1e0] sm:$0xff]
                %258 = vst [vmem:[%s196 + $0xf0] sm:$0xff] %v257
                %v259 = vld [vmem:[%s195 + $0x1e8] sm:$0xff]
                %260 = vst [vmem:[%s196 + $0xf8] sm:$0xff] %v259
                %v261 = vld [vmem:[%s195 + $0x200] sm:$0xff]
                %262 = vst [vmem:[%s196 + $0x100] sm:$0xff] %v261
                %v263 = vld [vmem:[%s195 + $0x208] sm:$0xff]
                %264 = vst [vmem:[%s196 + $0x108] sm:$0xff] %v263
                %v265 = vld [vmem:[%s195 + $0x220] sm:$0xff]
                %266 = vst [vmem:[%s196 + $0x110] sm:$0xff] %v265
                %v267 = vld [vmem:[%s195 + $0x228] sm:$0xff]
                %268 = vst [vmem:[%s196 + $0x118] sm:$0xff] %v267
                %v269 = vld [vmem:[%s195 + $0x240] sm:$0xff]
                %270 = vst [vmem:[%s196 + $0x120] sm:$0xff] %v269
                %v271 = vld [vmem:[%s195 + $0x248] sm:$0xff]
                %272 = vst [vmem:[%s196 + $0x128] sm:$0xff] %v271
                %v273 = vld [vmem:[%s195 + $0x260] sm:$0xff]
                %274 = vst [vmem:[%s196 + $0x130] sm:$0xff] %v273
                %v275 = vld [vmem:[%s195 + $0x268] sm:$0xff]
                %276 = vst [vmem:[%s196 + $0x138] sm:$0xff] %v275
                %v277 = vld [vmem:[%s195 + $0x280] sm:$0xff]
                %278 = vst [vmem:[%s196 + $0x140] sm:$0xff] %v277
                %v279 = vld [vmem:[%s195 + $0x288] sm:$0xff]
                %280 = vst [vmem:[%s196 + $0x148] sm:$0xff] %v279
                %v281 = vld [vmem:[%s195 + $0x2a0] sm:$0xff]
                %282 = vst [vmem:[%s196 + $0x150] sm:$0xff] %v281
                %v283 = vld [vmem:[%s195 + $0x2a8] sm:$0xff]
                %284 = vst [vmem:[%s196 + $0x158] sm:$0xff] %v283
                %v285 = vld [vmem:[%s195 + $0x2c0] sm:$0xff]
                %286 = vst [vmem:[%s196 + $0x160] sm:$0xff] %v285
                %v287 = vld [vmem:[%s195 + $0x2c8] sm:$0xff]
                %288 = vst [vmem:[%s196 + $0x168] sm:$0xff] %v287
                %v289 = vld [vmem:[%s195 + $0x2e0] sm:$0xff]
                %290 = vst [vmem:[%s196 + $0x170] sm:$0xff] %v289
                %v291 = vld [vmem:[%s195 + $0x2e8] sm:$0xff]
                %292 = vst [vmem:[%s196 + $0x178] sm:$0xff] %v291
                %v293 = vld [vmem:[%s195 + $0x300] sm:$0xff]
                %294 = vst [vmem:[%s196 + $0x180] sm:$0xff] %v293
                %v295 = vld [vmem:[%s195 + $0x308] sm:$0xff]
                %296 = vst [vmem:[%s196 + $0x188] sm:$0xff] %v295
                %v297 = vld [vmem:[%s195 + $0x320] sm:$0xff]
                %298 = vst [vmem:[%s196 + $0x190] sm:$0xff] %v297
                %v299 = vld [vmem:[%s195 + $0x328] sm:$0xff]
                %300 = vst [vmem:[%s196 + $0x198] sm:$0xff] %v299
                %v301 = vld [vmem:[%s195 + $0x340] sm:$0xff]
                %302 = vst [vmem:[%s196 + $0x1a0] sm:$0xff] %v301
                %v303 = vld [vmem:[%s195 + $0x348] sm:$0xff]
                %304 = vst [vmem:[%s196 + $0x1a8] sm:$0xff] %v303
                %v305 = vld [vmem:[%s195 + $0x360] sm:$0xff]
                %306 = vst [vmem:[%s196 + $0x1b0] sm:$0xff] %v305
                %v307 = vld [vmem:[%s195 + $0x368] sm:$0xff]
                %308 = vst [vmem:[%s196 + $0x1b8] sm:$0xff] %v307
                %v309 = vld [vmem:[%s195 + $0x380] sm:$0xff]
                %310 = vst [vmem:[%s196 + $0x1c0] sm:$0xff] %v309
                %v311 = vld [vmem:[%s195 + $0x388] sm:$0xff]
                %312 = vst [vmem:[%s196 + $0x1c8] sm:$0xff] %v311
                %v313 = vld [vmem:[%s195 + $0x3a0] sm:$0xff]
                %314 = vst [vmem:[%s196 + $0x1d0] sm:$0xff] %v313
                %v315 = vld [vmem:[%s195 + $0x3a8] sm:$0xff]
                %316 = vst [vmem:[%s196 + $0x1d8] sm:$0xff] %v315
                %v317 = vld [vmem:[%s195 + $0x3c0] sm:$0xff]
                %318 = vst [vmem:[%s196 + $0x1e0] sm:$0xff] %v317
                %v319 = vld [vmem:[%s195 + $0x3c8] sm:$0xff]
                %320 = vst [vmem:[%s196 + $0x1e8] sm:$0xff] %v319
                %v321 = vld [vmem:[%s195 + $0x3e0] sm:$0xff]
                %322 = vst [vmem:[%s196 + $0x1f0] sm:$0xff] %v321
                %v323 = vld [vmem:[%s195 + $0x3e8] sm:$0xff]
                %324 = vst [vmem:[%s196 + $0x1f8] sm:$0xff] %v323
              $region37: #{gcn_forward.5} parent=31 // loop_footer
                %s194 = sadd.s32 1, %s190
              $region38: #{gcn_forward.5} parent=31 // loop_footer_branch
                %189 = sbr.rel target = $region34
              $region39: #{gcn_forward.5} parent=31 // loop_exit
                _
            $region32: #{gcn_forward.5} parent=27 // pred_fallthru
              _
            // Predicated region
            $region40: #{gcn_forward.5} parent=27 // pred_check
              _
            $region41: #{gcn_forward.5} parent=27 // pred_check_branch
              %326 = sbr.rel target = $region43
            $region42: #{gcn_forward.5} parent=27 // pred_region
              _
            $region43: #{gcn_forward.5} parent=27 // pred_fallthru
              _
          $region28: #{gcn_forward.5} parent=23 // pred_fallthru
            _
          %327 = vnop
        $region24: #{gcn_forward.5} parent=19 // pred_fallthru
          _
        // Predicated region
        $region44: #{gcn_forward.5} parent=19 // pred_check
          %p328 = pneg %p71
        $region45: #{gcn_forward.5} parent=19 // pred_check_branch
          %330 = sbr.rel (%p328) target = $region47
        $region46: #{gcn_forward.5} parent=19 // pred_region
          %s331 = smul.u32 32, %s19
          %p332 = scmp.lt.s32.totalorder %s331, 63
          %s333 = scalar_select %p332, %s331, 63
          %s334 = smul.addr %s333, 8
          %s335 = scalar_lea.vmem %s1, %s334
          %s336 = smul.u32 32, %s19
        $region47: #{gcn_forward.5} parent=19 // pred_fallthru
          _
      $region20: #{gcn_forward.5} parent=5 // pred_fallthru
        _
      %p337 = scmp.le.s32.totalorder 1, %s11
      %p338 = scmp.lt.s32.totalorder %s11, 5
      %p339 = pnand %p337, %p338
      %p340 = pneg %p339
      // Predicated region
      $region48: #{gcn_forward.5} parent=5 // pred_check
        _
      $region49: #{gcn_forward.5} parent=5 // pred_check_branch
        %342 = sbr.rel (%p339) target = $region51
      $region50: #{gcn_forward.5} parent=5 // pred_region
        %s343 = ssub.s32 %s11, 1
        %s344 = sand.u32 %s38, 1
        %s345 = sand.u32 %s38, 1
        %s346 = smul.addr %s345, 512
        %s347 = scalar_lea.vmem [#allocation3], %s346
        // Predicated region
        $region52: #{gcn_forward.5} parent=50 // pred_check
          %p348 = pneg %p51
        $region53: #{gcn_forward.5} parent=50 // pred_check_branch
          %350 = sbr.rel (%p348) target = $region55
        $region54: #{gcn_forward.5} parent=50 // pred_region
          _
        $region55: #{gcn_forward.5} parent=50 // pred_fallthru
          _
        %s351 = sand.u32 %s38, 1
        %s352 = sand.u32 %s38, 1
        %s353 = smul.addr %s352, 512
        %s354 = scalar_lea.vmem [#allocation3], %s353
        %p355 = pneg %p51
        %p356 = pneg %p48
        %s357 = smul.u32 32, %s21
        %p358 = scmp.lt.s32.totalorder %s357, 63
        %s359 = scalar_select %p358, %s357, 63
        %s360 = smul.addr %s359, 8
        %s361 = scalar_lea.vmem %s1, %s360
        %p362 = pneg %p77
        %p363 = pneg %p74
        %p364 = pneg %p98
        %p365 = pneg %p95
        %p366 = pneg %p124
        %p367 = pneg %p121
        %s368 = smul.u32 32, %s20
        %p369 = scmp.lt.s32.totalorder %s368, 63
        %s370 = scalar_select %p369, %s368, 63
        %s371 = smul.addr %s370, 8
        %s372 = scalar_lea.vmem %s3, %s371
        %p373 = pneg %p150
        %p374 = pneg %p147
        %s375 = smul.u32 32, %s20
        %p376 = scmp.lt.s32.totalorder %s375, 63
        %s377 = scalar_select %p376, %s375, 63
        %s378 = smul.addr %s377, 8
        %s379 = scalar_lea.vmem %s4, %s378
        %s380 = smul.u32 32, %s20
        %s381 = smul.u32 2, %s21
        %s382 = smul.u32 32, %s21
        %p383 = scmp.lt.s32.totalorder %s382, 63
        %s384 = scalar_select %p383, %s382, 63
        %s385 = smul.addr %s384, 8
        %s386 = scalar_lea.vmem %s1, %s385
        %s387 = smul.u32 32, %s21
        %s388 = smul.u32 32, %s20
        %p389 = scmp.lt.s32.totalorder %s388, 63
        %s390 = scalar_select %p389, %s388, 63
        %s391 = smul.addr %s390, 8
        %s392 = scalar_lea.vmem %s3, %s391
        %s393 = smul.u32 32, %s20
        %s394 = smul.u32 32, %s20
        %p395 = scmp.lt.s32.totalorder %s394, 63
        %s396 = scalar_select %p395, %s394, 63
        %s397 = smul.addr %s396, 8
        %s398 = scalar_lea.vmem %s4, %s397
        %s399 = smul.u32 32, %s20
        %p400 = scmp.eq.s32.totalorder %s21, 0
        // Predicated region
        $region56: #{gcn_forward.5} parent=50 // pred_check
          %p401 = pneg %p400
        $region57: #{gcn_forward.5} parent=50 // pred_check_branch
          %403 = sbr.rel (%p401) target = $region59
        $region58: #{gcn_forward.5} parent=50 // pred_region
          %404 = vst [vmem:[#allocation2] sm:$0xff] 0.0
          %405 = vst [vmem:[#allocation2 + $0x8] sm:$0xff] 0.0
          %406 = vst [vmem:[#allocation2 + $0x10] sm:$0xff] 0.0
          %407 = vst [vmem:[#allocation2 + $0x18] sm:$0xff] 0.0
          %408 = vst [vmem:[#allocation2 + $0x20] sm:$0xff] 0.0
          %409 = vst [vmem:[#allocation2 + $0x28] sm:$0xff] 0.0
          %410 = vst [vmem:[#allocation2 + $0x30] sm:$0xff] 0.0
          %411 = vst [vmem:[#allocation2 + $0x38] sm:$0xff] 0.0
          %412 = vst [vmem:[#allocation2 + $0x40] sm:$0xff] 0.0
          %413 = vst [vmem:[#allocation2 + $0x48] sm:$0xff] 0.0
          %414 = vst [vmem:[#allocation2 + $0x50] sm:$0xff] 0.0
          %415 = vst [vmem:[#allocation2 + $0x58] sm:$0xff] 0.0
          %416 = vst [vmem:[#allocation2 + $0x60] sm:$0xff] 0.0
          %417 = vst [vmem:[#allocation2 + $0x68] sm:$0xff] 0.0
          %418 = vst [vmem:[#allocation2 + $0x70] sm:$0xff] 0.0
          %419 = vst [vmem:[#allocation2 + $0x78] sm:$0xff] 0.0
          %420 = vst [vmem:[#allocation2 + $0x80] sm:$0xff] 0.0
          %421 = vst [vmem:[#allocation2 + $0x88] sm:$0xff] 0.0
          %422 = vst [vmem:[#allocation2 + $0x90] sm:$0xff] 0.0
          %423 = vst [vmem:[#allocation2 + $0x98] sm:$0xff] 0.0
          %424 = vst [vmem:[#allocation2 + $0xa0] sm:$0xff] 0.0
          %425 = vst [vmem:[#allocation2 + $0xa8] sm:$0xff] 0.0
          %426 = vst [vmem:[#allocation2 + $0xb0] sm:$0xff] 0.0
          %427 = vst [vmem:[#allocation2 + $0xb8] sm:$0xff] 0.0
          %428 = vst [vmem:[#allocation2 + $0xc0] sm:$0xff] 0.0
          %429 = vst [vmem:[#allocation2 + $0xc8] sm:$0xff] 0.0
          %430 = vst [vmem:[#allocation2 + $0xd0] sm:$0xff] 0.0
          %431 = vst [vmem:[#allocation2 + $0xd8] sm:$0xff] 0.0
          %432 = vst [vmem:[#allocation2 + $0xe0] sm:$0xff] 0.0
          %433 = vst [vmem:[#allocation2 + $0xe8] sm:$0xff] 0.0
          %434 = vst [vmem:[#allocation2 + $0xf0] sm:$0xff] 0.0
          %435 = vst [vmem:[#allocation2 + $0xf8] sm:$0xff] 0.0
        $region59: #{gcn_forward.5} parent=50 // pred_fallthru
          _
        %v436 = vld [vmem:[#allocation2] sm:$0xff]
        %v437 = vld [vmem:[#allocation2 + $0x8] sm:$0xff]
        %v438 = vld [vmem:[#allocation2 + $0x10] sm:$0xff]
        %v439 = vld [vmem:[#allocation2 + $0x18] sm:$0xff]
        %v440 = vld [vmem:[#allocation2 + $0x20] sm:$0xff]
        %v441 = vld [vmem:[#allocation2 + $0x28] sm:$0xff]
        %v442 = vld [vmem:[#allocation2 + $0x30] sm:$0xff]
        %v443 = vld [vmem:[#allocation2 + $0x38] sm:$0xff]
        %v444 = vld [vmem:[#allocation2 + $0x40] sm:$0xff]
        %v445 = vld [vmem:[#allocation2 + $0x48] sm:$0xff]
        %v446 = vld [vmem:[#allocation2 + $0x50] sm:$0xff]
        %v447 = vld [vmem:[#allocation2 + $0x58] sm:$0xff]
        %v448 = vld [vmem:[#allocation2 + $0x60] sm:$0xff]
        %v449 = vld [vmem:[#allocation2 + $0x68] sm:$0xff]
        %v450 = vld [vmem:[#allocation2 + $0x70] sm:$0xff]
        %v451 = vld [vmem:[#allocation2 + $0x78] sm:$0xff]
        %v452 = vld [vmem:[#allocation2 + $0x80] sm:$0xff]
        %v453 = vld [vmem:[#allocation2 + $0x88] sm:$0xff]
        %v454 = vld [vmem:[#allocation2 + $0x90] sm:$0xff]
        %v455 = vld [vmem:[#allocation2 + $0x98] sm:$0xff]
        %v456 = vld [vmem:[#allocation2 + $0xa0] sm:$0xff]
        %v457 = vld [vmem:[#allocation2 + $0xa8] sm:$0xff]
        %v458 = vld [vmem:[#allocation2 + $0xb0] sm:$0xff]
        %v459 = vld [vmem:[#allocation2 + $0xb8] sm:$0xff]
        %v460 = vld [vmem:[#allocation2 + $0xc0] sm:$0xff]
        %v461 = vld [vmem:[#allocation2 + $0xc8] sm:$0xff]
        %v462 = vld [vmem:[#allocation2 + $0xd0] sm:$0xff]
        %v463 = vld [vmem:[#allocation2 + $0xd8] sm:$0xff]
        %v464 = vld [vmem:[#allocation2 + $0xe0] sm:$0xff]
        %v465 = vld [vmem:[#allocation2 + $0xe8] sm:$0xff]
        %v466 = vld [vmem:[#allocation2 + $0xf0] sm:$0xff]
        %v467 = vld [vmem:[#allocation2 + $0xf8] sm:$0xff]
        %v468 = vld [vmem:[%s347] sm:$0xff]
        %v469 = vld [vmem:[%s347 + $0x8] sm:$0xff]
        %v470 = vld [vmem:[%s347 + $0x10] sm:$0xff]
        %v471 = vld [vmem:[%s347 + $0x18] sm:$0xff]
        %v472 = vld [vmem:[%s347 + $0x20] sm:$0xff]
        %v473 = vld [vmem:[%s347 + $0x28] sm:$0xff]
        %v474 = vld [vmem:[%s347 + $0x30] sm:$0xff]
        %v475 = vld [vmem:[%s347 + $0x38] sm:$0xff]
        %v476 = vld [vmem:[%s347 + $0x40] sm:$0xff]
        %v477 = vld [vmem:[%s347 + $0x48] sm:$0xff]
        %v478 = vld [vmem:[%s347 + $0x50] sm:$0xff]
        %v479 = vld [vmem:[%s347 + $0x58] sm:$0xff]
        %v480 = vld [vmem:[%s347 + $0x60] sm:$0xff]
        %v481 = vld [vmem:[%s347 + $0x68] sm:$0xff]
        %v482 = vld [vmem:[%s347 + $0x70] sm:$0xff]
        %v483 = vld [vmem:[%s347 + $0x78] sm:$0xff]
        %v484 = vld [vmem:[%s347 + $0x80] sm:$0xff]
        %v485 = vld [vmem:[%s347 + $0x88] sm:$0xff]
        %v486 = vld [vmem:[%s347 + $0x90] sm:$0xff]
        %v487 = vld [vmem:[%s347 + $0x98] sm:$0xff]
        %v488 = vld [vmem:[%s347 + $0xa0] sm:$0xff]
        %v489 = vld [vmem:[%s347 + $0xa8] sm:$0xff]
        %v490 = vld [vmem:[%s347 + $0xb0] sm:$0xff]
        %v491 = vld [vmem:[%s347 + $0xb8] sm:$0xff]
        %v492 = vld [vmem:[%s347 + $0xc0] sm:$0xff]
        %v493 = vld [vmem:[%s347 + $0xc8] sm:$0xff]
        %v494 = vld [vmem:[%s347 + $0xd0] sm:$0xff]
        %v495 = vld [vmem:[%s347 + $0xd8] sm:$0xff]
        %v496 = vld [vmem:[%s347 + $0xe0] sm:$0xff]
        %v497 = vld [vmem:[%s347 + $0xe8] sm:$0xff]
        %v498 = vld [vmem:[%s347 + $0xf0] sm:$0xff]
        %v499 = vld [vmem:[%s347 + $0xf8] sm:$0xff]
        %v500 = vld [vmem:[%s347 + $0x100] sm:$0xff]
        %v501 = vld [vmem:[%s347 + $0x108] sm:$0xff]
        %v502 = vld [vmem:[%s347 + $0x110] sm:$0xff]
        %v503 = vld [vmem:[%s347 + $0x118] sm:$0xff]
        %v504 = vld [vmem:[%s347 + $0x120] sm:$0xff]
        %v505 = vld [vmem:[%s347 + $0x128] sm:$0xff]
        %v506 = vld [vmem:[%s347 + $0x130] sm:$0xff]
        %v507 = vld [vmem:[%s347 + $0x138] sm:$0xff]
        %v508 = vld [vmem:[%s347 + $0x140] sm:$0xff]
        %v509 = vld [vmem:[%s347 + $0x148] sm:$0xff]
        %v510 = vld [vmem:[%s347 + $0x150] sm:$0xff]
        %v511 = vld [vmem:[%s347 + $0x158] sm:$0xff]
        %v512 = vld [vmem:[%s347 + $0x160] sm:$0xff]
        %v513 = vld [vmem:[%s347 + $0x168] sm:$0xff]
        %v514 = vld [vmem:[%s347 + $0x170] sm:$0xff]
        %v515 = vld [vmem:[%s347 + $0x178] sm:$0xff]
        %v516 = vld [vmem:[%s347 + $0x180] sm:$0xff]
        %v517 = vld [vmem:[%s347 + $0x188] sm:$0xff]
        %v518 = vld [vmem:[%s347 + $0x190] sm:$0xff]
        %v519 = vld [vmem:[%s347 + $0x198] sm:$0xff]
        %v520 = vld [vmem:[%s347 + $0x1a0] sm:$0xff]
        %v521 = vld [vmem:[%s347 + $0x1a8] sm:$0xff]
        %v522 = vld [vmem:[%s347 + $0x1b0] sm:$0xff]
        %v523 = vld [vmem:[%s347 + $0x1b8] sm:$0xff]
        %v524 = vld [vmem:[%s347 + $0x1c0] sm:$0xff]
        %v525 = vld [vmem:[%s347 + $0x1c8] sm:$0xff]
        %v526 = vld [vmem:[%s347 + $0x1d0] sm:$0xff]
        %v527 = vld [vmem:[%s347 + $0x1d8] sm:$0xff]
        %v528 = vld [vmem:[%s347 + $0x1e0] sm:$0xff]
        %v529 = vld [vmem:[%s347 + $0x1e8] sm:$0xff]
        %v530 = vld [vmem:[%s347 + $0x1f0] sm:$0xff]
        %v531 = vld [vmem:[%s347 + $0x1f8] sm:$0xff]
        %v532 = vld [vmem:[%s386] sm:$0xff]
        %v533 = vld [vmem:[%s386 + $0x8] sm:$0xff]
        %v534 = vld [vmem:[%s386 + $0x10] sm:$0xff]
        %v535 = vld [vmem:[%s386 + $0x18] sm:$0xff]
        %v536 = vld [vmem:[%s386 + $0x20] sm:$0xff]
        %v537 = vld [vmem:[%s386 + $0x28] sm:$0xff]
        %v538 = vld [vmem:[%s386 + $0x30] sm:$0xff]
        %v539 = vld [vmem:[%s386 + $0x38] sm:$0xff]
        %v540 = vld [vmem:[%s386 + $0x40] sm:$0xff]
        %v541 = vld [vmem:[%s386 + $0x48] sm:$0xff]
        %v542 = vld [vmem:[%s386 + $0x50] sm:$0xff]
        %v543 = vld [vmem:[%s386 + $0x58] sm:$0xff]
        %v544 = vld [vmem:[%s386 + $0x60] sm:$0xff]
        %v545 = vld [vmem:[%s386 + $0x68] sm:$0xff]
        %v546 = vld [vmem:[%s386 + $0x70] sm:$0xff]
        %v547 = vld [vmem:[%s386 + $0x78] sm:$0xff]
        %v548 = vld [vmem:[%s386 + $0x80] sm:$0xff]
        %v549 = vld [vmem:[%s386 + $0x88] sm:$0xff]
        %v550 = vld [vmem:[%s386 + $0x90] sm:$0xff]
        %v551 = vld [vmem:[%s386 + $0x98] sm:$0xff]
        %v552 = vld [vmem:[%s386 + $0xa0] sm:$0xff]
        %v553 = vld [vmem:[%s386 + $0xa8] sm:$0xff]
        %v554 = vld [vmem:[%s386 + $0xb0] sm:$0xff]
        %v555 = vld [vmem:[%s386 + $0xb8] sm:$0xff]
        %v556 = vld [vmem:[%s386 + $0xc0] sm:$0xff]
        %v557 = vld [vmem:[%s386 + $0xc8] sm:$0xff]
        %v558 = vld [vmem:[%s386 + $0xd0] sm:$0xff]
        %v559 = vld [vmem:[%s386 + $0xd8] sm:$0xff]
        %v560 = vld [vmem:[%s386 + $0xe0] sm:$0xff]
        %v561 = vld [vmem:[%s386 + $0xe8] sm:$0xff]
        %v562 = vld [vmem:[%s386 + $0xf0] sm:$0xff]
        %v563 = vld [vmem:[%s386 + $0xf8] sm:$0xff]
        %564 = vmatprep.subr.mxu0 0.0
        %565 = vmatpush1.msra.mxu0 %v532
        %566 = vmatprep.subr.mxu0 0.0
        %567 = vmatpush1.msra.mxu0 %v533
        %568 = vmatprep.subr.mxu0 0.0
        %569 = vmatpush1.msra.mxu0 %v534
        %570 = vmatprep.subr.mxu0 0.0
        %571 = vmatpush1.msra.mxu0 %v535
        %572 = vmatprep.subr.mxu0 0.0
        %573 = vmatpush1.msra.mxu0 %v536
        %574 = vmatprep.subr.mxu0 0.0
        %575 = vmatpush1.msra.mxu0 %v537
        %576 = vmatprep.subr.mxu0 0.0
        %577 = vmatpush1.msra.mxu0 %v538
        %578 = vmatprep.subr.mxu0 0.0
        %579 = vmatpush1.msra.mxu0 %v539
        %580 = vmatprep.subr.mxu0 0.0
        %581 = vmatpush1.msra.mxu0 %v540
        %582 = vmatprep.subr.mxu0 0.0
        %583 = vmatpush1.msra.mxu0 %v541
        %584 = vmatprep.subr.mxu0 0.0
        %585 = vmatpush1.msra.mxu0 %v542
        %586 = vmatprep.subr.mxu0 0.0
        %587 = vmatpush1.msra.mxu0 %v543
        %588 = vmatprep.subr.mxu0 0.0
        %589 = vmatpush1.msra.mxu0 %v544
        %590 = vmatprep.subr.mxu0 0.0
        %591 = vmatpush1.msra.mxu0 %v545
        %592 = vmatprep.subr.mxu0 0.0
        %593 = vmatpush1.msra.mxu0 %v546
        %594 = vmatprep.subr.mxu0 0.0
        %595 = vmatpush1.msra.mxu0 %v547
        %596 = vmatprep.subr.mxu0 0.0
        %597 = vmatpush1.msra.mxu0 %v548
        %598 = vmatprep.subr.mxu0 0.0
        %599 = vmatpush1.msra.mxu0 %v549
        %600 = vmatprep.subr.mxu0 0.0
        %601 = vmatpush1.msra.mxu0 %v550
        %602 = vmatprep.subr.mxu0 0.0
        %603 = vmatpush1.msra.mxu0 %v551
        %604 = vmatprep.subr.mxu0 0.0
        %605 = vmatpush1.msra.mxu0 %v552
        %606 = vmatprep.subr.mxu0 0.0
        %607 = vmatpush1.msra.mxu0 %v553
        %608 = vmatprep.subr.mxu0 0.0
        %609 = vmatpush1.msra.mxu0 %v554
        %610 = vmatprep.subr.mxu0 0.0
        %611 = vmatpush1.msra.mxu0 %v555
        %612 = vmatprep.subr.mxu0 0.0
        %613 = vmatpush1.msra.mxu0 %v556
        %614 = vmatprep.subr.mxu0 0.0
        %615 = vmatpush1.msra.mxu0 %v557
        %616 = vmatprep.subr.mxu0 0.0
        %617 = vmatpush1.msra.mxu0 %v558
        %618 = vmatprep.subr.mxu0 0.0
        %619 = vmatpush1.msra.mxu0 %v559
        %620 = vmatprep.subr.mxu0 0.0
        %621 = vmatpush1.msra.mxu0 %v560
        %622 = vmatprep.subr.mxu0 0.0
        %623 = vmatpush1.msra.mxu0 %v561
        %624 = vmatprep.subr.mxu0 0.0
        %625 = vmatpush1.msra.mxu0 %v562
        %626 = vmatprep.subr.mxu0 0.0
        %627 = vmatpush1.msra.mxu0 %v563
        %628 = vmatprep.mubr.f32.mxu0 %v469
        %629 = vmatmul.mubr.f32.gmra.mrb[0].mxu0 %v468
        %v630 = vpop.f32.mrb[0].mxu0
        %v631 = vadd.f32 0.0, %v630
        %v632 = vpop.f32.mrb[0].mxu0
        %633 = vmatprep.mubr.f32.mxu0 %v471
        %634 = vmatmul.mubr.f32.gmra.mrb[0].mxu0 %v470
        %v635 = vpop.f32.mrb[0].mxu0
        %v636 = vadd.f32 0.0, %v635
        %v637 = vpop.f32.mrb[0].mxu0
        %638 = vmatprep.mubr.f32.mxu0 %v473
        %639 = vmatmul.mubr.f32.gmra.mrb[0].mxu0 %v472
        %v640 = vpop.f32.mrb[0].mxu0
        %v641 = vadd.f32 0.0, %v640
        %v642 = vpop.f32.mrb[0].mxu0
        %643 = vmatprep.mubr.f32.mxu0 %v475
        %644 = vmatmul.mubr.f32.gmra.mrb[0].mxu0 %v474
        %v645 = vpop.f32.mrb[0].mxu0
        %v646 = vadd.f32 0.0, %v645
        %v647 = vpop.f32.mrb[0].mxu0
        %648 = vmatprep.mubr.f32.mxu0 %v477
        %649 = vmatmul.mubr.f32.gmra.mrb[0].mxu0 %v476
        %v650 = vpop.f32.mrb[0].mxu0
        %v651 = vadd.f32 0.0, %v650
        %v652 = vpop.f32.mrb[0].mxu0
        %653 = vmatprep.mubr.f32.mxu0 %v479
        %654 = vmatmul.mubr.f32.gmra.mrb[0].mxu0 %v478
        %v655 = vpop.f32.mrb[0].mxu0
        %v656 = vadd.f32 0.0, %v655
        %v657 = vpop.f32.mrb[0].mxu0
        %658 = vmatprep.mubr.f32.mxu0 %v481
        %659 = vmatmul.mubr.f32.gmra.mrb[0].mxu0 %v480
        %v660 = vpop.f32.mrb[0].mxu0
        %v661 = vadd.f32 0.0, %v660
        %v662 = vpop.f32.mrb[0].mxu0
        %663 = vmatprep.mubr.f32.mxu0 %v483
        %664 = vmatmul.mubr.f32.gmra.mrb[0].mxu0 %v482
        %v665 = vpop.f32.mrb[0].mxu0
        %v666 = vadd.f32 0.0, %v665
        %v667 = vpop.f32.mrb[0].mxu0
        %668 = vmatprep.mubr.f32.mxu0 %v485
        %669 = vmatmul.mubr.f32.gmra.mrb[0].mxu0 %v484
        %v670 = vpop.f32.mrb[0].mxu0
        %v671 = vadd.f32 0.0, %v670
        %v672 = vpop.f32.mrb[0].mxu0
        %673 = vmatprep.mubr.f32.mxu0 %v487
        %674 = vmatmul.mubr.f32.gmra.mrb[0].mxu0 %v486
        %v675 = vpop.f32.mrb[0].mxu0
        %v676 = vadd.f32 0.0, %v675
        %v677 = vpop.f32.mrb[0].mxu0
        %678 = vmatprep.mubr.f32.mxu0 %v489
        %679 = vmatmul.mubr.f32.gmra.mrb[0].mxu0 %v488
        %v680 = vpop.f32.mrb[0].mxu0
        %v681 = vadd.f32 0.0, %v680
        %v682 = vpop.f32.mrb[0].mxu0
        %683 = vmatprep.mubr.f32.mxu0 %v491
        %684 = vmatmul.mubr.f32.gmra.mrb[0].mxu0 %v490
        %v685 = vpop.f32.mrb[0].mxu0
        %v686 = vadd.f32 0.0, %v685
        %v687 = vpop.f32.mrb[0].mxu0
        %688 = vmatprep.mubr.f32.mxu0 %v493
        %689 = vmatmul.mubr.f32.gmra.mrb[0].mxu0 %v492
        %v690 = vpop.f32.mrb[0].mxu0
        %v691 = vadd.f32 0.0, %v690
        %v692 = vpop.f32.mrb[0].mxu0
        %693 = vmatprep.mubr.f32.mxu0 %v495
        %694 = vmatmul.mubr.f32.gmra.mrb[0].mxu0 %v494
        %v695 = vpop.f32.mrb[0].mxu0
        %v696 = vadd.f32 0.0, %v695
        %v697 = vpop.f32.mrb[0].mxu0
        %698 = vmatprep.mubr.f32.mxu0 %v497
        %699 = vmatmul.mubr.f32.gmra.mrb[0].mxu0 %v496
        %v700 = vpop.f32.mrb[0].mxu0
        %v701 = vadd.f32 0.0, %v700
        %v702 = vpop.f32.mrb[0].mxu0
        %703 = vmatprep.mubr.f32.mxu0 %v499
        %704 = vmatmul.mubr.f32.gmra.mrb[0].mxu0 %v498
        %v705 = vpop.f32.mrb[0].mxu0
        %v706 = vadd.f32 0.0, %v705
        %v707 = vpop.f32.mrb[0].mxu0
        %708 = vmatprep.mubr.f32.mxu0 %v501
        %709 = vmatmul.mubr.f32.gmra.mrb[0].mxu0 %v500
        %v710 = vpop.f32.mrb[0].mxu0
        %v711 = vadd.f32 0.0, %v710
        %v712 = vpop.f32.mrb[0].mxu0
        %713 = vmatprep.mubr.f32.mxu0 %v503
        %714 = vmatmul.mubr.f32.gmra.mrb[0].mxu0 %v502
        %v715 = vpop.f32.mrb[0].mxu0
        %v716 = vadd.f32 0.0, %v715
        %v717 = vpop.f32.mrb[0].mxu0
        %718 = vmatprep.mubr.f32.mxu0 %v505
        %719 = vmatmul.mubr.f32.gmra.mrb[0].mxu0 %v504
        %v720 = vpop.f32.mrb[0].mxu0
        %v721 = vadd.f32 0.0, %v720
        %v722 = vpop.f32.mrb[0].mxu0
        %723 = vmatprep.mubr.f32.mxu0 %v507
        %724 = vmatmul.mubr.f32.gmra.mrb[0].mxu0 %v506
        %v725 = vpop.f32.mrb[0].mxu0
        %v726 = vadd.f32 0.0, %v725
        %v727 = vpop.f32.mrb[0].mxu0
        %728 = vmatprep.mubr.f32.mxu0 %v509
        %729 = vmatmul.mubr.f32.gmra.mrb[0].mxu0 %v508
        %v730 = vpop.f32.mrb[0].mxu0
        %v731 = vadd.f32 0.0, %v730
        %v732 = vpop.f32.mrb[0].mxu0
        %733 = vmatprep.mubr.f32.mxu0 %v511
        %734 = vmatmul.mubr.f32.gmra.mrb[0].mxu0 %v510
        %v735 = vpop.f32.mrb[0].mxu0
        %v736 = vadd.f32 0.0, %v735
        %v737 = vpop.f32.mrb[0].mxu0
        %738 = vmatprep.mubr.f32.mxu0 %v513
        %739 = vmatmul.mubr.f32.gmra.mrb[0].mxu0 %v512
        %v740 = vpop.f32.mrb[0].mxu0
        %v741 = vadd.f32 0.0, %v740
        %v742 = vpop.f32.mrb[0].mxu0
        %743 = vmatprep.mubr.f32.mxu0 %v515
        %744 = vmatmul.mubr.f32.gmra.mrb[0].mxu0 %v514
        %v745 = vpop.f32.mrb[0].mxu0
        %v746 = vadd.f32 0.0, %v745
        %v747 = vpop.f32.mrb[0].mxu0
        %748 = vmatprep.mubr.f32.mxu0 %v517
        %749 = vmatmul.mubr.f32.gmra.mrb[0].mxu0 %v516
        %v750 = vpop.f32.mrb[0].mxu0
        %v751 = vadd.f32 0.0, %v750
        %v752 = vpop.f32.mrb[0].mxu0
        %753 = vmatprep.mubr.f32.mxu0 %v519
        %754 = vmatmul.mubr.f32.gmra.mrb[0].mxu0 %v518
        %v755 = vpop.f32.mrb[0].mxu0
        %v756 = vadd.f32 0.0, %v755
        %v757 = vpop.f32.mrb[0].mxu0
        %758 = vmatprep.mubr.f32.mxu0 %v521
        %759 = vmatmul.mubr.f32.gmra.mrb[0].mxu0 %v520
        %v760 = vpop.f32.mrb[0].mxu0
        %v761 = vadd.f32 0.0, %v760
        %v762 = vpop.f32.mrb[0].mxu0
        %763 = vmatprep.mubr.f32.mxu0 %v523
        %764 = vmatmul.mubr.f32.gmra.mrb[0].mxu0 %v522
        %v765 = vpop.f32.mrb[0].mxu0
        %v766 = vadd.f32 0.0, %v765
        %v767 = vpop.f32.mrb[0].mxu0
        %768 = vmatprep.mubr.f32.mxu0 %v525
        %769 = vmatmul.mubr.f32.gmra.mrb[0].mxu0 %v524
        %v770 = vpop.f32.mrb[0].mxu0
        %v771 = vadd.f32 0.0, %v770
        %v772 = vpop.f32.mrb[0].mxu0
        %773 = vmatprep.mubr.f32.mxu0 %v527
        %774 = vmatmul.mubr.f32.gmra.mrb[0].mxu0 %v526
        %v775 = vpop.f32.mrb[0].mxu0
        %v776 = vadd.f32 0.0, %v775
        %v777 = vpop.f32.mrb[0].mxu0
        %778 = vmatprep.mubr.f32.mxu0 %v529
        %779 = vmatmul.mubr.f32.gmra.mrb[0].mxu0 %v528
        %v780 = vpop.f32.mrb[0].mxu0
        %v781 = vadd.f32 0.0, %v780
        %v782 = vpop.f32.mrb[0].mxu0
        %783 = vmatprep.mubr.f32.mxu0 %v531
        %784 = vmatmul.mubr.f32.gmra.mrb[0].mxu0 %v530
        %v785 = vpop.f32.mrb[0].mxu0
        %v786 = vadd.f32 0.0, %v785
        %v787 = vpop.f32.mrb[0].mxu0
        %788 = vdwg.mxu0
        %v789 = vadd.f32 %v436, %v631
        %v790 = vadd.f32 %v437, %v636
        %v791 = vadd.f32 %v438, %v641
        %v792 = vadd.f32 %v439, %v646
        %v793 = vadd.f32 %v440, %v651
        %v794 = vadd.f32 %v441, %v656
        %v795 = vadd.f32 %v442, %v661
        %v796 = vadd.f32 %v443, %v666
        %v797 = vadd.f32 %v444, %v671
        %v798 = vadd.f32 %v445, %v676
        %v799 = vadd.f32 %v446, %v681
        %v800 = vadd.f32 %v447, %v686
        %v801 = vadd.f32 %v448, %v691
        %v802 = vadd.f32 %v449, %v696
        %v803 = vadd.f32 %v450, %v701
        %v804 = vadd.f32 %v451, %v706
        %v805 = vadd.f32 %v452, %v711
        %v806 = vadd.f32 %v453, %v716
        %v807 = vadd.f32 %v454, %v721
        %v808 = vadd.f32 %v455, %v726
        %v809 = vadd.f32 %v456, %v731
        %v810 = vadd.f32 %v457, %v736
        %v811 = vadd.f32 %v458, %v741
        %v812 = vadd.f32 %v459, %v746
        %v813 = vadd.f32 %v460, %v751
        %v814 = vadd.f32 %v461, %v756
        %v815 = vadd.f32 %v462, %v761
        %v816 = vadd.f32 %v463, %v766
        %v817 = vadd.f32 %v464, %v771
        %v818 = vadd.f32 %v465, %v776
        %v819 = vadd.f32 %v466, %v781
        %v820 = vadd.f32 %v467, %v786
        %821 = vst [vmem:[#allocation2] sm:$0xff] %v789
        %822 = vst [vmem:[#allocation2 + $0x8] sm:$0xff] %v790
        %823 = vst [vmem:[#allocation2 + $0x10] sm:$0xff] %v791
        %824 = vst [vmem:[#allocation2 + $0x18] sm:$0xff] %v792
        %825 = vst [vmem:[#allocation2 + $0x20] sm:$0xff] %v793
        %826 = vst [vmem:[#allocation2 + $0x28] sm:$0xff] %v794
        %827 = vst [vmem:[#allocation2 + $0x30] sm:$0xff] %v795
        %828 = vst [vmem:[#allocation2 + $0x38] sm:$0xff] %v796
        %829 = vst [vmem:[#allocation2 + $0x40] sm:$0xff] %v797
        %830 = vst [vmem:[#allocation2 + $0x48] sm:$0xff] %v798
        %831 = vst [vmem:[#allocation2 + $0x50] sm:$0xff] %v799
        %832 = vst [vmem:[#allocation2 + $0x58] sm:$0xff] %v800
        %833 = vst [vmem:[#allocation2 + $0x60] sm:$0xff] %v801
        %834 = vst [vmem:[#allocation2 + $0x68] sm:$0xff] %v802
        %835 = vst [vmem:[#allocation2 + $0x70] sm:$0xff] %v803
        %836 = vst [vmem:[#allocation2 + $0x78] sm:$0xff] %v804
        %837 = vst [vmem:[#allocation2 + $0x80] sm:$0xff] %v805
        %838 = vst [vmem:[#allocation2 + $0x88] sm:$0xff] %v806
        %839 = vst [vmem:[#allocation2 + $0x90] sm:$0xff] %v807
        %840 = vst [vmem:[#allocation2 + $0x98] sm:$0xff] %v808
        %841 = vst [vmem:[#allocation2 + $0xa0] sm:$0xff] %v809
        %842 = vst [vmem:[#allocation2 + $0xa8] sm:$0xff] %v810
        %843 = vst [vmem:[#allocation2 + $0xb0] sm:$0xff] %v811
        %844 = vst [vmem:[#allocation2 + $0xb8] sm:$0xff] %v812
        %845 = vst [vmem:[#allocation2 + $0xc0] sm:$0xff] %v813
        %846 = vst [vmem:[#allocation2 + $0xc8] sm:$0xff] %v814
        %847 = vst [vmem:[#allocation2 + $0xd0] sm:$0xff] %v815
        %848 = vst [vmem:[#allocation2 + $0xd8] sm:$0xff] %v816
        %849 = vst [vmem:[#allocation2 + $0xe0] sm:$0xff] %v817
        %850 = vst [vmem:[#allocation2 + $0xe8] sm:$0xff] %v818
        %851 = vst [vmem:[#allocation2 + $0xf0] sm:$0xff] %v819
        %852 = vst [vmem:[#allocation2 + $0xf8] sm:$0xff] %v820
        %p853 = scmp.eq.s32.totalorder %s21, 1
        // Predicated region
        $region60: #{gcn_forward.5} parent=50 // pred_check
          %p854 = pneg %p853
        $region61: #{gcn_forward.5} parent=50 // pred_check_branch
          %856 = sbr.rel (%p854) target = $region63
        $region62: #{gcn_forward.5} parent=50 // pred_region
          %v857 = vld [vmem:[#allocation2] sm:$0xff]
          %v858 = vld [vmem:[#allocation2 + $0x8] sm:$0xff]
          %v859 = vld [vmem:[#allocation2 + $0x10] sm:$0xff]
          %v860 = vld [vmem:[#allocation2 + $0x18] sm:$0xff]
          %v861 = vld [vmem:[#allocation2 + $0x20] sm:$0xff]
          %v862 = vld [vmem:[#allocation2 + $0x28] sm:$0xff]
          %v863 = vld [vmem:[#allocation2 + $0x30] sm:$0xff]
          %v864 = vld [vmem:[#allocation2 + $0x38] sm:$0xff]
          %v865 = vld [vmem:[#allocation2 + $0x40] sm:$0xff]
          %v866 = vld [vmem:[#allocation2 + $0x48] sm:$0xff]
          %v867 = vld [vmem:[#allocation2 + $0x50] sm:$0xff]
          %v868 = vld [vmem:[#allocation2 + $0x58] sm:$0xff]
          %v869 = vld [vmem:[#allocation2 + $0x60] sm:$0xff]
          %v870 = vld [vmem:[#allocation2 + $0x68] sm:$0xff]
          %v871 = vld [vmem:[#allocation2 + $0x70] sm:$0xff]
          %v872 = vld [vmem:[#allocation2 + $0x78] sm:$0xff]
          %v873 = vld [vmem:[#allocation2 + $0x80] sm:$0xff]
          %v874 = vld [vmem:[#allocation2 + $0x88] sm:$0xff]
          %v875 = vld [vmem:[#allocation2 + $0x90] sm:$0xff]
          %v876 = vld [vmem:[#allocation2 + $0x98] sm:$0xff]
          %v877 = vld [vmem:[#allocation2 + $0xa0] sm:$0xff]
          %v878 = vld [vmem:[#allocation2 + $0xa8] sm:$0xff]
          %v879 = vld [vmem:[#allocation2 + $0xb0] sm:$0xff]
          %v880 = vld [vmem:[#allocation2 + $0xb8] sm:$0xff]
          %v881 = vld [vmem:[#allocation2 + $0xc0] sm:$0xff]
          %v882 = vld [vmem:[#allocation2 + $0xc8] sm:$0xff]
          %v883 = vld [vmem:[#allocation2 + $0xd0] sm:$0xff]
          %v884 = vld [vmem:[#allocation2 + $0xd8] sm:$0xff]
          %v885 = vld [vmem:[#allocation2 + $0xe0] sm:$0xff]
          %v886 = vld [vmem:[#allocation2 + $0xe8] sm:$0xff]
          %v887 = vld [vmem:[#allocation2 + $0xf0] sm:$0xff]
          %v888 = vld [vmem:[#allocation2 + $0xf8] sm:$0xff]
          %v889 = vld [vmem:[%s2] sm:$0x1]
          %v891 = vlaneseq
          %v892 = vshrl.u32 %v891, 7
          %v893 = vsub.s32 0, %v892
          %v894 = vrot.slane %v889, %v893
          %v896 = vadd.f32 %v857, %v894
          %v897 = vadd.f32 %v858, %v894
          %v898 = vadd.f32 %v859, %v894
          %v899 = vadd.f32 %v860, %v894
          %v900 = vadd.f32 %v861, %v894
          %v901 = vadd.f32 %v862, %v894
          %v902 = vadd.f32 %v863, %v894
          %v903 = vadd.f32 %v864, %v894
          %v904 = vadd.f32 %v865, %v894
          %v905 = vadd.f32 %v866, %v894
          %v906 = vadd.f32 %v867, %v894
          %v907 = vadd.f32 %v868, %v894
          %v908 = vadd.f32 %v869, %v894
          %v909 = vadd.f32 %v870, %v894
          %v910 = vadd.f32 %v871, %v894
          %v911 = vadd.f32 %v872, %v894
          %v912 = vadd.f32 %v873, %v894
          %v913 = vadd.f32 %v874, %v894
          %v914 = vadd.f32 %v875, %v894
          %v915 = vadd.f32 %v876, %v894
          %v916 = vadd.f32 %v877, %v894
          %v917 = vadd.f32 %v878, %v894
          %v918 = vadd.f32 %v879, %v894
          %v919 = vadd.f32 %v880, %v894
          %v920 = vadd.f32 %v881, %v894
          %v921 = vadd.f32 %v882, %v894
          %v922 = vadd.f32 %v883, %v894
          %v923 = vadd.f32 %v884, %v894
          %v924 = vadd.f32 %v885, %v894
          %v925 = vadd.f32 %v886, %v894
          %v926 = vadd.f32 %v887, %v894
          %v927 = vadd.f32 %v888, %v894
          %928 = vst [vmem:[%s392] sm:$0xff] %v896
          %929 = vst [vmem:[%s392 + $0x8] sm:$0xff] %v897
          %930 = vst [vmem:[%s392 + $0x10] sm:$0xff] %v898
          %931 = vst [vmem:[%s392 + $0x18] sm:$0xff] %v899
          %932 = vst [vmem:[%s392 + $0x20] sm:$0xff] %v900
          %933 = vst [vmem:[%s392 + $0x28] sm:$0xff] %v901
          %934 = vst [vmem:[%s392 + $0x30] sm:$0xff] %v902
          %935 = vst [vmem:[%s392 + $0x38] sm:$0xff] %v903
          %936 = vst [vmem:[%s392 + $0x40] sm:$0xff] %v904
          %937 = vst [vmem:[%s392 + $0x48] sm:$0xff] %v905
          %938 = vst [vmem:[%s392 + $0x50] sm:$0xff] %v906
          %939 = vst [vmem:[%s392 + $0x58] sm:$0xff] %v907
          %940 = vst [vmem:[%s392 + $0x60] sm:$0xff] %v908
          %941 = vst [vmem:[%s392 + $0x68] sm:$0xff] %v909
          %942 = vst [vmem:[%s392 + $0x70] sm:$0xff] %v910
          %943 = vst [vmem:[%s392 + $0x78] sm:$0xff] %v911
          %944 = vst [vmem:[%s392 + $0x80] sm:$0xff] %v912
          %945 = vst [vmem:[%s392 + $0x88] sm:$0xff] %v913
          %946 = vst [vmem:[%s392 + $0x90] sm:$0xff] %v914
          %947 = vst [vmem:[%s392 + $0x98] sm:$0xff] %v915
          %948 = vst [vmem:[%s392 + $0xa0] sm:$0xff] %v916
          %949 = vst [vmem:[%s392 + $0xa8] sm:$0xff] %v917
          %950 = vst [vmem:[%s392 + $0xb0] sm:$0xff] %v918
          %951 = vst [vmem:[%s392 + $0xb8] sm:$0xff] %v919
          %952 = vst [vmem:[%s392 + $0xc0] sm:$0xff] %v920
          %953 = vst [vmem:[%s392 + $0xc8] sm:$0xff] %v921
          %954 = vst [vmem:[%s392 + $0xd0] sm:$0xff] %v922
          %955 = vst [vmem:[%s392 + $0xd8] sm:$0xff] %v923
          %956 = vst [vmem:[%s392 + $0xe0] sm:$0xff] %v924
          %957 = vst [vmem:[%s392 + $0xe8] sm:$0xff] %v925
          %958 = vst [vmem:[%s392 + $0xf0] sm:$0xff] %v926
          %959 = vst [vmem:[%s392 + $0xf8] sm:$0xff] %v927
          %v960 = vmax.f32 %v896, 0.0
          %v961 = vmax.f32 %v897, 0.0
          %v962 = vmax.f32 %v898, 0.0
          %v963 = vmax.f32 %v899, 0.0
          %v964 = vmax.f32 %v900, 0.0
          %v965 = vmax.f32 %v901, 0.0
          %v966 = vmax.f32 %v902, 0.0
          %v967 = vmax.f32 %v903, 0.0
          %v968 = vmax.f32 %v904, 0.0
          %v969 = vmax.f32 %v905, 0.0
          %v970 = vmax.f32 %v906, 0.0
          %v971 = vmax.f32 %v907, 0.0
          %v972 = vmax.f32 %v908, 0.0
          %v973 = vmax.f32 %v909, 0.0
          %v974 = vmax.f32 %v910, 0.0
          %v975 = vmax.f32 %v911, 0.0
          %v976 = vmax.f32 %v912, 0.0
          %v977 = vmax.f32 %v913, 0.0
          %v978 = vmax.f32 %v914, 0.0
          %v979 = vmax.f32 %v915, 0.0
          %v980 = vmax.f32 %v916, 0.0
          %v981 = vmax.f32 %v917, 0.0
          %v982 = vmax.f32 %v918, 0.0
          %v983 = vmax.f32 %v919, 0.0
          %v984 = vmax.f32 %v920, 0.0
          %v985 = vmax.f32 %v921, 0.0
          %v986 = vmax.f32 %v922, 0.0
          %v987 = vmax.f32 %v923, 0.0
          %v988 = vmax.f32 %v924, 0.0
          %v989 = vmax.f32 %v925, 0.0
          %v990 = vmax.f32 %v926, 0.0
          %v991 = vmax.f32 %v927, 0.0
          %992 = vst [vmem:[%s398] sm:$0xff] %v960
          %993 = vst [vmem:[%s398 + $0x8] sm:$0xff] %v961
          %994 = vst [vmem:[%s398 + $0x10] sm:$0xff] %v962
          %995 = vst [vmem:[%s398 + $0x18] sm:$0xff] %v963
          %996 = vst [vmem:[%s398 + $0x20] sm:$0xff] %v964
          %997 = vst [vmem:[%s398 + $0x28] sm:$0xff] %v965
          %998 = vst [vmem:[%s398 + $0x30] sm:$0xff] %v966
          %999 = vst [vmem:[%s398 + $0x38] sm:$0xff] %v967
          %1000 = vst [vmem:[%s398 + $0x40] sm:$0xff] %v968
          %1001 = vst [vmem:[%s398 + $0x48] sm:$0xff] %v969
          %1002 = vst [vmem:[%s398 + $0x50] sm:$0xff] %v970
          %1003 = vst [vmem:[%s398 + $0x58] sm:$0xff] %v971
          %1004 = vst [vmem:[%s398 + $0x60] sm:$0xff] %v972
          %1005 = vst [vmem:[%s398 + $0x68] sm:$0xff] %v973
          %1006 = vst [vmem:[%s398 + $0x70] sm:$0xff] %v974
          %1007 = vst [vmem:[%s398 + $0x78] sm:$0xff] %v975
          %1008 = vst [vmem:[%s398 + $0x80] sm:$0xff] %v976
          %1009 = vst [vmem:[%s398 + $0x88] sm:$0xff] %v977
          %1010 = vst [vmem:[%s398 + $0x90] sm:$0xff] %v978
          %1011 = vst [vmem:[%s398 + $0x98] sm:$0xff] %v979
          %1012 = vst [vmem:[%s398 + $0xa0] sm:$0xff] %v980
          %1013 = vst [vmem:[%s398 + $0xa8] sm:$0xff] %v981
          %1014 = vst [vmem:[%s398 + $0xb0] sm:$0xff] %v982
          %1015 = vst [vmem:[%s398 + $0xb8] sm:$0xff] %v983
          %1016 = vst [vmem:[%s398 + $0xc0] sm:$0xff] %v984
          %1017 = vst [vmem:[%s398 + $0xc8] sm:$0xff] %v985
          %1018 = vst [vmem:[%s398 + $0xd0] sm:$0xff] %v986
          %1019 = vst [vmem:[%s398 + $0xd8] sm:$0xff] %v987
          %1020 = vst [vmem:[%s398 + $0xe0] sm:$0xff] %v988
          %1021 = vst [vmem:[%s398 + $0xe8] sm:$0xff] %v989
          %1022 = vst [vmem:[%s398 + $0xf0] sm:$0xff] %v990
          %1023 = vst [vmem:[%s398 + $0xf8] sm:$0xff] %v991
        $region63: #{gcn_forward.5} parent=50 // pred_fallthru
          _
        %s1024 = smul.u32 32, %s20
        %p1025 = scmp.lt.s32.totalorder %s1024, 63
        %s1026 = scalar_select %p1025, %s1024, 63
        %s1027 = smul.addr %s1026, 8
        %s1028 = scalar_lea.vmem %s3, %s1027
        %s1029 = smul.u32 32, %s20
        %p1030 = scmp.lt.s32.totalorder %s1029, 63
        %s1031 = scalar_select %p1030, %s1029, 63
        %s1032 = smul.addr %s1031, 8
        %s1033 = scalar_lea.vmem %s4, %s1032
        // Predicated region
        $region64: #{gcn_forward.5} parent=50 // pred_check
          %p1034 = pneg %p121
        $region65: #{gcn_forward.5} parent=50 // pred_check_branch
          %1036 = sbr.rel (%p1034) target = $region67
        $region66: #{gcn_forward.5} parent=50 // pred_region
          %s1037 = smul.u32 32, %s20
        $region67: #{gcn_forward.5} parent=50 // pred_fallthru
          _
        // Predicated region
        $region68: #{gcn_forward.5} parent=50 // pred_check
          %p1038 = pneg %p147
        $region69: #{gcn_forward.5} parent=50 // pred_check_branch
          %1040 = sbr.rel (%p1038) target = $region71
        $region70: #{gcn_forward.5} parent=50 // pred_region
          %s1041 = smul.u32 32, %s20
        $region71: #{gcn_forward.5} parent=50 // pred_fallthru
          _
      $region51: #{gcn_forward.5} parent=5 // pred_fallthru
        _
      %p1042 = scmp.le.s32.totalorder 2, %s11
      // Predicated region
      $region72: #{gcn_forward.5} parent=5 // pred_check
        %p1043 = pneg %p1042
      $region73: #{gcn_forward.5} parent=5 // pred_check_branch
        %1045 = sbr.rel (%p1043) target = $region75
      $region74: #{gcn_forward.5} parent=5 // pred_region
        %s1046 = ssub.s32 %s11, 2
        // Predicated region
        $region76: #{gcn_forward.5} parent=74 // pred_check
          %p1047 = pneg %p127
        $region77: #{gcn_forward.5} parent=74 // pred_check_branch
          %1049 = sbr.rel (%p1047) target = $region79
        $region78: #{gcn_forward.5} parent=74 // pred_region
          %s1050 = smul.u32 32, %s22
          %p1051 = scmp.lt.s32.totalorder %s1050, 63
          %s1052 = scalar_select %p1051, %s1050, 63
          %s1053 = smul.addr %s1052, 8
          %s1054 = scalar_lea.vmem %s3, %s1053
        $region79: #{gcn_forward.5} parent=74 // pred_fallthru
          _
        // Predicated region
        $region80: #{gcn_forward.5} parent=74 // pred_check
          %p1055 = pneg %p153
        $region81: #{gcn_forward.5} parent=74 // pred_check_branch
          %1057 = sbr.rel (%p1055) target = $region83
        $region82: #{gcn_forward.5} parent=74 // pred_region
          %s1058 = smul.u32 32, %s22
          %p1059 = scmp.lt.s32.totalorder %s1058, 63
          %s1060 = scalar_select %p1059, %s1058, 63
          %s1061 = smul.addr %s1060, 8
          %s1062 = scalar_lea.vmem %s4, %s1061
        $region83: #{gcn_forward.5} parent=74 // pred_fallthru
          _
      $region75: #{gcn_forward.5} parent=5 // pred_fallthru
        _
    $region6: #{gcn_forward.5} parent=1 // loop_footer
      %s15 = sadd.s32 1, %s11
    $region7: #{gcn_forward.5} parent=1 // loop_footer_branch
      %10 = sbr.rel target = $region3
    $region8: #{gcn_forward.5} parent=1 // loop_exit
      _

// kernel: gcn_forward.7
$region0: #{gcn_forward.7}
  #allocation0 [shape = 'u32[]', space=smem, size = 0x4, offset = 0x4, fixed_abs, tag = 'smem constant byte address 0x4 - core index']
  #allocation1 [shape = 'u32[144,128]{1,0:T(1,128)}', space=vmem, size = 0x12000, scoped, tag = 'internal scratch']
  #allocation2 [shape = 'f32[256,128]{1,0:T(8,128)}', space=vmem, size = 0x20000, scoped, tag = 'scratch operand']
  %s0 = inlined_call_operand.vmem [shape: f32[512,512], index: 0, kind: input, shape index: {}]
  %s1 = inlined_call_operand.vmem [shape: f32[512,128], index: 1, kind: input, shape index: {}]
  %s2 = inlined_call_operand.vmem [shape: f32[1,128], index: 2, kind: input, shape index: {}]
  %s3 = inlined_call_operand.vmem [shape: f32[512,128], index: 3, kind: output, shape index: {0}]
  %s4 = inlined_call_operand.vmem [shape: f32[512,128], index: 4, kind: output, shape index: {1}]
  %5 = xla_tuple %s3, %s4
  %s6 = sld [smem:[#allocation0]]
  $region84: #{gcn_forward.7} parent=0
    _
  %s8 = ssub.s32 1, %s6
  %s9 = scalar_select 0, %s8, %s6
  $region1: #{gcn_forward.7} parent=0
    #allocation3 [shape = 'u8[524288]{0}', space=vmem, size = 0x80000, scoped, tag = 'input window, operand 0']
    loop: start=0, step=1, limit=6
    $region2: #{gcn_forward.7} parent=1 // loop_pre_header
      _
    $region3: #{gcn_forward.7} parent=1 // loop_header
      %s11 = sphi 0, %s15
      %p12 = scmp.ge.s32.totalorder %s11, 6
      %s18 = sphi 0, %s30
      %s19 = sphi 0, %s26
      %s20 = sphi 0, %s18
      %s21 = sphi 0, %s19
      %s22 = sphi 0, %s20
      %s23 = sphi 0, %s21
      %s35 = sphi 0, %s37
      %s38 = sphi 0, %s35
      %s39 = sphi 0, %s38
      %s55 = sphi 0, %s39
      %s61 = sphi 0, %s63
      %s64 = sphi 0, %s61
      %s65 = sphi 0, %s64
      %s81 = sphi 0, %s65
      %s85 = sphi 0, %s85
      %s87 = sphi 0, %s85
      %s88 = sphi 0, %s87
      %s102 = sphi 0, %s88
      %s108 = sphi 0, %s110
      %s111 = sphi 0, %s108
      %s112 = sphi 0, %s111
      %s128 = sphi 0, %s112
      %s134 = sphi 0, %s136
      %s137 = sphi 0, %s134
      %s138 = sphi 0, %s137
      %s154 = sphi 0, %s138
    $region4: #{gcn_forward.7} parent=1 // loop_header_branch
      %14 = sbr.rel (%p12) target = $region8
    $region5: #{gcn_forward.7} parent=1 // loop_body
      %s16 = ssub.s32 %s11, 1
      %s17 = ssub.s32 %s11, 2
      %s24 = sadd.s32 1, %s19
      %p25 = scmp.ge.s32.totalorder %s24, 2
      %s26 = scalar_select %p25, 0, %s24
      %s27 = sadd.s32 1, %s18
      %s28 = scalar_select %p25, %s27, %s18
      %p29 = scmp.ge.s32.totalorder %s28, 2
      %s30 = scalar_select %p29, 0, %s28
      %s31 = ssub.s32 %s18, %s30
      %s32 = ssub.s32 %s19, %s26
      %s33 = sor.u32 %s31, %s32
      %p34 = scmp.eq.s32.totalorder %s33, 0
      %s36 = sadd.s32 %s35, 1
      %s37 = scalar_select %p34, %s35, %s36
      %p40 = pneg %p34
      %p41 = scmp.eq.s32.totalorder %s11, 3
      %p42 = por %p40, %p41
      %p43 = scmp.ne.s32.totalorder %s35, %s38
      %p44 = scmp.eq.s32.totalorder %s11, 0
      %p45 = por %p43, %p44
      %p46 = scmp.ne.s32.totalorder %s35, %s38
      %p47 = scmp.eq.s32.totalorder %s16, 3
      %p48 = por %p46, %p47
      %p49 = scmp.ne.s32.totalorder %s38, %s39
      %p50 = scmp.eq.s32.totalorder %s16, 0
      %p51 = por %p49, %p50
      %p52 = scmp.ne.s32.totalorder %s38, %s39
      %p53 = scmp.eq.s32.totalorder %s17, 3
      %p54 = por %p52, %p53
      %p56 = scmp.ne.s32.totalorder %s39, %s55
      %p57 = scmp.eq.s32.totalorder %s17, 0
      %p58 = por %p56, %p57
      %s59 = ssub.s32 %s19, %s26
      %p60 = scmp.eq.s32.totalorder %s59, 0
      %s62 = sadd.s32 %s61, 1
      %s63 = scalar_select %p60, %s61, %s62
      %p66 = pneg %p60
      %p67 = scmp.eq.s32.totalorder %s11, 3
      %p68 = por %p66, %p67
      %p69 = scmp.ne.s32.totalorder %s61, %s64
      %p70 = scmp.eq.s32.totalorder %s11, 0
      %p71 = por %p69, %p70
      %p72 = scmp.ne.s32.totalorder %s61, %s64
      %p73 = scmp.eq.s32.totalorder %s16, 3
      %p74 = por %p72, %p73
      %p75 = scmp.ne.s32.totalorder %s64, %s65
      %p76 = scmp.eq.s32.totalorder %s16, 0
      %p77 = por %p75, %p76
      %p78 = scmp.ne.s32.totalorder %s64, %s65
      %p79 = scmp.eq.s32.totalorder %s17, 3
      %p80 = por %p78, %p79
      %p82 = scmp.ne.s32.totalorder %s65, %s81
      %p83 = scmp.eq.s32.totalorder %s17, 0
      %p84 = por %p82, %p83
      %s86 = sadd.s32 %s85, 1
      %p89 = scmp.eq.s32.totalorder %s11, 3
      %p90 = scmp.ne.s32.totalorder %s85, %s87
      %p91 = scmp.eq.s32.totalorder %s11, 0
      %p92 = por %p90, %p91
      %p93 = scmp.ne.s32.totalorder %s85, %s87
      %p94 = scmp.eq.s32.totalorder %s16, 3
      %p95 = por %p93, %p94
      %p96 = scmp.ne.s32.totalorder %s87, %s88
      %p97 = scmp.eq.s32.totalorder %s16, 0
      %p98 = por %p96, %p97
      %p99 = scmp.ne.s32.totalorder %s87, %s88
      %p100 = scmp.eq.s32.totalorder %s17, 3
      %p101 = por %p99, %p100
      %p103 = scmp.ne.s32.totalorder %s88, %s102
      %p104 = scmp.eq.s32.totalorder %s17, 0
      %p105 = por %p103, %p104
      %s106 = ssub.s32 %s18, %s30
      %p107 = scmp.eq.s32.totalorder %s106, 0
      %s109 = sadd.s32 %s108, 1
      %s110 = scalar_select %p107, %s108, %s109
      %p113 = pneg %p107
      %p114 = scmp.eq.s32.totalorder %s11, 3
      %p115 = por %p113, %p114
      %p116 = scmp.ne.s32.totalorder %s108, %s111
      %p117 = scmp.eq.s32.totalorder %s11, 0
      %p118 = por %p116, %p117
      %p119 = scmp.ne.s32.totalorder %s108, %s111
      %p120 = scmp.eq.s32.totalorder %s16, 3
      %p121 = por %p119, %p120
      %p122 = scmp.ne.s32.totalorder %s111, %s112
      %p123 = scmp.eq.s32.totalorder %s16, 0
      %p124 = por %p122, %p123
      %p125 = scmp.ne.s32.totalorder %s111, %s112
      %p126 = scmp.eq.s32.totalorder %s17, 3
      %p127 = por %p125, %p126
      %p129 = scmp.ne.s32.totalorder %s112, %s128
      %p130 = scmp.eq.s32.totalorder %s17, 0
      %p131 = por %p129, %p130
      %s132 = ssub.s32 %s18, %s30
      %p133 = scmp.eq.s32.totalorder %s132, 0
      %s135 = sadd.s32 %s134, 1
      %s136 = scalar_select %p133, %s134, %s135
      %p139 = pneg %p133
      %p140 = scmp.eq.s32.totalorder %s11, 3
      %p141 = por %p139, %p140
      %p142 = scmp.ne.s32.totalorder %s134, %s137
      %p143 = scmp.eq.s32.totalorder %s11, 0
      %p144 = por %p142, %p143
      %p145 = scmp.ne.s32.totalorder %s134, %s137
      %p146 = scmp.eq.s32.totalorder %s16, 3
      %p147 = por %p145, %p146
      %p148 = scmp.ne.s32.totalorder %s137, %s138
      %p149 = scmp.eq.s32.totalorder %s16, 0
      %p150 = por %p148, %p149
      %p151 = scmp.ne.s32.totalorder %s137, %s138
      %p152 = scmp.eq.s32.totalorder %s17, 3
      %p153 = por %p151, %p152
      %p155 = scmp.ne.s32.totalorder %s138, %s154
      %p156 = scmp.eq.s32.totalorder %s17, 0
      %p157 = por %p155, %p156
      %p158 = scmp.le.s32.totalorder 1, %s11
      %p159 = scmp.lt.s32.totalorder %s11, 5
      %p160 = pnand %p158, %p159
      %p161 = pneg %p160
      // Predicated region
      $region9: #{gcn_forward.7} parent=5 // pred_check
        _
      $region10: #{gcn_forward.7} parent=5 // pred_check_branch
        %163 = sbr.rel (%p160) target = $region12
      $region11: #{gcn_forward.7} parent=5 // pred_region
        %s164 = ssub.s32 %s11, 1
        // Predicated region
        $region13: #{gcn_forward.7} parent=11 // pred_check
          %p165 = pneg %p98
        $region14: #{gcn_forward.7} parent=11 // pred_check_branch
          %167 = sbr.rel (%p165) target = $region16
        $region15: #{gcn_forward.7} parent=11 // pred_region
          _
        $region16: #{gcn_forward.7} parent=11 // pred_fallthru
          _
      $region12: #{gcn_forward.7} parent=5 // pred_fallthru
        _
      %p168 = scmp.lt.s32.totalorder %s11, 4
      // Predicated region
      $region17: #{gcn_forward.7} parent=5 // pred_check
        %p169 = pneg %p168
      $region18: #{gcn_forward.7} parent=5 // pred_check_branch
        %171 = sbr.rel (%p169) target = $region20
      $region19: #{gcn_forward.7} parent=5 // pred_region
        // Predicated region
        $region21: #{gcn_forward.7} parent=19 // pred_check
          %p172 = pneg %p45
        $region22: #{gcn_forward.7} parent=19 // pred_check_branch
          %174 = sbr.rel (%p172) target = $region24
        $region23: #{gcn_forward.7} parent=19 // pred_region
          %s175 = sand.u32 %s35, 1
          %s176 = sand.u32 %s35, 1
          %s177 = smul.addr %s176, 512
          %s178 = scalar_lea.vmem [#allocation3], %s177
          %s179 = smul.u32 32, %s18
          %s180 = smul.u32 2, %s19
          %s181 = smul.addr %s179, 4
          %s182 = sadd.s32 %s180, %s181
          %s183 = smul.addr %s182, 8
          %s184 = scalar_lea.vmem %s0, %s183
          // Predicated region
          $region25: #{gcn_forward.7} parent=23 // pred_check
            _
          $region26: #{gcn_forward.7} parent=23 // pred_check_branch
            %186 = sbr.rel (0) target = $region28
          $region27: #{gcn_forward.7} parent=23 // pred_region
            // Predicated region
            $region29: #{gcn_forward.7} parent=27 // pred_check
              _
            $region30: #{gcn_forward.7} parent=27 // pred_check_branch
              %188 = sbr.rel (0) target = $region32
            $region31: #{gcn_forward.7} parent=27 // pred_region
              loop: start=0, step=1, limit=1
              $region33: #{gcn_forward.7} parent=31 // loop_pre_header
                _
              $region34: #{gcn_forward.7} parent=31 // loop_header
                %s190 = sphi 0, %s194
                %p191 = scmp.ge.s32.totalorder %s190, 1
                %s195 = sphi %s184, %s184
                %s196 = sphi %s178, %s178
              $region35: #{gcn_forward.7} parent=31 // loop_header_branch
                %193 = sbr.rel (%p191) target = $region39
              $region36: #{gcn_forward.7} parent=31 // loop_body
                %v197 = vld [vmem:[%s195] sm:$0xff]
                %198 = vst [vmem:[%s196] sm:$0xff] %v197
                %v199 = vld [vmem:[%s195 + $0x8] sm:$0xff]
                %200 = vst [vmem:[%s196 + $0x8] sm:$0xff] %v199
                %v201 = vld [vmem:[%s195 + $0x20] sm:$0xff]
                %202 = vst [vmem:[%s196 + $0x10] sm:$0xff] %v201
                %v203 = vld [vmem:[%s195 + $0x28] sm:$0xff]
                %204 = vst [vmem:[%s196 + $0x18] sm:$0xff] %v203
                %v205 = vld [vmem:[%s195 + $0x40] sm:$0xff]
                %206 = vst [vmem:[%s196 + $0x20] sm:$0xff] %v205
                %v207 = vld [vmem:[%s195 + $0x48] sm:$0xff]
                %208 = vst [vmem:[%s196 + $0x28] sm:$0xff] %v207
                %v209 = vld [vmem:[%s195 + $0x60] sm:$0xff]
                %210 = vst [vmem:[%s196 + $0x30] sm:$0xff] %v209
                %v211 = vld [vmem:[%s195 + $0x68] sm:$0xff]
                %212 = vst [vmem:[%s196 + $0x38] sm:$0xff] %v211
                %v213 = vld [vmem:[%s195 + $0x80] sm:$0xff]
                %214 = vst [vmem:[%s196 + $0x40] sm:$0xff] %v213
                %v215 = vld [vmem:[%s195 + $0x88] sm:$0xff]
                %216 = vst [vmem:[%s196 + $0x48] sm:$0xff] %v215
                %v217 = vld [vmem:[%s195 + $0xa0] sm:$0xff]
                %218 = vst [vmem:[%s196 + $0x50] sm:$0xff] %v217
                %v219 = vld [vmem:[%s195 + $0xa8] sm:$0xff]
                %220 = vst [vmem:[%s196 + $0x58] sm:$0xff] %v219
                %v221 = vld [vmem:[%s195 + $0xc0] sm:$0xff]
                %222 = vst [vmem:[%s196 + $0x60] sm:$0xff] %v221
                %v223 = vld [vmem:[%s195 + $0xc8] sm:$0xff]
                %224 = vst [vmem:[%s196 + $0x68] sm:$0xff] %v223
                %v225 = vld [vmem:[%s195 + $0xe0] sm:$0xff]
                %226 = vst [vmem:[%s196 + $0x70] sm:$0xff] %v225
                %v227 = vld [vmem:[%s195 + $0xe8] sm:$0xff]
                %228 = vst [vmem:[%s196 + $0x78] sm:$0xff] %v227
                %v229 = vld [vmem:[%s195 + $0x100] sm:$0xff]
                %230 = vst [vmem:[%s196 + $0x80] sm:$0xff] %v229
                %v231 = vld [vmem:[%s195 + $0x108] sm:$0xff]
                %232 = vst [vmem:[%s196 + $0x88] sm:$0xff] %v231
                %v233 = vld [vmem:[%s195 + $0x120] sm:$0xff]
                %234 = vst [vmem:[%s196 + $0x90] sm:$0xff] %v233
                %v235 = vld [vmem:[%s195 + $0x128] sm:$0xff]
                %236 = vst [vmem:[%s196 + $0x98] sm:$0xff] %v235
                %v237 = vld [vmem:[%s195 + $0x140] sm:$0xff]
                %238 = vst [vmem:[%s196 + $0xa0] sm:$0xff] %v237
                %v239 = vld [vmem:[%s195 + $0x148] sm:$0xff]
                %240 = vst [vmem:[%s196 + $0xa8] sm:$0xff] %v239
                %v241 = vld [vmem:[%s195 + $0x160] sm:$0xff]
                %242 = vst [vmem:[%s196 + $0xb0] sm:$0xff] %v241
                %v243 = vld [vmem:[%s195 + $0x168] sm:$0xff]
                %244 = vst [vmem:[%s196 + $0xb8] sm:$0xff] %v243
                %v245 = vld [vmem:[%s195 + $0x180] sm:$0xff]
                %246 = vst [vmem:[%s196 + $0xc0] sm:$0xff] %v245
                %v247 = vld [vmem:[%s195 + $0x188] sm:$0xff]
                %248 = vst [vmem:[%s196 + $0xc8] sm:$0xff] %v247
                %v249 = vld [vmem:[%s195 + $0x1a0] sm:$0xff]
                %250 = vst [vmem:[%s196 + $0xd0] sm:$0xff] %v249
                %v251 = vld [vmem:[%s195 + $0x1a8] sm:$0xff]
                %252 = vst [vmem:[%s196 + $0xd8] sm:$0xff] %v251
                %v253 = vld [vmem:[%s195 + $0x1c0] sm:$0xff]
                %254 = vst [vmem:[%s196 + $0xe0] sm:$0xff] %v253
                %v255 = vld [vmem:[%s195 + $0x1c8] sm:$0xff]
                %256 = vst [vmem:[%s196 + $0xe8] sm:$0xff] %v255
                %v257 = vld [vmem:[%s195 + $0x1e0] sm:$0xff]
                %258 = vst [vmem:[%s196 + $0xf0] sm:$0xff] %v257
                %v259 = vld [vmem:[%s195 + $0x1e8] sm:$0xff]
                %260 = vst [vmem:[%s196 + $0xf8] sm:$0xff] %v259
                %v261 = vld [vmem:[%s195 + $0x200] sm:$0xff]
                %262 = vst [vmem:[%s196 + $0x100] sm:$0xff] %v261
                %v263 = vld [vmem:[%s195 + $0x208] sm:$0xff]
                %264 = vst [vmem:[%s196 + $0x108] sm:$0xff] %v263
                %v265 = vld [vmem:[%s195 + $0x220] sm:$0xff]
                %266 = vst [vmem:[%s196 + $0x110] sm:$0xff] %v265
                %v267 = vld [vmem:[%s195 + $0x228] sm:$0xff]
                %268 = vst [vmem:[%s196 + $0x118] sm:$0xff] %v267
                %v269 = vld [vmem:[%s195 + $0x240] sm:$0xff]
                %270 = vst [vmem:[%s196 + $0x120] sm:$0xff] %v269
                %v271 = vld [vmem:[%s195 + $0x248] sm:$0xff]
                %272 = vst [vmem:[%s196 + $0x128] sm:$0xff] %v271
                %v273 = vld [vmem:[%s195 + $0x260] sm:$0xff]
                %274 = vst [vmem:[%s196 + $0x130] sm:$0xff] %v273
                %v275 = vld [vmem:[%s195 + $0x268] sm:$0xff]
                %276 = vst [vmem:[%s196 + $0x138] sm:$0xff] %v275
                %v277 = vld [vmem:[%s195 + $0x280] sm:$0xff]
                %278 = vst [vmem:[%s196 + $0x140] sm:$0xff] %v277
                %v279 = vld [vmem:[%s195 + $0x288] sm:$0xff]
                %280 = vst [vmem:[%s196 + $0x148] sm:$0xff] %v279
                %v281 = vld [vmem:[%s195 + $0x2a0] sm:$0xff]
                %282 = vst [vmem:[%s196 + $0x150] sm:$0xff] %v281
                %v283 = vld [vmem:[%s195 + $0x2a8] sm:$0xff]
                %284 = vst [vmem:[%s196 + $0x158] sm:$0xff] %v283
                %v285 = vld [vmem:[%s195 + $0x2c0] sm:$0xff]
                %286 = vst [vmem:[%s196 + $0x160] sm:$0xff] %v285
                %v287 = vld [vmem:[%s195 + $0x2c8] sm:$0xff]
                %288 = vst [vmem:[%s196 + $0x168] sm:$0xff] %v287
                %v289 = vld [vmem:[%s195 + $0x2e0] sm:$0xff]
                %290 = vst [vmem:[%s196 + $0x170] sm:$0xff] %v289
                %v291 = vld [vmem:[%s195 + $0x2e8] sm:$0xff]
                %292 = vst [vmem:[%s196 + $0x178] sm:$0xff] %v291
                %v293 = vld [vmem:[%s195 + $0x300] sm:$0xff]
                %294 = vst [vmem:[%s196 + $0x180] sm:$0xff] %v293
                %v295 = vld [vmem:[%s195 + $0x308] sm:$0xff]
                %296 = vst [vmem:[%s196 + $0x188] sm:$0xff] %v295
                %v297 = vld [vmem:[%s195 + $0x320] sm:$0xff]
                %298 = vst [vmem:[%s196 + $0x190] sm:$0xff] %v297
                %v299 = vld [vmem:[%s195 + $0x328] sm:$0xff]
                %300 = vst [vmem:[%s196 + $0x198] sm:$0xff] %v299
                %v301 = vld [vmem:[%s195 + $0x340] sm:$0xff]
                %302 = vst [vmem:[%s196 + $0x1a0] sm:$0xff] %v301
                %v303 = vld [vmem:[%s195 + $0x348] sm:$0xff]
                %304 = vst [vmem:[%s196 + $0x1a8] sm:$0xff] %v303
                %v305 = vld [vmem:[%s195 + $0x360] sm:$0xff]
                %306 = vst [vmem:[%s196 + $0x1b0] sm:$0xff] %v305
                %v307 = vld [vmem:[%s195 + $0x368] sm:$0xff]
                %308 = vst [vmem:[%s196 + $0x1b8] sm:$0xff] %v307
                %v309 = vld [vmem:[%s195 + $0x380] sm:$0xff]
                %310 = vst [vmem:[%s196 + $0x1c0] sm:$0xff] %v309
                %v311 = vld [vmem:[%s195 + $0x388] sm:$0xff]
                %312 = vst [vmem:[%s196 + $0x1c8] sm:$0xff] %v311
                %v313 = vld [vmem:[%s195 + $0x3a0] sm:$0xff]
                %314 = vst [vmem:[%s196 + $0x1d0] sm:$0xff] %v313
                %v315 = vld [vmem:[%s195 + $0x3a8] sm:$0xff]
                %316 = vst [vmem:[%s196 + $0x1d8] sm:$0xff] %v315
                %v317 = vld [vmem:[%s195 + $0x3c0] sm:$0xff]
                %318 = vst [vmem:[%s196 + $0x1e0] sm:$0xff] %v317
                %v319 = vld [vmem:[%s195 + $0x3c8] sm:$0xff]
                %320 = vst [vmem:[%s196 + $0x1e8] sm:$0xff] %v319
                %v321 = vld [vmem:[%s195 + $0x3e0] sm:$0xff]
                %322 = vst [vmem:[%s196 + $0x1f0] sm:$0xff] %v321
                %v323 = vld [vmem:[%s195 + $0x3e8] sm:$0xff]
                %324 = vst [vmem:[%s196 + $0x1f8] sm:$0xff] %v323
              $region37: #{gcn_forward.7} parent=31 // loop_footer
                %s194 = sadd.s32 1, %s190
              $region38: #{gcn_forward.7} parent=31 // loop_footer_branch
                %189 = sbr.rel target = $region34
              $region39: #{gcn_forward.7} parent=31 // loop_exit
                _
            $region32: #{gcn_forward.7} parent=27 // pred_fallthru
              _
            // Predicated region
            $region40: #{gcn_forward.7} parent=27 // pred_check
              _
            $region41: #{gcn_forward.7} parent=27 // pred_check_branch
              %326 = sbr.rel target = $region43
            $region42: #{gcn_forward.7} parent=27 // pred_region
              _
            $region43: #{gcn_forward.7} parent=27 // pred_fallthru
              _
          $region28: #{gcn_forward.7} parent=23 // pred_fallthru
            _
          %327 = vnop
        $region24: #{gcn_forward.7} parent=19 // pred_fallthru
          _
        // Predicated region
        $region44: #{gcn_forward.7} parent=19 // pred_check
          %p328 = pneg %p71
        $region45: #{gcn_forward.7} parent=19 // pred_check_branch
          %330 = sbr.rel (%p328) target = $region47
        $region46: #{gcn_forward.7} parent=19 // pred_region
          %s331 = smul.u32 32, %s19
          %p332 = scmp.lt.s32.totalorder %s331, 63
          %s333 = scalar_select %p332, %s331, 63
          %s334 = smul.addr %s333, 8
          %s335 = scalar_lea.vmem %s1, %s334
          %s336 = smul.u32 32, %s19
        $region47: #{gcn_forward.7} parent=19 // pred_fallthru
          _
      $region20: #{gcn_forward.7} parent=5 // pred_fallthru
        _
      %p337 = scmp.le.s32.totalorder 1, %s11
      %p338 = scmp.lt.s32.totalorder %s11, 5
      %p339 = pnand %p337, %p338
      %p340 = pneg %p339
      // Predicated region
      $region48: #{gcn_forward.7} parent=5 // pred_check
        _
      $region49: #{gcn_forward.7} parent=5 // pred_check_branch
        %342 = sbr.rel (%p339) target = $region51
      $region50: #{gcn_forward.7} parent=5 // pred_region
        %s343 = ssub.s32 %s11, 1
        %s344 = sand.u32 %s38, 1
        %s345 = sand.u32 %s38, 1
        %s346 = smul.addr %s345, 512
        %s347 = scalar_lea.vmem [#allocation3], %s346
        // Predicated region
        $region52: #{gcn_forward.7} parent=50 // pred_check
          %p348 = pneg %p51
        $region53: #{gcn_forward.7} parent=50 // pred_check_branch
          %350 = sbr.rel (%p348) target = $region55
        $region54: #{gcn_forward.7} parent=50 // pred_region
          _
        $region55: #{gcn_forward.7} parent=50 // pred_fallthru
          _
        %s351 = sand.u32 %s38, 1
        %s352 = sand.u32 %s38, 1
        %s353 = smul.addr %s352, 512
        %s354 = scalar_lea.vmem [#allocation3], %s353
        %p355 = pneg %p51
        %p356 = pneg %p48
        %s357 = smul.u32 32, %s21
        %p358 = scmp.lt.s32.totalorder %s357, 63
        %s359 = scalar_select %p358, %s357, 63
        %s360 = smul.addr %s359, 8
        %s361 = scalar_lea.vmem %s1, %s360
        %p362 = pneg %p77
        %p363 = pneg %p74
        %p364 = pneg %p98
        %p365 = pneg %p95
        %p366 = pneg %p124
        %p367 = pneg %p121
        %s368 = smul.u32 32, %s20
        %p369 = scmp.lt.s32.totalorder %s368, 63
        %s370 = scalar_select %p369, %s368, 63
        %s371 = smul.addr %s370, 8
        %s372 = scalar_lea.vmem %s3, %s371
        %p373 = pneg %p150
        %p374 = pneg %p147
        %s375 = smul.u32 32, %s20
        %p376 = scmp.lt.s32.totalorder %s375, 63
        %s377 = scalar_select %p376, %s375, 63
        %s378 = smul.addr %s377, 8
        %s379 = scalar_lea.vmem %s4, %s378
        %s380 = smul.u32 32, %s20
        %s381 = smul.u32 2, %s21
        %s382 = smul.u32 32, %s21
        %p383 = scmp.lt.s32.totalorder %s382, 63
        %s384 = scalar_select %p383, %s382, 63
        %s385 = smul.addr %s384, 8
        %s386 = scalar_lea.vmem %s1, %s385
        %s387 = smul.u32 32, %s21
        %s388 = smul.u32 32, %s20
        %p389 = scmp.lt.s32.totalorder %s388, 63
        %s390 = scalar_select %p389, %s388, 63
        %s391 = smul.addr %s390, 8
        %s392 = scalar_lea.vmem %s3, %s391
        %s393 = smul.u32 32, %s20
        %s394 = smul.u32 32, %s20
        %p395 = scmp.lt.s32.totalorder %s394, 63
        %s396 = scalar_select %p395, %s394, 63
        %s397 = smul.addr %s396, 8
        %s398 = scalar_lea.vmem %s4, %s397
        %s399 = smul.u32 32, %s20
        %p400 = scmp.eq.s32.totalorder %s21, 0
        // Predicated region
        $region56: #{gcn_forward.7} parent=50 // pred_check
          %p401 = pneg %p400
        $region57: #{gcn_forward.7} parent=50 // pred_check_branch
          %403 = sbr.rel (%p401) target = $region59
        $region58: #{gcn_forward.7} parent=50 // pred_region
          %404 = vst [vmem:[#allocation2] sm:$0xff] 0.0
          %405 = vst [vmem:[#allocation2 + $0x8] sm:$0xff] 0.0
          %406 = vst [vmem:[#allocation2 + $0x10] sm:$0xff] 0.0
          %407 = vst [vmem:[#allocation2 + $0x18] sm:$0xff] 0.0
          %408 = vst [vmem:[#allocation2 + $0x20] sm:$0xff] 0.0
          %409 = vst [vmem:[#allocation2 + $0x28] sm:$0xff] 0.0
          %410 = vst [vmem:[#allocation2 + $0x30] sm:$0xff] 0.0
          %411 = vst [vmem:[#allocation2 + $0x38] sm:$0xff] 0.0
          %412 = vst [vmem:[#allocation2 + $0x40] sm:$0xff] 0.0
          %413 = vst [vmem:[#allocation2 + $0x48] sm:$0xff] 0.0
          %414 = vst [vmem:[#allocation2 + $0x50] sm:$0xff] 0.0
          %415 = vst [vmem:[#allocation2 + $0x58] sm:$0xff] 0.0
          %416 = vst [vmem:[#allocation2 + $0x60] sm:$0xff] 0.0
          %417 = vst [vmem:[#allocation2 + $0x68] sm:$0xff] 0.0
          %418 = vst [vmem:[#allocation2 + $0x70] sm:$0xff] 0.0
          %419 = vst [vmem:[#allocation2 + $0x78] sm:$0xff] 0.0
          %420 = vst [vmem:[#allocation2 + $0x80] sm:$0xff] 0.0
          %421 = vst [vmem:[#allocation2 + $0x88] sm:$0xff] 0.0
          %422 = vst [vmem:[#allocation2 + $0x90] sm:$0xff] 0.0
          %423 = vst [vmem:[#allocation2 + $0x98] sm:$0xff] 0.0
          %424 = vst [vmem:[#allocation2 + $0xa0] sm:$0xff] 0.0
          %425 = vst [vmem:[#allocation2 + $0xa8] sm:$0xff] 0.0
          %426 = vst [vmem:[#allocation2 + $0xb0] sm:$0xff] 0.0
          %427 = vst [vmem:[#allocation2 + $0xb8] sm:$0xff] 0.0
          %428 = vst [vmem:[#allocation2 + $0xc0] sm:$0xff] 0.0
          %429 = vst [vmem:[#allocation2 + $0xc8] sm:$0xff] 0.0
          %430 = vst [vmem:[#allocation2 + $0xd0] sm:$0xff] 0.0
          %431 = vst [vmem:[#allocation2 + $0xd8] sm:$0xff] 0.0
          %432 = vst [vmem:[#allocation2 + $0xe0] sm:$0xff] 0.0
          %433 = vst [vmem:[#allocation2 + $0xe8] sm:$0xff] 0.0
          %434 = vst [vmem:[#allocation2 + $0xf0] sm:$0xff] 0.0
          %435 = vst [vmem:[#allocation2 + $0xf8] sm:$0xff] 0.0
        $region59: #{gcn_forward.7} parent=50 // pred_fallthru
          _
        %v436 = vld [vmem:[#allocation2] sm:$0xff]
        %v437 = vld [vmem:[#allocation2 + $0x8] sm:$0xff]
        %v438 = vld [vmem:[#allocation2 + $0x10] sm:$0xff]
        %v439 = vld [vmem:[#allocation2 + $0x18] sm:$0xff]
        %v440 = vld [vmem:[#allocation2 + $0x20] sm:$0xff]
        %v441 = vld [vmem:[#allocation2 + $0x28] sm:$0xff]
        %v442 = vld [vmem:[#allocation2 + $0x30] sm:$0xff]
        %v443 = vld [vmem:[#allocation2 + $0x38] sm:$0xff]
        %v444 = vld [vmem:[#allocation2 + $0x40] sm:$0xff]
        %v445 = vld [vmem:[#allocation2 + $0x48] sm:$0xff]
        %v446 = vld [vmem:[#allocation2 + $0x50] sm:$0xff]
        %v447 = vld [vmem:[#allocation2 + $0x58] sm:$0xff]
        %v448 = vld [vmem:[#allocation2 + $0x60] sm:$0xff]
        %v449 = vld [vmem:[#allocation2 + $0x68] sm:$0xff]
        %v450 = vld [vmem:[#allocation2 + $0x70] sm:$0xff]
        %v451 = vld [vmem:[#allocation2 + $0x78] sm:$0xff]
        %v452 = vld [vmem:[#allocation2 + $0x80] sm:$0xff]
        %v453 = vld [vmem:[#allocation2 + $0x88] sm:$0xff]
        %v454 = vld [vmem:[#allocation2 + $0x90] sm:$0xff]
        %v455 = vld [vmem:[#allocation2 + $0x98] sm:$0xff]
        %v456 = vld [vmem:[#allocation2 + $0xa0] sm:$0xff]
        %v457 = vld [vmem:[#allocation2 + $0xa8] sm:$0xff]
        %v458 = vld [vmem:[#allocation2 + $0xb0] sm:$0xff]
        %v459 = vld [vmem:[#allocation2 + $0xb8] sm:$0xff]
        %v460 = vld [vmem:[#allocation2 + $0xc0] sm:$0xff]
        %v461 = vld [vmem:[#allocation2 + $0xc8] sm:$0xff]
        %v462 = vld [vmem:[#allocation2 + $0xd0] sm:$0xff]
        %v463 = vld [vmem:[#allocation2 + $0xd8] sm:$0xff]
        %v464 = vld [vmem:[#allocation2 + $0xe0] sm:$0xff]
        %v465 = vld [vmem:[#allocation2 + $0xe8] sm:$0xff]
        %v466 = vld [vmem:[#allocation2 + $0xf0] sm:$0xff]
        %v467 = vld [vmem:[#allocation2 + $0xf8] sm:$0xff]
        %v468 = vld [vmem:[%s347] sm:$0xff]
        %v469 = vld [vmem:[%s347 + $0x8] sm:$0xff]
        %v470 = vld [vmem:[%s347 + $0x10] sm:$0xff]
        %v471 = vld [vmem:[%s347 + $0x18] sm:$0xff]
        %v472 = vld [vmem:[%s347 + $0x20] sm:$0xff]
        %v473 = vld [vmem:[%s347 + $0x28] sm:$0xff]
        %v474 = vld [vmem:[%s347 + $0x30] sm:$0xff]
        %v475 = vld [vmem:[%s347 + $0x38] sm:$0xff]
        %v476 = vld [vmem:[%s347 + $0x40] sm:$0xff]
        %v477 = vld [vmem:[%s347 + $0x48] sm:$0xff]
        %v478 = vld [vmem:[%s347 + $0x50] sm:$0xff]
        %v479 = vld [vmem:[%s347 + $0x58] sm:$0xff]
        %v480 = vld [vmem:[%s347 + $0x60] sm:$0xff]
        %v481 = vld [vmem:[%s347 + $0x68] sm:$0xff]
        %v482 = vld [vmem:[%s347 + $0x70] sm:$0xff]
        %v483 = vld [vmem:[%s347 + $0x78] sm:$0xff]
        %v484 = vld [vmem:[%s347 + $0x80] sm:$0xff]
        %v485 = vld [vmem:[%s347 + $0x88] sm:$0xff]
        %v486 = vld [vmem:[%s347 + $0x90] sm:$0xff]
        %v487 = vld [vmem:[%s347 + $0x98] sm:$0xff]
        %v488 = vld [vmem:[%s347 + $0xa0] sm:$0xff]
        %v489 = vld [vmem:[%s347 + $0xa8] sm:$0xff]
        %v490 = vld [vmem:[%s347 + $0xb0] sm:$0xff]
        %v491 = vld [vmem:[%s347 + $0xb8] sm:$0xff]
        %v492 = vld [vmem:[%s347 + $0xc0] sm:$0xff]
        %v493 = vld [vmem:[%s347 + $0xc8] sm:$0xff]
        %v494 = vld [vmem:[%s347 + $0xd0] sm:$0xff]
        %v495 = vld [vmem:[%s347 + $0xd8] sm:$0xff]
        %v496 = vld [vmem:[%s347 + $0xe0] sm:$0xff]
        %v497 = vld [vmem:[%s347 + $0xe8] sm:$0xff]
        %v498 = vld [vmem:[%s347 + $0xf0] sm:$0xff]
        %v499 = vld [vmem:[%s347 + $0xf8] sm:$0xff]
        %v500 = vld [vmem:[%s347 + $0x100] sm:$0xff]
        %v501 = vld [vmem:[%s347 + $0x108] sm:$0xff]
        %v502 = vld [vmem:[%s347 + $0x110] sm:$0xff]
        %v503 = vld [vmem:[%s347 + $0x118] sm:$0xff]
        %v504 = vld [vmem:[%s347 + $0x120] sm:$0xff]
        %v505 = vld [vmem:[%s347 + $0x128] sm:$0xff]
        %v506 = vld [vmem:[%s347 + $0x130] sm:$0xff]
        %v507 = vld [vmem:[%s347 + $0x138] sm:$0xff]
        %v508 = vld [vmem:[%s347 + $0x140] sm:$0xff]
        %v509 = vld [vmem:[%s347 + $0x148] sm:$0xff]
        %v510 = vld [vmem:[%s347 + $0x150] sm:$0xff]
        %v511 = vld [vmem:[%s347 + $0x158] sm:$0xff]
        %v512 = vld [vmem:[%s347 + $0x160] sm:$0xff]
        %v513 = vld [vmem:[%s347 + $0x168] sm:$0xff]
        %v514 = vld [vmem:[%s347 + $0x170] sm:$0xff]
        %v515 = vld [vmem:[%s347 + $0x178] sm:$0xff]
        %v516 = vld [vmem:[%s347 + $0x180] sm:$0xff]
        %v517 = vld [vmem:[%s347 + $0x188] sm:$0xff]
        %v518 = vld [vmem:[%s347 + $0x190] sm:$0xff]
        %v519 = vld [vmem:[%s347 + $0x198] sm:$0xff]
        %v520 = vld [vmem:[%s347 + $0x1a0] sm:$0xff]
        %v521 = vld [vmem:[%s347 + $0x1a8] sm:$0xff]
        %v522 = vld [vmem:[%s347 + $0x1b0] sm:$0xff]
        %v523 = vld [vmem:[%s347 + $0x1b8] sm:$0xff]
        %v524 = vld [vmem:[%s347 + $0x1c0] sm:$0xff]
        %v525 = vld [vmem:[%s347 + $0x1c8] sm:$0xff]
        %v526 = vld [vmem:[%s347 + $0x1d0] sm:$0xff]
        %v527 = vld [vmem:[%s347 + $0x1d8] sm:$0xff]
        %v528 = vld [vmem:[%s347 + $0x1e0] sm:$0xff]
        %v529 = vld [vmem:[%s347 + $0x1e8] sm:$0xff]
        %v530 = vld [vmem:[%s347 + $0x1f0] sm:$0xff]
        %v531 = vld [vmem:[%s347 + $0x1f8] sm:$0xff]
        %v532 = vld [vmem:[%s386] sm:$0xff]
        %v533 = vld [vmem:[%s386 + $0x8] sm:$0xff]
        %v534 = vld [vmem:[%s386 + $0x10] sm:$0xff]
        %v535 = vld [vmem:[%s386 + $0x18] sm:$0xff]
        %v536 = vld [vmem:[%s386 + $0x20] sm:$0xff]
        %v537 = vld [vmem:[%s386 + $0x28] sm:$0xff]
        %v538 = vld [vmem:[%s386 + $0x30] sm:$0xff]
        %v539 = vld [vmem:[%s386 + $0x38] sm:$0xff]
        %v540 = vld [vmem:[%s386 + $0x40] sm:$0xff]
        %v541 = vld [vmem:[%s386 + $0x48] sm:$0xff]
        %v542 = vld [vmem:[%s386 + $0x50] sm:$0xff]
        %v543 = vld [vmem:[%s386 + $0x58] sm:$0xff]
        %v544 = vld [vmem:[%s386 + $0x60] sm:$0xff]
        %v545 = vld [vmem:[%s386 + $0x68] sm:$0xff]
        %v546 = vld [vmem:[%s386 + $0x70] sm:$0xff]
        %v547 = vld [vmem:[%s386 + $0x78] sm:$0xff]
        %v548 = vld [vmem:[%s386 + $0x80] sm:$0xff]
        %v549 = vld [vmem:[%s386 + $0x88] sm:$0xff]
        %v550 = vld [vmem:[%s386 + $0x90] sm:$0xff]
        %v551 = vld [vmem:[%s386 + $0x98] sm:$0xff]
        %v552 = vld [vmem:[%s386 + $0xa0] sm:$0xff]
        %v553 = vld [vmem:[%s386 + $0xa8] sm:$0xff]
        %v554 = vld [vmem:[%s386 + $0xb0] sm:$0xff]
        %v555 = vld [vmem:[%s386 + $0xb8] sm:$0xff]
        %v556 = vld [vmem:[%s386 + $0xc0] sm:$0xff]
        %v557 = vld [vmem:[%s386 + $0xc8] sm:$0xff]
        %v558 = vld [vmem:[%s386 + $0xd0] sm:$0xff]
        %v559 = vld [vmem:[%s386 + $0xd8] sm:$0xff]
        %v560 = vld [vmem:[%s386 + $0xe0] sm:$0xff]
        %v561 = vld [vmem:[%s386 + $0xe8] sm:$0xff]
        %v562 = vld [vmem:[%s386 + $0xf0] sm:$0xff]
        %v563 = vld [vmem:[%s386 + $0xf8] sm:$0xff]
        %564 = vmatprep.subr.mxu0 0.0
        %565 = vmatpush1.msra.mxu0 %v532
        %566 = vmatprep.subr.mxu0 0.0
        %567 = vmatpush1.msra.mxu0 %v533
        %568 = vmatprep.subr.mxu0 0.0
        %569 = vmatpush1.msra.mxu0 %v534
        %570 = vmatprep.subr.mxu0 0.0
        %571 = vmatpush1.msra.mxu0 %v535
        %572 = vmatprep.subr.mxu0 0.0
        %573 = vmatpush1.msra.mxu0 %v536
        %574 = vmatprep.subr.mxu0 0.0
        %575 = vmatpush1.msra.mxu0 %v537
        %576 = vmatprep.subr.mxu0 0.0
        %577 = vmatpush1.msra.mxu0 %v538
        %578 = vmatprep.subr.mxu0 0.0
        %579 = vmatpush1.msra.mxu0 %v539
        %580 = vmatprep.subr.mxu0 0.0
        %581 = vmatpush1.msra.mxu0 %v540
        %582 = vmatprep.subr.mxu0 0.0
        %583 = vmatpush1.msra.mxu0 %v541
        %584 = vmatprep.subr.mxu0 0.0
        %585 = vmatpush1.msra.mxu0 %v542
        %586 = vmatprep.subr.mxu0 0.0
        %587 = vmatpush1.msra.mxu0 %v543
        %588 = vmatprep.subr.mxu0 0.0
        %589 = vmatpush1.msra.mxu0 %v544
        %590 = vmatprep.subr.mxu0 0.0
        %591 = vmatpush1.msra.mxu0 %v545
        %592 = vmatprep.subr.mxu0 0.0
        %593 = vmatpush1.msra.mxu0 %v546
        %594 = vmatprep.subr.mxu0 0.0
        %595 = vmatpush1.msra.mxu0 %v547
        %596 = vmatprep.subr.mxu0 0.0
        %597 = vmatpush1.msra.mxu0 %v548
        %598 = vmatprep.subr.mxu0 0.0
        %599 = vmatpush1.msra.mxu0 %v549
        %600 = vmatprep.subr.mxu0 0.0
        %601 = vmatpush1.msra.mxu0 %v550
        %602 = vmatprep.subr.mxu0 0.0
        %603 = vmatpush1.msra.mxu0 %v551
        %604 = vmatprep.subr.mxu0 0.0
        %605 = vmatpush1.msra.mxu0 %v552
        %606 = vmatprep.subr.mxu0 0.0
        %607 = vmatpush1.msra.mxu0 %v553
        %608 = vmatprep.subr.mxu0 0.0
        %609 = vmatpush1.msra.mxu0 %v554
        %610 = vmatprep.subr.mxu0 0.0
        %611 = vmatpush1.msra.mxu0 %v555
        %612 = vmatprep.subr.mxu0 0.0
        %613 = vmatpush1.msra.mxu0 %v556
        %614 = vmatprep.subr.mxu0 0.0
        %615 = vmatpush1.msra.mxu0 %v557
        %616 = vmatprep.subr.mxu0 0.0
        %617 = vmatpush1.msra.mxu0 %v558
        %618 = vmatprep.subr.mxu0 0.0
        %619 = vmatpush1.msra.mxu0 %v559
        %620 = vmatprep.subr.mxu0 0.0
        %621 = vmatpush1.msra.mxu0 %v560
        %622 = vmatprep.subr.mxu0 0.0
        %623 = vmatpush1.msra.mxu0 %v561
        %624 = vmatprep.subr.mxu0 0.0
        %625 = vmatpush1.msra.mxu0 %v562
        %626 = vmatprep.subr.mxu0 0.0
        %627 = vmatpush1.msra.mxu0 %v563
        %628 = vmatprep.mubr.f32.mxu0 %v469
        %629 = vmatmul.mubr.f32.gmra.mrb[0].mxu0 %v468
        %v630 = vpop.f32.mrb[0].mxu0
        %v631 = vadd.f32 0.0, %v630
        %v632 = vpop.f32.mrb[0].mxu0
        %633 = vmatprep.mubr.f32.mxu0 %v471
        %634 = vmatmul.mubr.f32.gmra.mrb[0].mxu0 %v470
        %v635 = vpop.f32.mrb[0].mxu0
        %v636 = vadd.f32 0.0, %v635
        %v637 = vpop.f32.mrb[0].mxu0
        %638 = vmatprep.mubr.f32.mxu0 %v473
        %639 = vmatmul.mubr.f32.gmra.mrb[0].mxu0 %v472
        %v640 = vpop.f32.mrb[0].mxu0
        %v641 = vadd.f32 0.0, %v640
        %v642 = vpop.f32.mrb[0].mxu0
        %643 = vmatprep.mubr.f32.mxu0 %v475
        %644 = vmatmul.mubr.f32.gmra.mrb[0].mxu0 %v474
        %v645 = vpop.f32.mrb[0].mxu0
        %v646 = vadd.f32 0.0, %v645
        %v647 = vpop.f32.mrb[0].mxu0
        %648 = vmatprep.mubr.f32.mxu0 %v477
        %649 = vmatmul.mubr.f32.gmra.mrb[0].mxu0 %v476
        %v650 = vpop.f32.mrb[0].mxu0
        %v651 = vadd.f32 0.0, %v650
        %v652 = vpop.f32.mrb[0].mxu0
        %653 = vmatprep.mubr.f32.mxu0 %v479
        %654 = vmatmul.mubr.f32.gmra.mrb[0].mxu0 %v478
        %v655 = vpop.f32.mrb[0].mxu0
        %v656 = vadd.f32 0.0, %v655
        %v657 = vpop.f32.mrb[0].mxu0
        %658 = vmatprep.mubr.f32.mxu0 %v481
        %659 = vmatmul.mubr.f32.gmra.mrb[0].mxu0 %v480
        %v660 = vpop.f32.mrb[0].mxu0
        %v661 = vadd.f32 0.0, %v660
        %v662 = vpop.f32.mrb[0].mxu0
        %663 = vmatprep.mubr.f32.mxu0 %v483
        %664 = vmatmul.mubr.f32.gmra.mrb[0].mxu0 %v482
        %v665 = vpop.f32.mrb[0].mxu0
        %v666 = vadd.f32 0.0, %v665
        %v667 = vpop.f32.mrb[0].mxu0
        %668 = vmatprep.mubr.f32.mxu0 %v485
        %669 = vmatmul.mubr.f32.gmra.mrb[0].mxu0 %v484
        %v670 = vpop.f32.mrb[0].mxu0
        %v671 = vadd.f32 0.0, %v670
        %v672 = vpop.f32.mrb[0].mxu0
        %673 = vmatprep.mubr.f32.mxu0 %v487
        %674 = vmatmul.mubr.f32.gmra.mrb[0].mxu0 %v486
        %v675 = vpop.f32.mrb[0].mxu0
        %v676 = vadd.f32 0.0, %v675
        %v677 = vpop.f32.mrb[0].mxu0
        %678 = vmatprep.mubr.f32.mxu0 %v489
        %679 = vmatmul.mubr.f32.gmra.mrb[0].mxu0 %v488
        %v680 = vpop.f32.mrb[0].mxu0
        %v681 = vadd.f32 0.0, %v680
        %v682 = vpop.f32.mrb[0].mxu0
        %683 = vmatprep.mubr.f32.mxu0 %v491
        %684 = vmatmul.mubr.f32.gmra.mrb[0].mxu0 %v490
        %v685 = vpop.f32.mrb[0].mxu0
        %v686 = vadd.f32 0.0, %v685
        %v687 = vpop.f32.mrb[0].mxu0
        %688 = vmatprep.mubr.f32.mxu0 %v493
        %689 = vmatmul.mubr.f32.gmra.mrb[0].mxu0 %v492
        %v690 = vpop.f32.mrb[0].mxu0
        %v691 = vadd.f32 0.0, %v690
        %v692 = vpop.f32.mrb[0].mxu0
        %693 = vmatprep.mubr.f32.mxu0 %v495
        %694 = vmatmul.mubr.f32.gmra.mrb[0].mxu0 %v494
        %v695 = vpop.f32.mrb[0].mxu0
        %v696 = vadd.f32 0.0, %v695
        %v697 = vpop.f32.mrb[0].mxu0
        %698 = vmatprep.mubr.f32.mxu0 %v497
        %699 = vmatmul.mubr.f32.gmra.mrb[0].mxu0 %v496
        %v700 = vpop.f32.mrb[0].mxu0
        %v701 = vadd.f32 0.0, %v700
        %v702 = vpop.f32.mrb[0].mxu0
        %703 = vmatprep.mubr.f32.mxu0 %v499
        %704 = vmatmul.mubr.f32.gmra.mrb[0].mxu0 %v498
        %v705 = vpop.f32.mrb[0].mxu0
        %v706 = vadd.f32 0.0, %v705
        %v707 = vpop.f32.mrb[0].mxu0
        %708 = vmatprep.mubr.f32.mxu0 %v501
        %709 = vmatmul.mubr.f32.gmra.mrb[0].mxu0 %v500
        %v710 = vpop.f32.mrb[0].mxu0
        %v711 = vadd.f32 0.0, %v710
        %v712 = vpop.f32.mrb[0].mxu0
        %713 = vmatprep.mubr.f32.mxu0 %v503
        %714 = vmatmul.mubr.f32.gmra.mrb[0].mxu0 %v502
        %v715 = vpop.f32.mrb[0].mxu0
        %v716 = vadd.f32 0.0, %v715
        %v717 = vpop.f32.mrb[0].mxu0
        %718 = vmatprep.mubr.f32.mxu0 %v505
        %719 = vmatmul.mubr.f32.gmra.mrb[0].mxu0 %v504
        %v720 = vpop.f32.mrb[0].mxu0
        %v721 = vadd.f32 0.0, %v720
        %v722 = vpop.f32.mrb[0].mxu0
        %723 = vmatprep.mubr.f32.mxu0 %v507
        %724 = vmatmul.mubr.f32.gmra.mrb[0].mxu0 %v506
        %v725 = vpop.f32.mrb[0].mxu0
        %v726 = vadd.f32 0.0, %v725
        %v727 = vpop.f32.mrb[0].mxu0
        %728 = vmatprep.mubr.f32.mxu0 %v509
        %729 = vmatmul.mubr.f32.gmra.mrb[0].mxu0 %v508
        %v730 = vpop.f32.mrb[0].mxu0
        %v731 = vadd.f32 0.0, %v730
        %v732 = vpop.f32.mrb[0].mxu0
        %733 = vmatprep.mubr.f32.mxu0 %v511
        %734 = vmatmul.mubr.f32.gmra.mrb[0].mxu0 %v510
        %v735 = vpop.f32.mrb[0].mxu0
        %v736 = vadd.f32 0.0, %v735
        %v737 = vpop.f32.mrb[0].mxu0
        %738 = vmatprep.mubr.f32.mxu0 %v513
        %739 = vmatmul.mubr.f32.gmra.mrb[0].mxu0 %v512
        %v740 = vpop.f32.mrb[0].mxu0
        %v741 = vadd.f32 0.0, %v740
        %v742 = vpop.f32.mrb[0].mxu0
        %743 = vmatprep.mubr.f32.mxu0 %v515
        %744 = vmatmul.mubr.f32.gmra.mrb[0].mxu0 %v514
        %v745 = vpop.f32.mrb[0].mxu0
        %v746 = vadd.f32 0.0, %v745
        %v747 = vpop.f32.mrb[0].mxu0
        %748 = vmatprep.mubr.f32.mxu0 %v517
        %749 = vmatmul.mubr.f32.gmra.mrb[0].mxu0 %v516
        %v750 = vpop.f32.mrb[0].mxu0
        %v751 = vadd.f32 0.0, %v750
        %v752 = vpop.f32.mrb[0].mxu0
        %753 = vmatprep.mubr.f32.mxu0 %v519
        %754 = vmatmul.mubr.f32.gmra.mrb[0].mxu0 %v518
        %v755 = vpop.f32.mrb[0].mxu0
        %v756 = vadd.f32 0.0, %v755
        %v757 = vpop.f32.mrb[0].mxu0
        %758 = vmatprep.mubr.f32.mxu0 %v521
        %759 = vmatmul.mubr.f32.gmra.mrb[0].mxu0 %v520
        %v760 = vpop.f32.mrb[0].mxu0
        %v761 = vadd.f32 0.0, %v760
        %v762 = vpop.f32.mrb[0].mxu0
        %763 = vmatprep.mubr.f32.mxu0 %v523
        %764 = vmatmul.mubr.f32.gmra.mrb[0].mxu0 %v522
        %v765 = vpop.f32.mrb[0].mxu0
        %v766 = vadd.f32 0.0, %v765
        %v767 = vpop.f32.mrb[0].mxu0
        %768 = vmatprep.mubr.f32.mxu0 %v525
        %769 = vmatmul.mubr.f32.gmra.mrb[0].mxu0 %v524
        %v770 = vpop.f32.mrb[0].mxu0
        %v771 = vadd.f32 0.0, %v770
        %v772 = vpop.f32.mrb[0].mxu0
        %773 = vmatprep.mubr.f32.mxu0 %v527
        %774 = vmatmul.mubr.f32.gmra.mrb[0].mxu0 %v526
        %v775 = vpop.f32.mrb[0].mxu0
        %v776 = vadd.f32 0.0, %v775
        %v777 = vpop.f32.mrb[0].mxu0
        %778 = vmatprep.mubr.f32.mxu0 %v529
        %779 = vmatmul.mubr.f32.gmra.mrb[0].mxu0 %v528
        %v780 = vpop.f32.mrb[0].mxu0
        %v781 = vadd.f32 0.0, %v780
        %v782 = vpop.f32.mrb[0].mxu0
        %783 = vmatprep.mubr.f32.mxu0 %v531
        %784 = vmatmul.mubr.f32.gmra.mrb[0].mxu0 %v530
        %v785 = vpop.f32.mrb[0].mxu0
        %v786 = vadd.f32 0.0, %v785
        %v787 = vpop.f32.mrb[0].mxu0
        %788 = vdwg.mxu0
        %v789 = vadd.f32 %v436, %v631
        %v790 = vadd.f32 %v437, %v636
        %v791 = vadd.f32 %v438, %v641
        %v792 = vadd.f32 %v439, %v646
        %v793 = vadd.f32 %v440, %v651
        %v794 = vadd.f32 %v441, %v656
        %v795 = vadd.f32 %v442, %v661
        %v796 = vadd.f32 %v443, %v666
        %v797 = vadd.f32 %v444, %v671
        %v798 = vadd.f32 %v445, %v676
        %v799 = vadd.f32 %v446, %v681
        %v800 = vadd.f32 %v447, %v686
        %v801 = vadd.f32 %v448, %v691
        %v802 = vadd.f32 %v449, %v696
        %v803 = vadd.f32 %v450, %v701
        %v804 = vadd.f32 %v451, %v706
        %v805 = vadd.f32 %v452, %v711
        %v806 = vadd.f32 %v453, %v716
        %v807 = vadd.f32 %v454, %v721
        %v808 = vadd.f32 %v455, %v726
        %v809 = vadd.f32 %v456, %v731
        %v810 = vadd.f32 %v457, %v736
        %v811 = vadd.f32 %v458, %v741
        %v812 = vadd.f32 %v459, %v746
        %v813 = vadd.f32 %v460, %v751
        %v814 = vadd.f32 %v461, %v756
        %v815 = vadd.f32 %v462, %v761
        %v816 = vadd.f32 %v463, %v766
        %v817 = vadd.f32 %v464, %v771
        %v818 = vadd.f32 %v465, %v776
        %v819 = vadd.f32 %v466, %v781
        %v820 = vadd.f32 %v467, %v786
        %821 = vst [vmem:[#allocation2] sm:$0xff] %v789
        %822 = vst [vmem:[#allocation2 + $0x8] sm:$0xff] %v790
        %823 = vst [vmem:[#allocation2 + $0x10] sm:$0xff] %v791
        %824 = vst [vmem:[#allocation2 + $0x18] sm:$0xff] %v792
        %825 = vst [vmem:[#allocation2 + $0x20] sm:$0xff] %v793
        %826 = vst [vmem:[#allocation2 + $0x28] sm:$0xff] %v794
        %827 = vst [vmem:[#allocation2 + $0x30] sm:$0xff] %v795
        %828 = vst [vmem:[#allocation2 + $0x38] sm:$0xff] %v796
        %829 = vst [vmem:[#allocation2 + $0x40] sm:$0xff] %v797
        %830 = vst [vmem:[#allocation2 + $0x48] sm:$0xff] %v798
        %831 = vst [vmem:[#allocation2 + $0x50] sm:$0xff] %v799
        %832 = vst [vmem:[#allocation2 + $0x58] sm:$0xff] %v800
        %833 = vst [vmem:[#allocation2 + $0x60] sm:$0xff] %v801
        %834 = vst [vmem:[#allocation2 + $0x68] sm:$0xff] %v802
        %835 = vst [vmem:[#allocation2 + $0x70] sm:$0xff] %v803
        %836 = vst [vmem:[#allocation2 + $0x78] sm:$0xff] %v804
        %837 = vst [vmem:[#allocation2 + $0x80] sm:$0xff] %v805
        %838 = vst [vmem:[#allocation2 + $0x88] sm:$0xff] %v806
        %839 = vst [vmem:[#allocation2 + $0x90] sm:$0xff] %v807
        %840 = vst [vmem:[#allocation2 + $0x98] sm:$0xff] %v808
        %841 = vst [vmem:[#allocation2 + $0xa0] sm:$0xff] %v809
        %842 = vst [vmem:[#allocation2 + $0xa8] sm:$0xff] %v810
        %843 = vst [vmem:[#allocation2 + $0xb0] sm:$0xff] %v811
        %844 = vst [vmem:[#allocation2 + $0xb8] sm:$0xff] %v812
        %845 = vst [vmem:[#allocation2 + $0xc0] sm:$0xff] %v813
        %846 = vst [vmem:[#allocation2 + $0xc8] sm:$0xff] %v814
        %847 = vst [vmem:[#allocation2 + $0xd0] sm:$0xff] %v815
        %848 = vst [vmem:[#allocation2 + $0xd8] sm:$0xff] %v816
        %849 = vst [vmem:[#allocation2 + $0xe0] sm:$0xff] %v817
        %850 = vst [vmem:[#allocation2 + $0xe8] sm:$0xff] %v818
        %851 = vst [vmem:[#allocation2 + $0xf0] sm:$0xff] %v819
        %852 = vst [vmem:[#allocation2 + $0xf8] sm:$0xff] %v820
        %p853 = scmp.eq.s32.totalorder %s21, 1
        // Predicated region
        $region60: #{gcn_forward.7} parent=50 // pred_check
          %p854 = pneg %p853
        $region61: #{gcn_forward.7} parent=50 // pred_check_branch
          %856 = sbr.rel (%p854) target = $region63
        $region62: #{gcn_forward.7} parent=50 // pred_region
          %v857 = vld [vmem:[#allocation2] sm:$0xff]
          %v858 = vld [vmem:[#allocation2 + $0x8] sm:$0xff]
          %v859 = vld [vmem:[#allocation2 + $0x10] sm:$0xff]
          %v860 = vld [vmem:[#allocation2 + $0x18] sm:$0xff]
          %v861 = vld [vmem:[#allocation2 + $0x20] sm:$0xff]
          %v862 = vld [vmem:[#allocation2 + $0x28] sm:$0xff]
          %v863 = vld [vmem:[#allocation2 + $0x30] sm:$0xff]
          %v864 = vld [vmem:[#allocation2 + $0x38] sm:$0xff]
          %v865 = vld [vmem:[#allocation2 + $0x40] sm:$0xff]
          %v866 = vld [vmem:[#allocation2 + $0x48] sm:$0xff]
          %v867 = vld [vmem:[#allocation2 + $0x50] sm:$0xff]
          %v868 = vld [vmem:[#allocation2 + $0x58] sm:$0xff]
          %v869 = vld [vmem:[#allocation2 + $0x60] sm:$0xff]
          %v870 = vld [vmem:[#allocation2 + $0x68] sm:$0xff]
          %v871 = vld [vmem:[#allocation2 + $0x70] sm:$0xff]
          %v872 = vld [vmem:[#allocation2 + $0x78] sm:$0xff]
          %v873 = vld [vmem:[#allocation2 + $0x80] sm:$0xff]
          %v874 = vld [vmem:[#allocation2 + $0x88] sm:$0xff]
          %v875 = vld [vmem:[#allocation2 + $0x90] sm:$0xff]
          %v876 = vld [vmem:[#allocation2 + $0x98] sm:$0xff]
          %v877 = vld [vmem:[#allocation2 + $0xa0] sm:$0xff]
          %v878 = vld [vmem:[#allocation2 + $0xa8] sm:$0xff]
          %v879 = vld [vmem:[#allocation2 + $0xb0] sm:$0xff]
          %v880 = vld [vmem:[#allocation2 + $0xb8] sm:$0xff]
          %v881 = vld [vmem:[#allocation2 + $0xc0] sm:$0xff]
          %v882 = vld [vmem:[#allocation2 + $0xc8] sm:$0xff]
          %v883 = vld [vmem:[#allocation2 + $0xd0] sm:$0xff]
          %v884 = vld [vmem:[#allocation2 + $0xd8] sm:$0xff]
          %v885 = vld [vmem:[#allocation2 + $0xe0] sm:$0xff]
          %v886 = vld [vmem:[#allocation2 + $0xe8] sm:$0xff]
          %v887 = vld [vmem:[#allocation2 + $0xf0] sm:$0xff]
          %v888 = vld [vmem:[#allocation2 + $0xf8] sm:$0xff]
          %v889 = vld [vmem:[%s2] sm:$0x1]
          %v891 = vlaneseq
          %v892 = vshrl.u32 %v891, 7
          %v893 = vsub.s32 0, %v892
          %v894 = vrot.slane %v889, %v893
          %v896 = vadd.f32 %v857, %v894
          %v897 = vadd.f32 %v858, %v894
          %v898 = vadd.f32 %v859, %v894
          %v899 = vadd.f32 %v860, %v894
          %v900 = vadd.f32 %v861, %v894
          %v901 = vadd.f32 %v862, %v894
          %v902 = vadd.f32 %v863, %v894
          %v903 = vadd.f32 %v864, %v894
          %v904 = vadd.f32 %v865, %v894
          %v905 = vadd.f32 %v866, %v894
          %v906 = vadd.f32 %v867, %v894
          %v907 = vadd.f32 %v868, %v894
          %v908 = vadd.f32 %v869, %v894
          %v909 = vadd.f32 %v870, %v894
          %v910 = vadd.f32 %v871, %v894
          %v911 = vadd.f32 %v872, %v894
          %v912 = vadd.f32 %v873, %v894
          %v913 = vadd.f32 %v874, %v894
          %v914 = vadd.f32 %v875, %v894
          %v915 = vadd.f32 %v876, %v894
          %v916 = vadd.f32 %v877, %v894
          %v917 = vadd.f32 %v878, %v894
          %v918 = vadd.f32 %v879, %v894
          %v919 = vadd.f32 %v880, %v894
          %v920 = vadd.f32 %v881, %v894
          %v921 = vadd.f32 %v882, %v894
          %v922 = vadd.f32 %v883, %v894
          %v923 = vadd.f32 %v884, %v894
          %v924 = vadd.f32 %v885, %v894
          %v925 = vadd.f32 %v886, %v894
          %v926 = vadd.f32 %v887, %v894
          %v927 = vadd.f32 %v888, %v894
          %928 = vst [vmem:[%s392] sm:$0xff] %v896
          %929 = vst [vmem:[%s392 + $0x8] sm:$0xff] %v897
          %930 = vst [vmem:[%s392 + $0x10] sm:$0xff] %v898
          %931 = vst [vmem:[%s392 + $0x18] sm:$0xff] %v899
          %932 = vst [vmem:[%s392 + $0x20] sm:$0xff] %v900
          %933 = vst [vmem:[%s392 + $0x28] sm:$0xff] %v901
          %934 = vst [vmem:[%s392 + $0x30] sm:$0xff] %v902
          %935 = vst [vmem:[%s392 + $0x38] sm:$0xff] %v903
          %936 = vst [vmem:[%s392 + $0x40] sm:$0xff] %v904
          %937 = vst [vmem:[%s392 + $0x48] sm:$0xff] %v905
          %938 = vst [vmem:[%s392 + $0x50] sm:$0xff] %v906
          %939 = vst [vmem:[%s392 + $0x58] sm:$0xff] %v907
          %940 = vst [vmem:[%s392 + $0x60] sm:$0xff] %v908
          %941 = vst [vmem:[%s392 + $0x68] sm:$0xff] %v909
          %942 = vst [vmem:[%s392 + $0x70] sm:$0xff] %v910
          %943 = vst [vmem:[%s392 + $0x78] sm:$0xff] %v911
          %944 = vst [vmem:[%s392 + $0x80] sm:$0xff] %v912
          %945 = vst [vmem:[%s392 + $0x88] sm:$0xff] %v913
          %946 = vst [vmem:[%s392 + $0x90] sm:$0xff] %v914
          %947 = vst [vmem:[%s392 + $0x98] sm:$0xff] %v915
          %948 = vst [vmem:[%s392 + $0xa0] sm:$0xff] %v916
          %949 = vst [vmem:[%s392 + $0xa8] sm:$0xff] %v917
          %950 = vst [vmem:[%s392 + $0xb0] sm:$0xff] %v918
          %951 = vst [vmem:[%s392 + $0xb8] sm:$0xff] %v919
          %952 = vst [vmem:[%s392 + $0xc0] sm:$0xff] %v920
          %953 = vst [vmem:[%s392 + $0xc8] sm:$0xff] %v921
          %954 = vst [vmem:[%s392 + $0xd0] sm:$0xff] %v922
          %955 = vst [vmem:[%s392 + $0xd8] sm:$0xff] %v923
          %956 = vst [vmem:[%s392 + $0xe0] sm:$0xff] %v924
          %957 = vst [vmem:[%s392 + $0xe8] sm:$0xff] %v925
          %958 = vst [vmem:[%s392 + $0xf0] sm:$0xff] %v926
          %959 = vst [vmem:[%s392 + $0xf8] sm:$0xff] %v927
          %v960 = vlaneseq
          %v961 = vand.u32 %v960, 127
          %vm962 = vcmp.lt.s32.totalorder %v961, 8
          %v963 = vsel %vm962, %v896, -1e+30
          %v964 = vsel %vm962, %v897, -1e+30
          %v965 = vsel %vm962, %v898, -1e+30
          %v966 = vsel %vm962, %v899, -1e+30
          %v967 = vsel %vm962, %v900, -1e+30
          %v968 = vsel %vm962, %v901, -1e+30
          %v969 = vsel %vm962, %v902, -1e+30
          %v970 = vsel %vm962, %v903, -1e+30
          %v971 = vsel %vm962, %v904, -1e+30
          %v972 = vsel %vm962, %v905, -1e+30
          %v973 = vsel %vm962, %v906, -1e+30
          %v974 = vsel %vm962, %v907, -1e+30
          %v975 = vsel %vm962, %v908, -1e+30
          %v976 = vsel %vm962, %v909, -1e+30
          %v977 = vsel %vm962, %v910, -1e+30
          %v978 = vsel %vm962, %v911, -1e+30
          %v979 = vsel %vm962, %v912, -1e+30
          %v980 = vsel %vm962, %v913, -1e+30
          %v981 = vsel %vm962, %v914, -1e+30
          %v982 = vsel %vm962, %v915, -1e+30
          %v983 = vsel %vm962, %v916, -1e+30
          %v984 = vsel %vm962, %v917, -1e+30
          %v985 = vsel %vm962, %v918, -1e+30
          %v986 = vsel %vm962, %v919, -1e+30
          %v987 = vsel %vm962, %v920, -1e+30
          %v988 = vsel %vm962, %v921, -1e+30
          %v989 = vsel %vm962, %v922, -1e+30
          %v990 = vsel %vm962, %v923, -1e+30
          %v991 = vsel %vm962, %v924, -1e+30
          %v992 = vsel %vm962, %v925, -1e+30
          %v993 = vsel %vm962, %v926, -1e+30
          %v994 = vsel %vm962, %v927, -1e+30
          %995 = vmax.xlane.f32.xlu0 %v963
          %v996 = vpop.xlane.xlu0 %995
          %997 = vmax.xlane.f32.xlu0 %v964
          %v998 = vpop.xlane.xlu0 %997
          %999 = vmax.xlane.f32.xlu0 %v965
          %v1000 = vpop.xlane.xlu0 %999
          %1001 = vmax.xlane.f32.xlu0 %v966
          %v1002 = vpop.xlane.xlu0 %1001
          %1003 = vmax.xlane.f32.xlu0 %v967
          %v1004 = vpop.xlane.xlu0 %1003
          %1005 = vmax.xlane.f32.xlu0 %v968
          %v1006 = vpop.xlane.xlu0 %1005
          %1007 = vmax.xlane.f32.xlu0 %v969
          %v1008 = vpop.xlane.xlu0 %1007
          %1009 = vmax.xlane.f32.xlu0 %v970
          %v1010 = vpop.xlane.xlu0 %1009
          %1011 = vmax.xlane.f32.xlu0 %v971
          %v1012 = vpop.xlane.xlu0 %1011
          %1013 = vmax.xlane.f32.xlu0 %v972
          %v1014 = vpop.xlane.xlu0 %1013
          %1015 = vmax.xlane.f32.xlu0 %v973
          %v1016 = vpop.xlane.xlu0 %1015
          %1017 = vmax.xlane.f32.xlu0 %v974
          %v1018 = vpop.xlane.xlu0 %1017
          %1019 = vmax.xlane.f32.xlu0 %v975
          %v1020 = vpop.xlane.xlu0 %1019
          %1021 = vmax.xlane.f32.xlu0 %v976
          %v1022 = vpop.xlane.xlu0 %1021
          %1023 = vmax.xlane.f32.xlu0 %v977
          %v1024 = vpop.xlane.xlu0 %1023
          %1025 = vmax.xlane.f32.xlu0 %v978
          %v1026 = vpop.xlane.xlu0 %1025
          %1027 = vmax.xlane.f32.xlu0 %v979
          %v1028 = vpop.xlane.xlu0 %1027
          %1029 = vmax.xlane.f32.xlu0 %v980
          %v1030 = vpop.xlane.xlu0 %1029
          %1031 = vmax.xlane.f32.xlu0 %v981
          %v1032 = vpop.xlane.xlu0 %1031
          %1033 = vmax.xlane.f32.xlu0 %v982
          %v1034 = vpop.xlane.xlu0 %1033
          %1035 = vmax.xlane.f32.xlu0 %v983
          %v1036 = vpop.xlane.xlu0 %1035
          %1037 = vmax.xlane.f32.xlu0 %v984
          %v1038 = vpop.xlane.xlu0 %1037
          %1039 = vmax.xlane.f32.xlu0 %v985
          %v1040 = vpop.xlane.xlu0 %1039
          %1041 = vmax.xlane.f32.xlu0 %v986
          %v1042 = vpop.xlane.xlu0 %1041
          %1043 = vmax.xlane.f32.xlu0 %v987
          %v1044 = vpop.xlane.xlu0 %1043
          %1045 = vmax.xlane.f32.xlu0 %v988
          %v1046 = vpop.xlane.xlu0 %1045
          %1047 = vmax.xlane.f32.xlu0 %v989
          %v1048 = vpop.xlane.xlu0 %1047
          %1049 = vmax.xlane.f32.xlu0 %v990
          %v1050 = vpop.xlane.xlu0 %1049
          %1051 = vmax.xlane.f32.xlu0 %v991
          %v1052 = vpop.xlane.xlu0 %1051
          %1053 = vmax.xlane.f32.xlu0 %v992
          %v1054 = vpop.xlane.xlu0 %1053
          %1055 = vmax.xlane.f32.xlu0 %v993
          %v1056 = vpop.xlane.xlu0 %1055
          %1057 = vmax.xlane.f32.xlu0 %v994
          %v1058 = vpop.xlane.xlu0 %1057
          %v1059 = vsub.f32 %v963, %v996
          %v1060 = vsub.f32 %v964, %v998
          %v1061 = vsub.f32 %v965, %v1000
          %v1062 = vsub.f32 %v966, %v1002
          %v1063 = vsub.f32 %v967, %v1004
          %v1064 = vsub.f32 %v968, %v1006
          %v1065 = vsub.f32 %v969, %v1008
          %v1066 = vsub.f32 %v970, %v1010
          %v1067 = vsub.f32 %v971, %v1012
          %v1068 = vsub.f32 %v972, %v1014
          %v1069 = vsub.f32 %v973, %v1016
          %v1070 = vsub.f32 %v974, %v1018
          %v1071 = vsub.f32 %v975, %v1020
          %v1072 = vsub.f32 %v976, %v1022
          %v1073 = vsub.f32 %v977, %v1024
          %v1074 = vsub.f32 %v978, %v1026
          %v1075 = vsub.f32 %v979, %v1028
          %v1076 = vsub.f32 %v980, %v1030
          %v1077 = vsub.f32 %v981, %v1032
          %v1078 = vsub.f32 %v982, %v1034
          %v1079 = vsub.f32 %v983, %v1036
          %v1080 = vsub.f32 %v984, %v1038
          %v1081 = vsub.f32 %v985, %v1040
          %v1082 = vsub.f32 %v986, %v1042
          %v1083 = vsub.f32 %v987, %v1044
          %v1084 = vsub.f32 %v988, %v1046
          %v1085 = vsub.f32 %v989, %v1048
          %v1086 = vsub.f32 %v990, %v1050
          %v1087 = vsub.f32 %v991, %v1052
          %v1088 = vsub.f32 %v992, %v1054
          %v1089 = vsub.f32 %v993, %v1056
          %v1090 = vsub.f32 %v994, %v1058
          %v1091 = vmul.f32 %v1059, 1.442695
          %v1092 = vpow.pop %v1091
          %v1093 = vmul.f32 %v1060, 1.442695
          %v1094 = vpow.pop %v1093
          %v1095 = vmul.f32 %v1061, 1.442695
          %v1096 = vpow.pop %v1095
          %v1097 = vmul.f32 %v1062, 1.442695
          %v1098 = vpow.pop %v1097
          %v1099 = vmul.f32 %v1063, 1.442695
          %v1100 = vpow.pop %v1099
          %v1101 = vmul.f32 %v1064, 1.442695
          %v1102 = vpow.pop %v1101
          %v1103 = vmul.f32 %v1065, 1.442695
          %v1104 = vpow.pop %v1103
          %v1105 = vmul.f32 %v1066, 1.442695
          %v1106 = vpow.pop %v1105
          %v1107 = vmul.f32 %v1067, 1.442695
          %v1108 = vpow.pop %v1107
          %v1109 = vmul.f32 %v1068, 1.442695
          %v1110 = vpow.pop %v1109
          %v1111 = vmul.f32 %v1069, 1.442695
          %v1112 = vpow.pop %v1111
          %v1113 = vmul.f32 %v1070, 1.442695
          %v1114 = vpow.pop %v1113
          %v1115 = vmul.f32 %v1071, 1.442695
          %v1116 = vpow.pop %v1115
          %v1117 = vmul.f32 %v1072, 1.442695
          %v1118 = vpow.pop %v1117
          %v1119 = vmul.f32 %v1073, 1.442695
          %v1120 = vpow.pop %v1119
          %v1121 = vmul.f32 %v1074, 1.442695
          %v1122 = vpow.pop %v1121
          %v1123 = vmul.f32 %v1075, 1.442695
          %v1124 = vpow.pop %v1123
          %v1125 = vmul.f32 %v1076, 1.442695
          %v1126 = vpow.pop %v1125
          %v1127 = vmul.f32 %v1077, 1.442695
          %v1128 = vpow.pop %v1127
          %v1129 = vmul.f32 %v1078, 1.442695
          %v1130 = vpow.pop %v1129
          %v1131 = vmul.f32 %v1079, 1.442695
          %v1132 = vpow.pop %v1131
          %v1133 = vmul.f32 %v1080, 1.442695
          %v1134 = vpow.pop %v1133
          %v1135 = vmul.f32 %v1081, 1.442695
          %v1136 = vpow.pop %v1135
          %v1137 = vmul.f32 %v1082, 1.442695
          %v1138 = vpow.pop %v1137
          %v1139 = vmul.f32 %v1083, 1.442695
          %v1140 = vpow.pop %v1139
          %v1141 = vmul.f32 %v1084, 1.442695
          %v1142 = vpow.pop %v1141
          %v1143 = vmul.f32 %v1085, 1.442695
          %v1144 = vpow.pop %v1143
          %v1145 = vmul.f32 %v1086, 1.442695
          %v1146 = vpow.pop %v1145
          %v1147 = vmul.f32 %v1087, 1.442695
          %v1148 = vpow.pop %v1147
          %v1149 = vmul.f32 %v1088, 1.442695
          %v1150 = vpow.pop %v1149
          %v1151 = vmul.f32 %v1089, 1.442695
          %v1152 = vpow.pop %v1151
          %v1153 = vmul.f32 %v1090, 1.442695
          %v1154 = vpow.pop %v1153
          %1155 = vadd.xlane.f32.xlu0 %v1092
          %v1156 = vpop.xlane.xlu0 %1155
          %1157 = vadd.xlane.f32.xlu0 %v1094
          %v1158 = vpop.xlane.xlu0 %1157
          %1159 = vadd.xlane.f32.xlu0 %v1096
          %v1160 = vpop.xlane.xlu0 %1159
          %1161 = vadd.xlane.f32.xlu0 %v1098
          %v1162 = vpop.xlane.xlu0 %1161
          %1163 = vadd.xlane.f32.xlu0 %v1100
          %v1164 = vpop.xlane.xlu0 %1163
          %1165 = vadd.xlane.f32.xlu0 %v1102
          %v1166 = vpop.xlane.xlu0 %1165
          %1167 = vadd.xlane.f32.xlu0 %v1104
          %v1168 = vpop.xlane.xlu0 %1167
          %1169 = vadd.xlane.f32.xlu0 %v1106
          %v1170 = vpop.xlane.xlu0 %1169
          %1171 = vadd.xlane.f32.xlu0 %v1108
          %v1172 = vpop.xlane.xlu0 %1171
          %1173 = vadd.xlane.f32.xlu0 %v1110
          %v1174 = vpop.xlane.xlu0 %1173
          %1175 = vadd.xlane.f32.xlu0 %v1112
          %v1176 = vpop.xlane.xlu0 %1175
          %1177 = vadd.xlane.f32.xlu0 %v1114
          %v1178 = vpop.xlane.xlu0 %1177
          %1179 = vadd.xlane.f32.xlu0 %v1116
          %v1180 = vpop.xlane.xlu0 %1179
          %1181 = vadd.xlane.f32.xlu0 %v1118
          %v1182 = vpop.xlane.xlu0 %1181
          %1183 = vadd.xlane.f32.xlu0 %v1120
          %v1184 = vpop.xlane.xlu0 %1183
          %1185 = vadd.xlane.f32.xlu0 %v1122
          %v1186 = vpop.xlane.xlu0 %1185
          %1187 = vadd.xlane.f32.xlu0 %v1124
          %v1188 = vpop.xlane.xlu0 %1187
          %1189 = vadd.xlane.f32.xlu0 %v1126
          %v1190 = vpop.xlane.xlu0 %1189
          %1191 = vadd.xlane.f32.xlu0 %v1128
          %v1192 = vpop.xlane.xlu0 %1191
          %1193 = vadd.xlane.f32.xlu0 %v1130
          %v1194 = vpop.xlane.xlu0 %1193
          %1195 = vadd.xlane.f32.xlu0 %v1132
          %v1196 = vpop.xlane.xlu0 %1195
          %1197 = vadd.xlane.f32.xlu0 %v1134
          %v1198 = vpop.xlane.xlu0 %1197
          %1199 = vadd.xlane.f32.xlu0 %v1136
          %v1200 = vpop.xlane.xlu0 %1199
          %1201 = vadd.xlane.f32.xlu0 %v1138
          %v1202 = vpop.xlane.xlu0 %1201
          %1203 = vadd.xlane.f32.xlu0 %v1140
          %v1204 = vpop.xlane.xlu0 %1203
          %1205 = vadd.xlane.f32.xlu0 %v1142
          %v1206 = vpop.xlane.xlu0 %1205
          %1207 = vadd.xlane.f32.xlu0 %v1144
          %v1208 = vpop.xlane.xlu0 %1207
          %1209 = vadd.xlane.f32.xlu0 %v1146
          %v1210 = vpop.xlane.xlu0 %1209
          %1211 = vadd.xlane.f32.xlu0 %v1148
          %v1212 = vpop.xlane.xlu0 %1211
          %1213 = vadd.xlane.f32.xlu0 %v1150
          %v1214 = vpop.xlane.xlu0 %1213
          %1215 = vadd.xlane.f32.xlu0 %v1152
          %v1216 = vpop.xlane.xlu0 %1215
          %1217 = vadd.xlane.f32.xlu0 %v1154
          %v1218 = vpop.xlane.xlu0 %1217
          %v1219 = vlog2.pop %v1156
          %v1220 = vmul.f32 %v1219, 0.6931472
          %v1221 = vlog2.pop %v1158
          %v1222 = vmul.f32 %v1221, 0.6931472
          %v1223 = vlog2.pop %v1160
          %v1224 = vmul.f32 %v1223, 0.6931472
          %v1225 = vlog2.pop %v1162
          %v1226 = vmul.f32 %v1225, 0.6931472
          %v1227 = vlog2.pop %v1164
          %v1228 = vmul.f32 %v1227, 0.6931472
          %v1229 = vlog2.pop %v1166
          %v1230 = vmul.f32 %v1229, 0.6931472
          %v1231 = vlog2.pop %v1168
          %v1232 = vmul.f32 %v1231, 0.6931472
          %v1233 = vlog2.pop %v1170
          %v1234 = vmul.f32 %v1233, 0.6931472
          %v1235 = vlog2.pop %v1172
          %v1236 = vmul.f32 %v1235, 0.6931472
          %v1237 = vlog2.pop %v1174
          %v1238 = vmul.f32 %v1237, 0.6931472
          %v1239 = vlog2.pop %v1176
          %v1240 = vmul.f32 %v1239, 0.6931472
          %v1241 = vlog2.pop %v1178
          %v1242 = vmul.f32 %v1241, 0.6931472
          %v1243 = vlog2.pop %v1180
          %v1244 = vmul.f32 %v1243, 0.6931472
          %v1245 = vlog2.pop %v1182
          %v1246 = vmul.f32 %v1245, 0.6931472
          %v1247 = vlog2.pop %v1184
          %v1248 = vmul.f32 %v1247, 0.6931472
          %v1249 = vlog2.pop %v1186
          %v1250 = vmul.f32 %v1249, 0.6931472
          %v1251 = vlog2.pop %v1188
          %v1252 = vmul.f32 %v1251, 0.6931472
          %v1253 = vlog2.pop %v1190
          %v1254 = vmul.f32 %v1253, 0.6931472
          %v1255 = vlog2.pop %v1192
          %v1256 = vmul.f32 %v1255, 0.6931472
          %v1257 = vlog2.pop %v1194
          %v1258 = vmul.f32 %v1257, 0.6931472
          %v1259 = vlog2.pop %v1196
          %v1260 = vmul.f32 %v1259, 0.6931472
          %v1261 = vlog2.pop %v1198
          %v1262 = vmul.f32 %v1261, 0.6931472
          %v1263 = vlog2.pop %v1200
          %v1264 = vmul.f32 %v1263, 0.6931472
          %v1265 = vlog2.pop %v1202
          %v1266 = vmul.f32 %v1265, 0.6931472
          %v1267 = vlog2.pop %v1204
          %v1268 = vmul.f32 %v1267, 0.6931472
          %v1269 = vlog2.pop %v1206
          %v1270 = vmul.f32 %v1269, 0.6931472
          %v1271 = vlog2.pop %v1208
          %v1272 = vmul.f32 %v1271, 0.6931472
          %v1273 = vlog2.pop %v1210
          %v1274 = vmul.f32 %v1273, 0.6931472
          %v1275 = vlog2.pop %v1212
          %v1276 = vmul.f32 %v1275, 0.6931472
          %v1277 = vlog2.pop %v1214
          %v1278 = vmul.f32 %v1277, 0.6931472
          %v1279 = vlog2.pop %v1216
          %v1280 = vmul.f32 %v1279, 0.6931472
          %v1281 = vlog2.pop %v1218
          %v1282 = vmul.f32 %v1281, 0.6931472
          %v1283 = vsub.f32 %v1059, %v1220
          %v1284 = vsub.f32 %v1060, %v1222
          %v1285 = vsub.f32 %v1061, %v1224
          %v1286 = vsub.f32 %v1062, %v1226
          %v1287 = vsub.f32 %v1063, %v1228
          %v1288 = vsub.f32 %v1064, %v1230
          %v1289 = vsub.f32 %v1065, %v1232
          %v1290 = vsub.f32 %v1066, %v1234
          %v1291 = vsub.f32 %v1067, %v1236
          %v1292 = vsub.f32 %v1068, %v1238
          %v1293 = vsub.f32 %v1069, %v1240
          %v1294 = vsub.f32 %v1070, %v1242
          %v1295 = vsub.f32 %v1071, %v1244
          %v1296 = vsub.f32 %v1072, %v1246
          %v1297 = vsub.f32 %v1073, %v1248
          %v1298 = vsub.f32 %v1074, %v1250
          %v1299 = vsub.f32 %v1075, %v1252
          %v1300 = vsub.f32 %v1076, %v1254
          %v1301 = vsub.f32 %v1077, %v1256
          %v1302 = vsub.f32 %v1078, %v1258
          %v1303 = vsub.f32 %v1079, %v1260
          %v1304 = vsub.f32 %v1080, %v1262
          %v1305 = vsub.f32 %v1081, %v1264
          %v1306 = vsub.f32 %v1082, %v1266
          %v1307 = vsub.f32 %v1083, %v1268
          %v1308 = vsub.f32 %v1084, %v1270
          %v1309 = vsub.f32 %v1085, %v1272
          %v1310 = vsub.f32 %v1086, %v1274
          %v1311 = vsub.f32 %v1087, %v1276
          %v1312 = vsub.f32 %v1088, %v1278
          %v1313 = vsub.f32 %v1089, %v1280
          %v1314 = vsub.f32 %v1090, %v1282
          %v1315 = vsel %vm962, %v1283, 0.0
          %v1316 = vsel %vm962, %v1284, 0.0
          %v1317 = vsel %vm962, %v1285, 0.0
          %v1318 = vsel %vm962, %v1286, 0.0
          %v1319 = vsel %vm962, %v1287, 0.0
          %v1320 = vsel %vm962, %v1288, 0.0
          %v1321 = vsel %vm962, %v1289, 0.0
          %v1322 = vsel %vm962, %v1290, 0.0
          %v1323 = vsel %vm962, %v1291, 0.0
          %v1324 = vsel %vm962, %v1292, 0.0
          %v1325 = vsel %vm962, %v1293, 0.0
          %v1326 = vsel %vm962, %v1294, 0.0
          %v1327 = vsel %vm962, %v1295, 0.0
          %v1328 = vsel %vm962, %v1296, 0.0
          %v1329 = vsel %vm962, %v1297, 0.0
          %v1330 = vsel %vm962, %v1298, 0.0
          %v1331 = vsel %vm962, %v1299, 0.0
          %v1332 = vsel %vm962, %v1300, 0.0
          %v1333 = vsel %vm962, %v1301, 0.0
          %v1334 = vsel %vm962, %v1302, 0.0
          %v1335 = vsel %vm962, %v1303, 0.0
          %v1336 = vsel %vm962, %v1304, 0.0
          %v1337 = vsel %vm962, %v1305, 0.0
          %v1338 = vsel %vm962, %v1306, 0.0
          %v1339 = vsel %vm962, %v1307, 0.0
          %v1340 = vsel %vm962, %v1308, 0.0
          %v1341 = vsel %vm962, %v1309, 0.0
          %v1342 = vsel %vm962, %v1310, 0.0
          %v1343 = vsel %vm962, %v1311, 0.0
          %v1344 = vsel %vm962, %v1312, 0.0
          %v1345 = vsel %vm962, %v1313, 0.0
          %v1346 = vsel %vm962, %v1314, 0.0
          %1347 = vst [vmem:[%s398] sm:$0xff] %v1315
          %1348 = vst [vmem:[%s398 + $0x8] sm:$0xff] %v1316
          %1349 = vst [vmem:[%s398 + $0x10] sm:$0xff] %v1317
          %1350 = vst [vmem:[%s398 + $0x18] sm:$0xff] %v1318
          %1351 = vst [vmem:[%s398 + $0x20] sm:$0xff] %v1319
          %1352 = vst [vmem:[%s398 + $0x28] sm:$0xff] %v1320
          %1353 = vst [vmem:[%s398 + $0x30] sm:$0xff] %v1321
          %1354 = vst [vmem:[%s398 + $0x38] sm:$0xff] %v1322
          %1355 = vst [vmem:[%s398 + $0x40] sm:$0xff] %v1323
          %1356 = vst [vmem:[%s398 + $0x48] sm:$0xff] %v1324
          %1357 = vst [vmem:[%s398 + $0x50] sm:$0xff] %v1325
          %1358 = vst [vmem:[%s398 + $0x58] sm:$0xff] %v1326
          %1359 = vst [vmem:[%s398 + $0x60] sm:$0xff] %v1327
          %1360 = vst [vmem:[%s398 + $0x68] sm:$0xff] %v1328
          %1361 = vst [vmem:[%s398 + $0x70] sm:$0xff] %v1329
          %1362 = vst [vmem:[%s398 + $0x78] sm:$0xff] %v1330
          %1363 = vst [vmem:[%s398 + $0x80] sm:$0xff] %v1331
          %1364 = vst [vmem:[%s398 + $0x88] sm:$0xff] %v1332
          %1365 = vst [vmem:[%s398 + $0x90] sm:$0xff] %v1333
          %1366 = vst [vmem:[%s398 + $0x98] sm:$0xff] %v1334
          %1367 = vst [vmem:[%s398 + $0xa0] sm:$0xff] %v1335
          %1368 = vst [vmem:[%s398 + $0xa8] sm:$0xff] %v1336
          %1369 = vst [vmem:[%s398 + $0xb0] sm:$0xff] %v1337
          %1370 = vst [vmem:[%s398 + $0xb8] sm:$0xff] %v1338
          %1371 = vst [vmem:[%s398 + $0xc0] sm:$0xff] %v1339
          %1372 = vst [vmem:[%s398 + $0xc8] sm:$0xff] %v1340
          %1373 = vst [vmem:[%s398 + $0xd0] sm:$0xff] %v1341
          %1374 = vst [vmem:[%s398 + $0xd8] sm:$0xff] %v1342
          %1375 = vst [vmem:[%s398 + $0xe0] sm:$0xff] %v1343
          %1376 = vst [vmem:[%s398 + $0xe8] sm:$0xff] %v1344
          %1377 = vst [vmem:[%s398 + $0xf0] sm:$0xff] %v1345
          %1378 = vst [vmem:[%s398 + $0xf8] sm:$0xff] %v1346
        $region63: #{gcn_forward.7} parent=50 // pred_fallthru
          _
        %s1379 = smul.u32 32, %s20
        %p1380 = scmp.lt.s32.totalorder %s1379, 63
        %s1381 = scalar_select %p1380, %s1379, 63
        %s1382 = smul.addr %s1381, 8
        %s1383 = scalar_lea.vmem %s3, %s1382
        %s1384 = smul.u32 32, %s20
        %p1385 = scmp.lt.s32.totalorder %s1384, 63
        %s1386 = scalar_select %p1385, %s1384, 63
        %s1387 = smul.addr %s1386, 8
        %s1388 = scalar_lea.vmem %s4, %s1387
        // Predicated region
        $region64: #{gcn_forward.7} parent=50 // pred_check
          %p1389 = pneg %p121
        $region65: #{gcn_forward.7} parent=50 // pred_check_branch
          %1391 = sbr.rel (%p1389) target = $region67
        $region66: #{gcn_forward.7} parent=50 // pred_region
          %s1392 = smul.u32 32, %s20
        $region67: #{gcn_forward.7} parent=50 // pred_fallthru
          _
        // Predicated region
        $region68: #{gcn_forward.7} parent=50 // pred_check
          %p1393 = pneg %p147
        $region69: #{gcn_forward.7} parent=50 // pred_check_branch
          %1395 = sbr.rel (%p1393) target = $region71
        $region70: #{gcn_forward.7} parent=50 // pred_region
          %s1396 = smul.u32 32, %s20
        $region71: #{gcn_forward.7} parent=50 // pred_fallthru
          _
      $region51: #{gcn_forward.7} parent=5 // pred_fallthru
        _
      %p1397 = scmp.le.s32.totalorder 2, %s11
      // Predicated region
      $region72: #{gcn_forward.7} parent=5 // pred_check
        %p1398 = pneg %p1397
      $region73: #{gcn_forward.7} parent=5 // pred_check_branch
        %1400 = sbr.rel (%p1398) target = $region75
      $region74: #{gcn_forward.7} parent=5 // pred_region
        %s1401 = ssub.s32 %s11, 2
        // Predicated region
        $region76: #{gcn_forward.7} parent=74 // pred_check
          %p1402 = pneg %p127
        $region77: #{gcn_forward.7} parent=74 // pred_check_branch
          %1404 = sbr.rel (%p1402) target = $region79
        $region78: #{gcn_forward.7} parent=74 // pred_region
          %s1405 = smul.u32 32, %s22
          %p1406 = scmp.lt.s32.totalorder %s1405, 63
          %s1407 = scalar_select %p1406, %s1405, 63
          %s1408 = smul.addr %s1407, 8
          %s1409 = scalar_lea.vmem %s3, %s1408
        $region79: #{gcn_forward.7} parent=74 // pred_fallthru
          _
        // Predicated region
        $region80: #{gcn_forward.7} parent=74 // pred_check
          %p1410 = pneg %p153
        $region81: #{gcn_forward.7} parent=74 // pred_check_branch
          %1412 = sbr.rel (%p1410) target = $region83
        $region82: #{gcn_forward.7} parent=74 // pred_region
          %s1413 = smul.u32 32, %s22
          %p1414 = scmp.lt.s32.totalorder %s1413, 63
          %s1415 = scalar_select %p1414, %s1413, 63
          %s1416 = smul.addr %s1415, 8
          %s1417 = scalar_lea.vmem %s4, %s1416
        $region83: #{gcn_forward.7} parent=74 // pred_fallthru
          _
      $region75: #{gcn_forward.7} parent=5 // pred_fallthru
        _
    $region6: #{gcn_forward.7} parent=1 // loop_footer
      %s15 = sadd.s32 1, %s11
    $region7: #{gcn_forward.7} parent=1 // loop_footer_branch
      %10 = sbr.rel target = $region3
    $region8: #{gcn_forward.7} parent=1 // loop_exit
      _

</llo_original>
